<compile_context>
chip_gen: v7x
topology: tpu7x:2x2x1
jax: 0.10.0
libtpu: 0.0.40
codegen_flags: <defaults>
</compile_context>

<pallas_src>
import jax
import jax.numpy as jnp
from jax.experimental import pallas as pl
from jax.experimental.pallas import tpu as pltpu

_LANE = 128  # head Cout padded to this so the final store is unmasked/lane-dense


# ----------------------------------------------------------------------------
# In-kernel building blocks (pure value ops on VMEM-resident data)
# ----------------------------------------------------------------------------
def _reflect_pad1(x):
    """ReflectionPad2d(1) on an NHWC value: (N,H,W,C) -> (N,H+2,W+2,C)."""
    _, H, W, _ = x.shape
    top, bot = x[:, 1:2], x[:, H - 2:H - 1]
    xh = jnp.concatenate([top, x, bot], axis=1)
    left, right = xh[:, :, 1:2], xh[:, :, W - 2:W - 1]
    return jnp.concatenate([left, xh, right], axis=2)


def _conv3x3_im2col(x, w_ref, b_ref):
    """3x3 'valid' conv over a reflection-padded NHWC value as ONE matmul.

    x:     (N, H, W, Cin) f32 value
    w_ref: (9*Cin, Cout)  bf16 weights (tap-major: dy, dx, cin)
    b_ref: (1, Cout)      f32 bias
    returns (N*H*W, Cout) f32
    """
    N, H, W, Cin = x.shape
    xp = _reflect_pad1(x)
    cols = []
    for dy in range(3):
        for dx in range(3):
            cols.append(xp[:, dy:dy + H, dx:dx + W, :].reshape(N * H * W, Cin))
    patches = jnp.concatenate(cols, axis=-1)              # (M, 9*Cin), built once
    acc = jnp.dot(patches.astype(jnp.bfloat16), w_ref[...],
                  preferred_element_type=jnp.float32)     # K=9*Cin fills the MXU
    return acc + b_ref[...]                               # (1, Cout) broadcast


def _lnet_kernel(x_ref, w1, b1, w2, b2, w3, b3, w4, b4, w5, b5, o_ref):
    """All five conv layers fused; activations never leave on-chip memory."""
    nb, h, w, _ = x_ref.shape                             # per-grid-step batch tile
    a = x_ref[...]                                        # (nb, H, W, Cin0) f32
    for wr, br in ((w1, b1), (w2, b2), (w3, b3), (w4, b4)):
        a = jnp.maximum(_conv3x3_im2col(a, wr, br), 0.0)  # conv + ReLU (VPU)
        a = a.reshape(nb, h, w, -1)
    out = _conv3x3_im2col(a, w5, b5)                      # head, Cout padded to 128
    o_ref[...] = jax.nn.sigmoid(out).reshape(nb, h * w, _LANE).astype(o_ref.dtype)


# ----------------------------------------------------------------------------
# Host-side wrappers
# ----------------------------------------------------------------------------
def _pack_params(params):
    """(3,3,Cin,Cout) -> (9*Cin, Cout) bf16 (tap-major) + (1,Cout) f32 bias.

    The last layer's Cout (=1) is zero-padded to _LANE so the kernel's output
    store is a full unmasked tile; the wrapper slices column 0 afterwards.
    """
    packed = []
    last = len(params) - 1
    for i, (wgt, bias) in enumerate(params):
        kh, kw, cin, cout = wgt.shape
        wr = wgt.reshape(kh * kw * cin, cout)
        br = bias.reshape(1, cout)
        if i == last and cout < _LANE:
            wr = jnp.pad(wr, ((0, 0), (0, _LANE - cout)))
            br = jnp.pad(br, ((0, 0), (0, _LANE - cout)))
        packed.append(wr.astype(jnp.bfloat16))
        packed.append(br.astype(jnp.float32))
    return packed


def l_net_forward(x_nchw, params):
    """Forward pass of L_net. Input NCHW (PyTorch), output NCHW (N, 1, H, W)."""
    N, _, H, W = x_nchw.shape
    cout_head = params[-1][0].shape[-1]
    x = jnp.transpose(x_nchw, (0, 2, 3, 1)).astype(jnp.float32)   # NCHW -> NHWC
    cin0 = x.shape[-1]
    packed = _pack_params(params)

    # Grid over batch: each step handles one image; weights/biases use constant
    # index maps so they stay resident in VMEM across steps.
    in_specs = [pl.BlockSpec((1, H, W, cin0), lambda b: (b, 0, 0, 0))]
    in_specs += [pl.BlockSpec(p.shape, lambda b: (0, 0)) for p in packed]

    out3d = pl.pallas_call(
        _lnet_kernel,
        grid=(N,),
        out_shape=jax.ShapeDtypeStruct((N, H * W, _LANE), jnp.float32),
        in_specs=in_specs,
        out_specs=pl.BlockSpec((1, H * W, _LANE), lambda b: (b, 0, 0)),
        compiler_params=pltpu.CompilerParams(
            dimension_semantics=("parallel",)),
    )(x, *packed)

    out = out3d[:, :, :cout_head].reshape(N, H, W, cout_head)
    return jnp.transpose(out, (0, 3, 1, 2))                        # NHWC -> NCHW


def init_lnet_params(key, inp_size=32, num=64):
    """Deterministic synthetic parameters matching L_net's conv shapes."""
    sizes = [(inp_size, num), (num, num), (num, num), (num, num), (num, 1)]
    params = []
    for i, (cin, cout) in enumerate(sizes):
        kw, kb = jax.random.split(jax.random.fold_in(key, i))
        fan_in = cin * 9
        scale = (2.0 / fan_in) ** 0.5
        wgt = scale * jax.random.normal(kw, (3, 3, cin, cout), dtype=jnp.float32)
        bias = 0.01 * jax.random.normal(kb, (cout,), dtype=jnp.float32)
        params.append((wgt, bias))
    return params


def _l_net_reference(x_nchw, params):
    """Pure-JAX f32 reference (ReflectionPad2d(1) + conv + activations)."""
    x = jnp.transpose(x_nchw, (0, 2, 3, 1))
    acts = ["relu"] * (len(params) - 1) + ["sigmoid"]
    for (wgt, bias), act in zip(params, acts):
        xp = jnp.pad(x, ((0, 0), (1, 1), (1, 1), (0, 0)), mode="reflect")
        y = jax.lax.conv_general_dilated(
            xp, wgt, window_strides=(1, 1), padding="VALID",
            dimension_numbers=("NHWC", "HWIO", "NHWC")) + bias
        x = jnp.maximum(y, 0.0) if act == "relu" else jax.nn.sigmoid(y)
    return jnp.transpose(x, (0, 3, 1, 2))


if __name__ == "__main__":
    inp_size, num = 32, 64
    N, H, W = 2, 8, 8

    key = jax.random.PRNGKey(0)
    kx, kp = jax.random.split(key)
    x = jax.random.normal(kx, (N, inp_size, H, W), dtype=jnp.float32)  # NCHW
    params = init_lnet_params(kp, inp_size=inp_size, num=num)

    fwd = jax.jit(l_net_forward)
    out = jax.block_until_ready(fwd(x, params))

    assert out.shape == (N, 1, H, W), out.shape
    assert bool(jnp.all(jnp.isfinite(out)))
    assert bool(jnp.all((out >= 0.0) & (out <= 1.0)))  # sigmoid range

    # Numerical check vs. f32 reference (bf16 MXU operands -> loose tolerance).
    ref = _l_net_reference(x, params)
    max_err = float(jnp.max(jnp.abs(out - ref)))
    assert max_err < 5e-2, f"max abs error vs reference: {max_err}"

    print("KERNEL_OK")
</pallas_src>

<mosaic_0001>
module attributes {stable_mosaic.version = 11 : i64} {
  func.func @_lnet_kernel(%arg0: i32, %arg1: memref<1x8x8x32xf32, #tpu.memory_space<vmem>>, %arg2: memref<288x64xbf16, #tpu.memory_space<vmem>>, %arg3: memref<1x64xf32, #tpu.memory_space<vmem>>, %arg4: memref<576x64xbf16, #tpu.memory_space<vmem>>, %arg5: memref<1x64xf32, #tpu.memory_space<vmem>>, %arg6: memref<576x64xbf16, #tpu.memory_space<vmem>>, %arg7: memref<1x64xf32, #tpu.memory_space<vmem>>, %arg8: memref<576x64xbf16, #tpu.memory_space<vmem>>, %arg9: memref<1x64xf32, #tpu.memory_space<vmem>>, %arg10: memref<576x128xbf16, #tpu.memory_space<vmem>>, %arg11: memref<1x128xf32, #tpu.memory_space<vmem>>, %arg12: memref<1x64x128xf32, #tpu.memory_space<vmem>>) attributes {dimension_semantics = [#tpu.dimension_semantics<parallel>], iteration_bounds = array<i64: 2>, scalar_prefetch = 0 : i64, scratch_operands = 0 : i64, tpu.core_type = #tpu.core_type<tc>, window_params = [{transform_indices = @transform_0, window_bounds = array<i64: 1, 8, 8, 32>}, {pipeline_mode = #tpu.pipeline_mode<synchronous>, transform_indices = @transform_1, window_bounds = array<i64: 288, 64>}, {pipeline_mode = #tpu.pipeline_mode<synchronous>, transform_indices = @transform_2, window_bounds = array<i64: 1, 64>}, {pipeline_mode = #tpu.pipeline_mode<synchronous>, transform_indices = @transform_3, window_bounds = array<i64: 576, 64>}, {pipeline_mode = #tpu.pipeline_mode<synchronous>, transform_indices = @transform_4, window_bounds = array<i64: 1, 64>}, {pipeline_mode = #tpu.pipeline_mode<synchronous>, transform_indices = @transform_5, window_bounds = array<i64: 576, 64>}, {pipeline_mode = #tpu.pipeline_mode<synchronous>, transform_indices = @transform_6, window_bounds = array<i64: 1, 64>}, {pipeline_mode = #tpu.pipeline_mode<synchronous>, transform_indices = @transform_7, window_bounds = array<i64: 576, 64>}, {pipeline_mode = #tpu.pipeline_mode<synchronous>, transform_indices = @transform_8, window_bounds = array<i64: 1, 64>}, {pipeline_mode = #tpu.pipeline_mode<synchronous>, transform_indices = @transform_9, window_bounds = array<i64: 576, 128>}, {pipeline_mode = #tpu.pipeline_mode<synchronous>, transform_indices = @transform_10, window_bounds = array<i64: 1, 128>}, {transform_indices = @transform_11, window_bounds = array<i64: 1, 64, 128>}]} {
    %c0 = arith.constant 0 : index
    %c0_0 = arith.constant 0 : index
    %c0_1 = arith.constant 0 : index
    %c0_2 = arith.constant 0 : index
    %0 = vector.load %arg1[%c0, %c0_0, %c0_1, %c0_2] : memref<1x8x8x32xf32, #tpu.memory_space<vmem>>, vector<1x8x8x32xf32>
    %1 = vector.extract_strided_slice %0 {offsets = [0, 1, 0, 0], sizes = [1, 1, 8, 32], strides = [1, 1, 1, 1]} : vector<1x8x8x32xf32> to vector<1x1x8x32xf32>
    %2 = vector.extract_strided_slice %0 {offsets = [0, 6, 0, 0], sizes = [1, 1, 8, 32], strides = [1, 1, 1, 1]} : vector<1x8x8x32xf32> to vector<1x1x8x32xf32>
    %3 = tpu.concatenate %1, %0, %2 in 1 : vector<1x1x8x32xf32>, vector<1x8x8x32xf32>, vector<1x1x8x32xf32> -> vector<1x10x8x32xf32>
    %4 = vector.extract_strided_slice %3 {offsets = [0, 0, 1, 0], sizes = [1, 10, 1, 32], strides = [1, 1, 1, 1]} : vector<1x10x8x32xf32> to vector<1x10x1x32xf32>
    %5 = vector.extract_strided_slice %3 {offsets = [0, 0, 6, 0], sizes = [1, 10, 1, 32], strides = [1, 1, 1, 1]} : vector<1x10x8x32xf32> to vector<1x10x1x32xf32>
    %6 = tpu.concatenate %4, %3, %5 in 2 : vector<1x10x1x32xf32>, vector<1x10x8x32xf32>, vector<1x10x1x32xf32> -> vector<1x10x10x32xf32>
    %7 = vector.extract_strided_slice %6 {offsets = [0, 0, 0, 0], sizes = [1, 8, 8, 32], strides = [1, 1, 1, 1]} : vector<1x10x10x32xf32> to vector<1x8x8x32xf32>
    %8 = vector.shape_cast %7 : vector<1x8x8x32xf32> to vector<64x32xf32>
    %9 = vector.extract_strided_slice %6 {offsets = [0, 0, 1, 0], sizes = [1, 8, 8, 32], strides = [1, 1, 1, 1]} : vector<1x10x10x32xf32> to vector<1x8x8x32xf32>
    %10 = vector.shape_cast %9 : vector<1x8x8x32xf32> to vector<64x32xf32>
    %11 = vector.extract_strided_slice %6 {offsets = [0, 0, 2, 0], sizes = [1, 8, 8, 32], strides = [1, 1, 1, 1]} : vector<1x10x10x32xf32> to vector<1x8x8x32xf32>
    %12 = vector.shape_cast %11 : vector<1x8x8x32xf32> to vector<64x32xf32>
    %13 = vector.extract_strided_slice %6 {offsets = [0, 1, 0, 0], sizes = [1, 8, 8, 32], strides = [1, 1, 1, 1]} : vector<1x10x10x32xf32> to vector<1x8x8x32xf32>
    %14 = vector.shape_cast %13 : vector<1x8x8x32xf32> to vector<64x32xf32>
    %15 = vector.extract_strided_slice %6 {offsets = [0, 1, 1, 0], sizes = [1, 8, 8, 32], strides = [1, 1, 1, 1]} : vector<1x10x10x32xf32> to vector<1x8x8x32xf32>
    %16 = vector.shape_cast %15 : vector<1x8x8x32xf32> to vector<64x32xf32>
    %17 = vector.extract_strided_slice %6 {offsets = [0, 1, 2, 0], sizes = [1, 8, 8, 32], strides = [1, 1, 1, 1]} : vector<1x10x10x32xf32> to vector<1x8x8x32xf32>
    %18 = vector.shape_cast %17 : vector<1x8x8x32xf32> to vector<64x32xf32>
    %19 = vector.extract_strided_slice %6 {offsets = [0, 2, 0, 0], sizes = [1, 8, 8, 32], strides = [1, 1, 1, 1]} : vector<1x10x10x32xf32> to vector<1x8x8x32xf32>
    %20 = vector.shape_cast %19 : vector<1x8x8x32xf32> to vector<64x32xf32>
    %21 = vector.extract_strided_slice %6 {offsets = [0, 2, 1, 0], sizes = [1, 8, 8, 32], strides = [1, 1, 1, 1]} : vector<1x10x10x32xf32> to vector<1x8x8x32xf32>
    %22 = vector.shape_cast %21 : vector<1x8x8x32xf32> to vector<64x32xf32>
    %23 = vector.extract_strided_slice %6 {offsets = [0, 2, 2, 0], sizes = [1, 8, 8, 32], strides = [1, 1, 1, 1]} : vector<1x10x10x32xf32> to vector<1x8x8x32xf32>
    %24 = vector.shape_cast %23 : vector<1x8x8x32xf32> to vector<64x32xf32>
    %25 = tpu.concatenate %8, %10, %12, %14, %16, %18, %20, %22, %24 in 1 : vector<64x32xf32>, vector<64x32xf32>, vector<64x32xf32>, vector<64x32xf32>, vector<64x32xf32>, vector<64x32xf32>, vector<64x32xf32>, vector<64x32xf32>, vector<64x32xf32> -> vector<64x288xf32>
    %26 = arith.truncf %25 : vector<64x288xf32> to vector<64x288xbf16>
    %c0_3 = arith.constant 0 : index
    %c0_4 = arith.constant 0 : index
    %27 = vector.load %arg2[%c0_3, %c0_4] : memref<288x64xbf16, #tpu.memory_space<vmem>>, vector<288x64xbf16>
    %cst = arith.constant dense<0.000000e+00> : vector<64x64xf32>
    %28 = tpu.matmul %26, %27, %cst {dimension_numbers = #tpu.dot_dimension_numbers<[1], [0], [0], [1], [0, 0, 1, 1], [], []>} : vector<64x288xbf16>, vector<288x64xbf16>, vector<64x64xf32> -> vector<64x64xf32>
    %c0_5 = arith.constant 0 : index
    %c0_6 = arith.constant 0 : index
    %29 = vector.load %arg3[%c0_5, %c0_6] : memref<1x64xf32, #tpu.memory_space<vmem>>, vector<1x64xf32>
    %30 = vector.broadcast %29 : vector<1x64xf32> to vector<64x64xf32>
    %31 = arith.addf %28, %30 : vector<64x64xf32>
    %cst_7 = arith.constant 0.000000e+00 : f32
    %32 = vector.broadcast %cst_7 : f32 to vector<64x64xf32>
    %33 = arith.maximumf %31, %32 : vector<64x64xf32>
    %34 = vector.shape_cast %33 : vector<64x64xf32> to vector<1x8x8x64xf32>
    %35 = vector.extract_strided_slice %34 {offsets = [0, 1, 0, 0], sizes = [1, 1, 8, 64], strides = [1, 1, 1, 1]} : vector<1x8x8x64xf32> to vector<1x1x8x64xf32>
    %36 = vector.extract_strided_slice %34 {offsets = [0, 6, 0, 0], sizes = [1, 1, 8, 64], strides = [1, 1, 1, 1]} : vector<1x8x8x64xf32> to vector<1x1x8x64xf32>
    %37 = tpu.concatenate %35, %34, %36 in 1 : vector<1x1x8x64xf32>, vector<1x8x8x64xf32>, vector<1x1x8x64xf32> -> vector<1x10x8x64xf32>
    %38 = vector.extract_strided_slice %37 {offsets = [0, 0, 1, 0], sizes = [1, 10, 1, 64], strides = [1, 1, 1, 1]} : vector<1x10x8x64xf32> to vector<1x10x1x64xf32>
    %39 = vector.extract_strided_slice %37 {offsets = [0, 0, 6, 0], sizes = [1, 10, 1, 64], strides = [1, 1, 1, 1]} : vector<1x10x8x64xf32> to vector<1x10x1x64xf32>
    %40 = tpu.concatenate %38, %37, %39 in 2 : vector<1x10x1x64xf32>, vector<1x10x8x64xf32>, vector<1x10x1x64xf32> -> vector<1x10x10x64xf32>
    %41 = vector.extract_strided_slice %40 {offsets = [0, 0, 0, 0], sizes = [1, 8, 8, 64], strides = [1, 1, 1, 1]} : vector<1x10x10x64xf32> to vector<1x8x8x64xf32>
    %42 = vector.shape_cast %41 : vector<1x8x8x64xf32> to vector<64x64xf32>
    %43 = vector.extract_strided_slice %40 {offsets = [0, 0, 1, 0], sizes = [1, 8, 8, 64], strides = [1, 1, 1, 1]} : vector<1x10x10x64xf32> to vector<1x8x8x64xf32>
    %44 = vector.shape_cast %43 : vector<1x8x8x64xf32> to vector<64x64xf32>
    %45 = vector.extract_strided_slice %40 {offsets = [0, 0, 2, 0], sizes = [1, 8, 8, 64], strides = [1, 1, 1, 1]} : vector<1x10x10x64xf32> to vector<1x8x8x64xf32>
    %46 = vector.shape_cast %45 : vector<1x8x8x64xf32> to vector<64x64xf32>
    %47 = vector.extract_strided_slice %40 {offsets = [0, 1, 0, 0], sizes = [1, 8, 8, 64], strides = [1, 1, 1, 1]} : vector<1x10x10x64xf32> to vector<1x8x8x64xf32>
    %48 = vector.shape_cast %47 : vector<1x8x8x64xf32> to vector<64x64xf32>
    %49 = vector.extract_strided_slice %40 {offsets = [0, 1, 1, 0], sizes = [1, 8, 8, 64], strides = [1, 1, 1, 1]} : vector<1x10x10x64xf32> to vector<1x8x8x64xf32>
    %50 = vector.shape_cast %49 : vector<1x8x8x64xf32> to vector<64x64xf32>
    %51 = vector.extract_strided_slice %40 {offsets = [0, 1, 2, 0], sizes = [1, 8, 8, 64], strides = [1, 1, 1, 1]} : vector<1x10x10x64xf32> to vector<1x8x8x64xf32>
    %52 = vector.shape_cast %51 : vector<1x8x8x64xf32> to vector<64x64xf32>
    %53 = vector.extract_strided_slice %40 {offsets = [0, 2, 0, 0], sizes = [1, 8, 8, 64], strides = [1, 1, 1, 1]} : vector<1x10x10x64xf32> to vector<1x8x8x64xf32>
    %54 = vector.shape_cast %53 : vector<1x8x8x64xf32> to vector<64x64xf32>
    %55 = vector.extract_strided_slice %40 {offsets = [0, 2, 1, 0], sizes = [1, 8, 8, 64], strides = [1, 1, 1, 1]} : vector<1x10x10x64xf32> to vector<1x8x8x64xf32>
    %56 = vector.shape_cast %55 : vector<1x8x8x64xf32> to vector<64x64xf32>
    %57 = vector.extract_strided_slice %40 {offsets = [0, 2, 2, 0], sizes = [1, 8, 8, 64], strides = [1, 1, 1, 1]} : vector<1x10x10x64xf32> to vector<1x8x8x64xf32>
    %58 = vector.shape_cast %57 : vector<1x8x8x64xf32> to vector<64x64xf32>
    %59 = tpu.concatenate %42, %44, %46, %48, %50, %52, %54, %56, %58 in 1 : vector<64x64xf32>, vector<64x64xf32>, vector<64x64xf32>, vector<64x64xf32>, vector<64x64xf32>, vector<64x64xf32>, vector<64x64xf32>, vector<64x64xf32>, vector<64x64xf32> -> vector<64x576xf32>
    %60 = arith.truncf %59 : vector<64x576xf32> to vector<64x576xbf16>
    %c0_8 = arith.constant 0 : index
    %c0_9 = arith.constant 0 : index
    %61 = vector.load %arg4[%c0_8, %c0_9] : memref<576x64xbf16, #tpu.memory_space<vmem>>, vector<576x64xbf16>
    %cst_10 = arith.constant dense<0.000000e+00> : vector<64x64xf32>
    %62 = tpu.matmul %60, %61, %cst_10 {dimension_numbers = #tpu.dot_dimension_numbers<[1], [0], [0], [1], [0, 0, 1, 1], [], []>} : vector<64x576xbf16>, vector<576x64xbf16>, vector<64x64xf32> -> vector<64x64xf32>
    %c0_11 = arith.constant 0 : index
    %c0_12 = arith.constant 0 : index
    %63 = vector.load %arg5[%c0_11, %c0_12] : memref<1x64xf32, #tpu.memory_space<vmem>>, vector<1x64xf32>
    %64 = vector.broadcast %63 : vector<1x64xf32> to vector<64x64xf32>
    %65 = arith.addf %62, %64 : vector<64x64xf32>
    %cst_13 = arith.constant 0.000000e+00 : f32
    %66 = vector.broadcast %cst_13 : f32 to vector<64x64xf32>
    %67 = arith.maximumf %65, %66 : vector<64x64xf32>
    %68 = vector.shape_cast %67 : vector<64x64xf32> to vector<1x8x8x64xf32>
    %69 = vector.extract_strided_slice %68 {offsets = [0, 1, 0, 0], sizes = [1, 1, 8, 64], strides = [1, 1, 1, 1]} : vector<1x8x8x64xf32> to vector<1x1x8x64xf32>
    %70 = vector.extract_strided_slice %68 {offsets = [0, 6, 0, 0], sizes = [1, 1, 8, 64], strides = [1, 1, 1, 1]} : vector<1x8x8x64xf32> to vector<1x1x8x64xf32>
    %71 = tpu.concatenate %69, %68, %70 in 1 : vector<1x1x8x64xf32>, vector<1x8x8x64xf32>, vector<1x1x8x64xf32> -> vector<1x10x8x64xf32>
    %72 = vector.extract_strided_slice %71 {offsets = [0, 0, 1, 0], sizes = [1, 10, 1, 64], strides = [1, 1, 1, 1]} : vector<1x10x8x64xf32> to vector<1x10x1x64xf32>
    %73 = vector.extract_strided_slice %71 {offsets = [0, 0, 6, 0], sizes = [1, 10, 1, 64], strides = [1, 1, 1, 1]} : vector<1x10x8x64xf32> to vector<1x10x1x64xf32>
    %74 = tpu.concatenate %72, %71, %73 in 2 : vector<1x10x1x64xf32>, vector<1x10x8x64xf32>, vector<1x10x1x64xf32> -> vector<1x10x10x64xf32>
    %75 = vector.extract_strided_slice %74 {offsets = [0, 0, 0, 0], sizes = [1, 8, 8, 64], strides = [1, 1, 1, 1]} : vector<1x10x10x64xf32> to vector<1x8x8x64xf32>
    %76 = vector.shape_cast %75 : vector<1x8x8x64xf32> to vector<64x64xf32>
    %77 = vector.extract_strided_slice %74 {offsets = [0, 0, 1, 0], sizes = [1, 8, 8, 64], strides = [1, 1, 1, 1]} : vector<1x10x10x64xf32> to vector<1x8x8x64xf32>
    %78 = vector.shape_cast %77 : vector<1x8x8x64xf32> to vector<64x64xf32>
    %79 = vector.extract_strided_slice %74 {offsets = [0, 0, 2, 0], sizes = [1, 8, 8, 64], strides = [1, 1, 1, 1]} : vector<1x10x10x64xf32> to vector<1x8x8x64xf32>
    %80 = vector.shape_cast %79 : vector<1x8x8x64xf32> to vector<64x64xf32>
    %81 = vector.extract_strided_slice %74 {offsets = [0, 1, 0, 0], sizes = [1, 8, 8, 64], strides = [1, 1, 1, 1]} : vector<1x10x10x64xf32> to vector<1x8x8x64xf32>
    %82 = vector.shape_cast %81 : vector<1x8x8x64xf32> to vector<64x64xf32>
    %83 = vector.extract_strided_slice %74 {offsets = [0, 1, 1, 0], sizes = [1, 8, 8, 64], strides = [1, 1, 1, 1]} : vector<1x10x10x64xf32> to vector<1x8x8x64xf32>
    %84 = vector.shape_cast %83 : vector<1x8x8x64xf32> to vector<64x64xf32>
    %85 = vector.extract_strided_slice %74 {offsets = [0, 1, 2, 0], sizes = [1, 8, 8, 64], strides = [1, 1, 1, 1]} : vector<1x10x10x64xf32> to vector<1x8x8x64xf32>
    %86 = vector.shape_cast %85 : vector<1x8x8x64xf32> to vector<64x64xf32>
    %87 = vector.extract_strided_slice %74 {offsets = [0, 2, 0, 0], sizes = [1, 8, 8, 64], strides = [1, 1, 1, 1]} : vector<1x10x10x64xf32> to vector<1x8x8x64xf32>
    %88 = vector.shape_cast %87 : vector<1x8x8x64xf32> to vector<64x64xf32>
    %89 = vector.extract_strided_slice %74 {offsets = [0, 2, 1, 0], sizes = [1, 8, 8, 64], strides = [1, 1, 1, 1]} : vector<1x10x10x64xf32> to vector<1x8x8x64xf32>
    %90 = vector.shape_cast %89 : vector<1x8x8x64xf32> to vector<64x64xf32>
    %91 = vector.extract_strided_slice %74 {offsets = [0, 2, 2, 0], sizes = [1, 8, 8, 64], strides = [1, 1, 1, 1]} : vector<1x10x10x64xf32> to vector<1x8x8x64xf32>
    %92 = vector.shape_cast %91 : vector<1x8x8x64xf32> to vector<64x64xf32>
    %93 = tpu.concatenate %76, %78, %80, %82, %84, %86, %88, %90, %92 in 1 : vector<64x64xf32>, vector<64x64xf32>, vector<64x64xf32>, vector<64x64xf32>, vector<64x64xf32>, vector<64x64xf32>, vector<64x64xf32>, vector<64x64xf32>, vector<64x64xf32> -> vector<64x576xf32>
    %94 = arith.truncf %93 : vector<64x576xf32> to vector<64x576xbf16>
    %c0_14 = arith.constant 0 : index
    %c0_15 = arith.constant 0 : index
    %95 = vector.load %arg6[%c0_14, %c0_15] : memref<576x64xbf16, #tpu.memory_space<vmem>>, vector<576x64xbf16>
    %cst_16 = arith.constant dense<0.000000e+00> : vector<64x64xf32>
    %96 = tpu.matmul %94, %95, %cst_16 {dimension_numbers = #tpu.dot_dimension_numbers<[1], [0], [0], [1], [0, 0, 1, 1], [], []>} : vector<64x576xbf16>, vector<576x64xbf16>, vector<64x64xf32> -> vector<64x64xf32>
    %c0_17 = arith.constant 0 : index
    %c0_18 = arith.constant 0 : index
    %97 = vector.load %arg7[%c0_17, %c0_18] : memref<1x64xf32, #tpu.memory_space<vmem>>, vector<1x64xf32>
    %98 = vector.broadcast %97 : vector<1x64xf32> to vector<64x64xf32>
    %99 = arith.addf %96, %98 : vector<64x64xf32>
    %cst_19 = arith.constant 0.000000e+00 : f32
    %100 = vector.broadcast %cst_19 : f32 to vector<64x64xf32>
    %101 = arith.maximumf %99, %100 : vector<64x64xf32>
    %102 = vector.shape_cast %101 : vector<64x64xf32> to vector<1x8x8x64xf32>
    %103 = vector.extract_strided_slice %102 {offsets = [0, 1, 0, 0], sizes = [1, 1, 8, 64], strides = [1, 1, 1, 1]} : vector<1x8x8x64xf32> to vector<1x1x8x64xf32>
    %104 = vector.extract_strided_slice %102 {offsets = [0, 6, 0, 0], sizes = [1, 1, 8, 64], strides = [1, 1, 1, 1]} : vector<1x8x8x64xf32> to vector<1x1x8x64xf32>
    %105 = tpu.concatenate %103, %102, %104 in 1 : vector<1x1x8x64xf32>, vector<1x8x8x64xf32>, vector<1x1x8x64xf32> -> vector<1x10x8x64xf32>
    %106 = vector.extract_strided_slice %105 {offsets = [0, 0, 1, 0], sizes = [1, 10, 1, 64], strides = [1, 1, 1, 1]} : vector<1x10x8x64xf32> to vector<1x10x1x64xf32>
    %107 = vector.extract_strided_slice %105 {offsets = [0, 0, 6, 0], sizes = [1, 10, 1, 64], strides = [1, 1, 1, 1]} : vector<1x10x8x64xf32> to vector<1x10x1x64xf32>
    %108 = tpu.concatenate %106, %105, %107 in 2 : vector<1x10x1x64xf32>, vector<1x10x8x64xf32>, vector<1x10x1x64xf32> -> vector<1x10x10x64xf32>
    %109 = vector.extract_strided_slice %108 {offsets = [0, 0, 0, 0], sizes = [1, 8, 8, 64], strides = [1, 1, 1, 1]} : vector<1x10x10x64xf32> to vector<1x8x8x64xf32>
    %110 = vector.shape_cast %109 : vector<1x8x8x64xf32> to vector<64x64xf32>
    %111 = vector.extract_strided_slice %108 {offsets = [0, 0, 1, 0], sizes = [1, 8, 8, 64], strides = [1, 1, 1, 1]} : vector<1x10x10x64xf32> to vector<1x8x8x64xf32>
    %112 = vector.shape_cast %111 : vector<1x8x8x64xf32> to vector<64x64xf32>
    %113 = vector.extract_strided_slice %108 {offsets = [0, 0, 2, 0], sizes = [1, 8, 8, 64], strides = [1, 1, 1, 1]} : vector<1x10x10x64xf32> to vector<1x8x8x64xf32>
    %114 = vector.shape_cast %113 : vector<1x8x8x64xf32> to vector<64x64xf32>
    %115 = vector.extract_strided_slice %108 {offsets = [0, 1, 0, 0], sizes = [1, 8, 8, 64], strides = [1, 1, 1, 1]} : vector<1x10x10x64xf32> to vector<1x8x8x64xf32>
    %116 = vector.shape_cast %115 : vector<1x8x8x64xf32> to vector<64x64xf32>
    %117 = vector.extract_strided_slice %108 {offsets = [0, 1, 1, 0], sizes = [1, 8, 8, 64], strides = [1, 1, 1, 1]} : vector<1x10x10x64xf32> to vector<1x8x8x64xf32>
    %118 = vector.shape_cast %117 : vector<1x8x8x64xf32> to vector<64x64xf32>
    %119 = vector.extract_strided_slice %108 {offsets = [0, 1, 2, 0], sizes = [1, 8, 8, 64], strides = [1, 1, 1, 1]} : vector<1x10x10x64xf32> to vector<1x8x8x64xf32>
    %120 = vector.shape_cast %119 : vector<1x8x8x64xf32> to vector<64x64xf32>
    %121 = vector.extract_strided_slice %108 {offsets = [0, 2, 0, 0], sizes = [1, 8, 8, 64], strides = [1, 1, 1, 1]} : vector<1x10x10x64xf32> to vector<1x8x8x64xf32>
    %122 = vector.shape_cast %121 : vector<1x8x8x64xf32> to vector<64x64xf32>
    %123 = vector.extract_strided_slice %108 {offsets = [0, 2, 1, 0], sizes = [1, 8, 8, 64], strides = [1, 1, 1, 1]} : vector<1x10x10x64xf32> to vector<1x8x8x64xf32>
    %124 = vector.shape_cast %123 : vector<1x8x8x64xf32> to vector<64x64xf32>
    %125 = vector.extract_strided_slice %108 {offsets = [0, 2, 2, 0], sizes = [1, 8, 8, 64], strides = [1, 1, 1, 1]} : vector<1x10x10x64xf32> to vector<1x8x8x64xf32>
    %126 = vector.shape_cast %125 : vector<1x8x8x64xf32> to vector<64x64xf32>
    %127 = tpu.concatenate %110, %112, %114, %116, %118, %120, %122, %124, %126 in 1 : vector<64x64xf32>, vector<64x64xf32>, vector<64x64xf32>, vector<64x64xf32>, vector<64x64xf32>, vector<64x64xf32>, vector<64x64xf32>, vector<64x64xf32>, vector<64x64xf32> -> vector<64x576xf32>
    %128 = arith.truncf %127 : vector<64x576xf32> to vector<64x576xbf16>
    %c0_20 = arith.constant 0 : index
    %c0_21 = arith.constant 0 : index
    %129 = vector.load %arg8[%c0_20, %c0_21] : memref<576x64xbf16, #tpu.memory_space<vmem>>, vector<576x64xbf16>
    %cst_22 = arith.constant dense<0.000000e+00> : vector<64x64xf32>
    %130 = tpu.matmul %128, %129, %cst_22 {dimension_numbers = #tpu.dot_dimension_numbers<[1], [0], [0], [1], [0, 0, 1, 1], [], []>} : vector<64x576xbf16>, vector<576x64xbf16>, vector<64x64xf32> -> vector<64x64xf32>
    %c0_23 = arith.constant 0 : index
    %c0_24 = arith.constant 0 : index
    %131 = vector.load %arg9[%c0_23, %c0_24] : memref<1x64xf32, #tpu.memory_space<vmem>>, vector<1x64xf32>
    %132 = vector.broadcast %131 : vector<1x64xf32> to vector<64x64xf32>
    %133 = arith.addf %130, %132 : vector<64x64xf32>
    %cst_25 = arith.constant 0.000000e+00 : f32
    %134 = vector.broadcast %cst_25 : f32 to vector<64x64xf32>
    %135 = arith.maximumf %133, %134 : vector<64x64xf32>
    %136 = vector.shape_cast %135 : vector<64x64xf32> to vector<1x8x8x64xf32>
    %137 = vector.extract_strided_slice %136 {offsets = [0, 1, 0, 0], sizes = [1, 1, 8, 64], strides = [1, 1, 1, 1]} : vector<1x8x8x64xf32> to vector<1x1x8x64xf32>
    %138 = vector.extract_strided_slice %136 {offsets = [0, 6, 0, 0], sizes = [1, 1, 8, 64], strides = [1, 1, 1, 1]} : vector<1x8x8x64xf32> to vector<1x1x8x64xf32>
    %139 = tpu.concatenate %137, %136, %138 in 1 : vector<1x1x8x64xf32>, vector<1x8x8x64xf32>, vector<1x1x8x64xf32> -> vector<1x10x8x64xf32>
    %140 = vector.extract_strided_slice %139 {offsets = [0, 0, 1, 0], sizes = [1, 10, 1, 64], strides = [1, 1, 1, 1]} : vector<1x10x8x64xf32> to vector<1x10x1x64xf32>
    %141 = vector.extract_strided_slice %139 {offsets = [0, 0, 6, 0], sizes = [1, 10, 1, 64], strides = [1, 1, 1, 1]} : vector<1x10x8x64xf32> to vector<1x10x1x64xf32>
    %142 = tpu.concatenate %140, %139, %141 in 2 : vector<1x10x1x64xf32>, vector<1x10x8x64xf32>, vector<1x10x1x64xf32> -> vector<1x10x10x64xf32>
    %143 = vector.extract_strided_slice %142 {offsets = [0, 0, 0, 0], sizes = [1, 8, 8, 64], strides = [1, 1, 1, 1]} : vector<1x10x10x64xf32> to vector<1x8x8x64xf32>
    %144 = vector.shape_cast %143 : vector<1x8x8x64xf32> to vector<64x64xf32>
    %145 = vector.extract_strided_slice %142 {offsets = [0, 0, 1, 0], sizes = [1, 8, 8, 64], strides = [1, 1, 1, 1]} : vector<1x10x10x64xf32> to vector<1x8x8x64xf32>
    %146 = vector.shape_cast %145 : vector<1x8x8x64xf32> to vector<64x64xf32>
    %147 = vector.extract_strided_slice %142 {offsets = [0, 0, 2, 0], sizes = [1, 8, 8, 64], strides = [1, 1, 1, 1]} : vector<1x10x10x64xf32> to vector<1x8x8x64xf32>
    %148 = vector.shape_cast %147 : vector<1x8x8x64xf32> to vector<64x64xf32>
    %149 = vector.extract_strided_slice %142 {offsets = [0, 1, 0, 0], sizes = [1, 8, 8, 64], strides = [1, 1, 1, 1]} : vector<1x10x10x64xf32> to vector<1x8x8x64xf32>
    %150 = vector.shape_cast %149 : vector<1x8x8x64xf32> to vector<64x64xf32>
    %151 = vector.extract_strided_slice %142 {offsets = [0, 1, 1, 0], sizes = [1, 8, 8, 64], strides = [1, 1, 1, 1]} : vector<1x10x10x64xf32> to vector<1x8x8x64xf32>
    %152 = vector.shape_cast %151 : vector<1x8x8x64xf32> to vector<64x64xf32>
    %153 = vector.extract_strided_slice %142 {offsets = [0, 1, 2, 0], sizes = [1, 8, 8, 64], strides = [1, 1, 1, 1]} : vector<1x10x10x64xf32> to vector<1x8x8x64xf32>
    %154 = vector.shape_cast %153 : vector<1x8x8x64xf32> to vector<64x64xf32>
    %155 = vector.extract_strided_slice %142 {offsets = [0, 2, 0, 0], sizes = [1, 8, 8, 64], strides = [1, 1, 1, 1]} : vector<1x10x10x64xf32> to vector<1x8x8x64xf32>
    %156 = vector.shape_cast %155 : vector<1x8x8x64xf32> to vector<64x64xf32>
    %157 = vector.extract_strided_slice %142 {offsets = [0, 2, 1, 0], sizes = [1, 8, 8, 64], strides = [1, 1, 1, 1]} : vector<1x10x10x64xf32> to vector<1x8x8x64xf32>
    %158 = vector.shape_cast %157 : vector<1x8x8x64xf32> to vector<64x64xf32>
    %159 = vector.extract_strided_slice %142 {offsets = [0, 2, 2, 0], sizes = [1, 8, 8, 64], strides = [1, 1, 1, 1]} : vector<1x10x10x64xf32> to vector<1x8x8x64xf32>
    %160 = vector.shape_cast %159 : vector<1x8x8x64xf32> to vector<64x64xf32>
    %161 = tpu.concatenate %144, %146, %148, %150, %152, %154, %156, %158, %160 in 1 : vector<64x64xf32>, vector<64x64xf32>, vector<64x64xf32>, vector<64x64xf32>, vector<64x64xf32>, vector<64x64xf32>, vector<64x64xf32>, vector<64x64xf32>, vector<64x64xf32> -> vector<64x576xf32>
    %162 = arith.truncf %161 : vector<64x576xf32> to vector<64x576xbf16>
    %c0_26 = arith.constant 0 : index
    %c0_27 = arith.constant 0 : index
    %163 = vector.load %arg10[%c0_26, %c0_27] : memref<576x128xbf16, #tpu.memory_space<vmem>>, vector<576x128xbf16>
    %cst_28 = arith.constant dense<0.000000e+00> : vector<64x128xf32>
    %164 = tpu.matmul %162, %163, %cst_28 {dimension_numbers = #tpu.dot_dimension_numbers<[1], [0], [0], [1], [0, 0, 1, 1], [], []>} : vector<64x576xbf16>, vector<576x128xbf16>, vector<64x128xf32> -> vector<64x128xf32>
    %c0_29 = arith.constant 0 : index
    %c0_30 = arith.constant 0 : index
    %165 = vector.load %arg11[%c0_29, %c0_30] : memref<1x128xf32, #tpu.memory_space<vmem>>, vector<1x128xf32>
    %166 = vector.broadcast %165 : vector<1x128xf32> to vector<64x128xf32>
    %167 = arith.addf %164, %166 : vector<64x128xf32>
    %168 = arith.negf %167 : vector<64x128xf32>
    %169 = math.exp %168 : vector<64x128xf32>
    %cst_31 = arith.constant 1.000000e+00 : f32
    %170 = vector.broadcast %cst_31 : f32 to vector<64x128xf32>
    %171 = arith.addf %170, %169 : vector<64x128xf32>
    %172 = arith.divf %170, %171 : vector<64x128xf32>
    %173 = vector.shape_cast %172 : vector<64x128xf32> to vector<1x64x128xf32>
    %c0_32 = arith.constant 0 : index
    %c0_33 = arith.constant 0 : index
    %c0_34 = arith.constant 0 : index
    %174 = vector.load %arg12[%c0_32, %c0_33, %c0_34] : memref<1x64x128xf32, #tpu.memory_space<vmem>>, vector<1x64x128xf32>
    tpu.vector_store %arg12[%c0_32, %c0_33, %c0_34], %173 {strides = array<i32>} : memref<1x64x128xf32, #tpu.memory_space<vmem>>, vector<1x64x128xf32>,
    return
  }
  func.func @transform_0(%arg0: i32) -> (i32, i32, i32, i32) {
    %c0_i32 = arith.constant 0 : i32
    %c0_i32_0 = arith.constant 0 : i32
    %c0_i32_1 = arith.constant 0 : i32
    %c0_i32_2 = arith.constant 0 : i32
    return %arg0, %c0_i32, %c0_i32_0, %c0_i32_1 : i32, i32, i32, i32
  }
  func.func @transform_1(%arg0: i32) -> (i32, i32) {
    %c0_i32 = arith.constant 0 : i32
    %c0_i32_0 = arith.constant 0 : i32
    %c0_i32_1 = arith.constant 0 : i32
    return %c0_i32, %c0_i32_0 : i32, i32
  }
  func.func @transform_2(%arg0: i32) -> (i32, i32) {
    %c0_i32 = arith.constant 0 : i32
    %c0_i32_0 = arith.constant 0 : i32
    %c0_i32_1 = arith.constant 0 : i32
    return %c0_i32, %c0_i32_0 : i32, i32
  }
  func.func @transform_3(%arg0: i32) -> (i32, i32) {
    %c0_i32 = arith.constant 0 : i32
    %c0_i32_0 = arith.constant 0 : i32
    %c0_i32_1 = arith.constant 0 : i32
    return %c0_i32, %c0_i32_0 : i32, i32
  }
  func.func @transform_4(%arg0: i32) -> (i32, i32) {
    %c0_i32 = arith.constant 0 : i32
    %c0_i32_0 = arith.constant 0 : i32
    %c0_i32_1 = arith.constant 0 : i32
    return %c0_i32, %c0_i32_0 : i32, i32
  }
  func.func @transform_5(%arg0: i32) -> (i32, i32) {
    %c0_i32 = arith.constant 0 : i32
    %c0_i32_0 = arith.constant 0 : i32
    %c0_i32_1 = arith.constant 0 : i32
    return %c0_i32, %c0_i32_0 : i32, i32
  }
  func.func @transform_6(%arg0: i32) -> (i32, i32) {
    %c0_i32 = arith.constant 0 : i32
    %c0_i32_0 = arith.constant 0 : i32
    %c0_i32_1 = arith.constant 0 : i32
    return %c0_i32, %c0_i32_0 : i32, i32
  }
  func.func @transform_7(%arg0: i32) -> (i32, i32) {
    %c0_i32 = arith.constant 0 : i32
    %c0_i32_0 = arith.constant 0 : i32
    %c0_i32_1 = arith.constant 0 : i32
    return %c0_i32, %c0_i32_0 : i32, i32
  }
  func.func @transform_8(%arg0: i32) -> (i32, i32) {
    %c0_i32 = arith.constant 0 : i32
    %c0_i32_0 = arith.constant 0 : i32
    %c0_i32_1 = arith.constant 0 : i32
    return %c0_i32, %c0_i32_0 : i32, i32
  }
  func.func @transform_9(%arg0: i32) -> (i32, i32) {
    %c0_i32 = arith.constant 0 : i32
    %c0_i32_0 = arith.constant 0 : i32
    %c0_i32_1 = arith.constant 0 : i32
    return %c0_i32, %c0_i32_0 : i32, i32
  }
  func.func @transform_10(%arg0: i32) -> (i32, i32) {
    %c0_i32 = arith.constant 0 : i32
    %c0_i32_0 = arith.constant 0 : i32
    %c0_i32_1 = arith.constant 0 : i32
    return %c0_i32, %c0_i32_0 : i32, i32
  }
  func.func @transform_11(%arg0: i32) -> (i32, i32, i32) {
    %c0_i32 = arith.constant 0 : i32
    %c0_i32_0 = arith.constant 0 : i32
    %c0_i32_1 = arith.constant 0 : i32
    return %arg0, %c0_i32, %c0_i32_0 : i32, i32, i32
  }
}

</mosaic_0001>

<llo_original>
// kernel: l_net_forward.1
$region0: #{l_net_forward.1}
  #allocation0 [shape = 'u32[]', space=smem, size = 0x4, offset = 0x4, fixed_abs, tag = 'smem constant byte address 0x4 - core index']
  #allocation1 [shape = 'u32[144,128]{1,0:T(1,128)}', space=vmem, size = 0x12000, scoped, tag = 'internal scratch']
  %s0 = inlined_call_operand.vmem [shape: f32[2,8,8,32], index: 0, kind: input, shape index: {}]
  %s1 = inlined_call_operand.vmem [shape: bf16[288,64], index: 1, kind: input, shape index: {}]
  %s2 = inlined_call_operand.vmem [shape: f32[1,64], index: 2, kind: input, shape index: {}]
  %s3 = inlined_call_operand.vmem [shape: bf16[576,64], index: 3, kind: input, shape index: {}]
  %s4 = inlined_call_operand.vmem [shape: f32[1,64], index: 4, kind: input, shape index: {}]
  %s5 = inlined_call_operand.vmem [shape: bf16[576,64], index: 5, kind: input, shape index: {}]
  %s6 = inlined_call_operand.vmem [shape: f32[1,64], index: 6, kind: input, shape index: {}]
  %s7 = inlined_call_operand.vmem [shape: bf16[576,64], index: 7, kind: input, shape index: {}]
  %s8 = inlined_call_operand.vmem [shape: f32[1,64], index: 8, kind: input, shape index: {}]
  %s9 = inlined_call_operand.vmem [shape: bf16[576,128], index: 9, kind: input, shape index: {}]
  %s10 = inlined_call_operand.vmem [shape: f32[1,128], index: 10, kind: input, shape index: {}]
  %s11 = inlined_call_operand.vmem [shape: f32[2,64,128], index: 11, kind: output, shape index: {}]
  %s12 = sld [smem:[#allocation0]]
  $region77: #{l_net_forward.1} parent=0
    _
  %s14 = ssub.s32 1, %s12
  %s15 = scalar_select 0, %s14, %s12
  loop: start=0, step=1, limit=4
  $region2: #{l_net_forward.1} parent=0 // loop_pre_header
    _
  $region3: #{l_net_forward.1} parent=0 // loop_header
    %s17 = sphi 0, %s21
    %p18 = scmp.ge.s32.totalorder %s17, 4
    %s27 = sphi 0, %s29
    %s30 = sphi 0, %s27
    %s31 = sphi 0, %s30
    %s47 = sphi 0, %s31
    %s51 = sphi 0, %s51
    %s53 = sphi 0, %s51
    %s54 = sphi 0, %s53
    %s68 = sphi 0, %s54
    %s72 = sphi 0, %s72
    %s74 = sphi 0, %s72
    %s75 = sphi 0, %s74
    %s89 = sphi 0, %s75
    %s93 = sphi 0, %s93
    %s95 = sphi 0, %s93
    %s96 = sphi 0, %s95
    %s110 = sphi 0, %s96
    %s114 = sphi 0, %s114
    %s116 = sphi 0, %s114
    %s117 = sphi 0, %s116
    %s131 = sphi 0, %s117
    %s135 = sphi 0, %s135
    %s137 = sphi 0, %s135
    %s138 = sphi 0, %s137
    %s152 = sphi 0, %s138
    %s156 = sphi 0, %s156
    %s158 = sphi 0, %s156
    %s159 = sphi 0, %s158
    %s173 = sphi 0, %s159
    %s177 = sphi 0, %s177
    %s179 = sphi 0, %s177
    %s180 = sphi 0, %s179
    %s194 = sphi 0, %s180
    %s198 = sphi 0, %s198
    %s200 = sphi 0, %s198
    %s201 = sphi 0, %s200
    %s215 = sphi 0, %s201
    %s219 = sphi 0, %s219
    %s221 = sphi 0, %s219
    %s222 = sphi 0, %s221
    %s236 = sphi 0, %s222
    %s240 = sphi 0, %s240
    %s242 = sphi 0, %s240
    %s243 = sphi 0, %s242
    %s257 = sphi 0, %s243
    %s263 = sphi 0, %s265
    %s266 = sphi 0, %s263
    %s267 = sphi 0, %s266
    %s283 = sphi 0, %s267
  $region4: #{l_net_forward.1} parent=0 // loop_header_branch
    %20 = sbr.rel (%p18) target = $region8
  $region5: #{l_net_forward.1} parent=0 // loop_body
    %s22 = ssub.s32 %s17, 1
    %s23 = ssub.s32 %s17, 2
    %s24 = sadd.s32 %s17, 1
    %s25 = ssub.s32 %s17, %s24
    %p26 = scmp.eq.s32.totalorder %s25, 0
    %s28 = sadd.s32 %s27, 1
    %s29 = scalar_select %p26, %s27, %s28
    %p32 = pneg %p26
    %p33 = scmp.eq.s32.totalorder %s17, 1
    %p34 = por %p32, %p33
    %p35 = scmp.ne.s32.totalorder %s27, %s30
    %p36 = scmp.eq.s32.totalorder %s17, 0
    %p37 = por %p35, %p36
    %p38 = scmp.ne.s32.totalorder %s27, %s30
    %p39 = scmp.eq.s32.totalorder %s22, 1
    %p40 = por %p38, %p39
    %p41 = scmp.ne.s32.totalorder %s30, %s31
    %p42 = scmp.eq.s32.totalorder %s22, 0
    %p43 = por %p41, %p42
    %p44 = scmp.ne.s32.totalorder %s30, %s31
    %p45 = scmp.eq.s32.totalorder %s23, 1
    %p46 = por %p44, %p45
    %p48 = scmp.ne.s32.totalorder %s31, %s47
    %p49 = scmp.eq.s32.totalorder %s23, 0
    %p50 = por %p48, %p49
    %s52 = sadd.s32 %s51, 1
    %p55 = scmp.eq.s32.totalorder %s17, 1
    %p56 = scmp.ne.s32.totalorder %s51, %s53
    %p57 = scmp.eq.s32.totalorder %s17, 0
    %p58 = por %p56, %p57
    %p59 = scmp.ne.s32.totalorder %s51, %s53
    %p60 = scmp.eq.s32.totalorder %s22, 1
    %p61 = por %p59, %p60
    %p62 = scmp.ne.s32.totalorder %s53, %s54
    %p63 = scmp.eq.s32.totalorder %s22, 0
    %p64 = por %p62, %p63
    %p65 = scmp.ne.s32.totalorder %s53, %s54
    %p66 = scmp.eq.s32.totalorder %s23, 1
    %p67 = por %p65, %p66
    %p69 = scmp.ne.s32.totalorder %s54, %s68
    %p70 = scmp.eq.s32.totalorder %s23, 0
    %p71 = por %p69, %p70
    %s73 = sadd.s32 %s72, 1
    %p76 = scmp.eq.s32.totalorder %s17, 1
    %p77 = scmp.ne.s32.totalorder %s72, %s74
    %p78 = scmp.eq.s32.totalorder %s17, 0
    %p79 = por %p77, %p78
    %p80 = scmp.ne.s32.totalorder %s72, %s74
    %p81 = scmp.eq.s32.totalorder %s22, 1
    %p82 = por %p80, %p81
    %p83 = scmp.ne.s32.totalorder %s74, %s75
    %p84 = scmp.eq.s32.totalorder %s22, 0
    %p85 = por %p83, %p84
    %p86 = scmp.ne.s32.totalorder %s74, %s75
    %p87 = scmp.eq.s32.totalorder %s23, 1
    %p88 = por %p86, %p87
    %p90 = scmp.ne.s32.totalorder %s75, %s89
    %p91 = scmp.eq.s32.totalorder %s23, 0
    %p92 = por %p90, %p91
    %s94 = sadd.s32 %s93, 1
    %p97 = scmp.eq.s32.totalorder %s17, 1
    %p98 = scmp.ne.s32.totalorder %s93, %s95
    %p99 = scmp.eq.s32.totalorder %s17, 0
    %p100 = por %p98, %p99
    %p101 = scmp.ne.s32.totalorder %s93, %s95
    %p102 = scmp.eq.s32.totalorder %s22, 1
    %p103 = por %p101, %p102
    %p104 = scmp.ne.s32.totalorder %s95, %s96
    %p105 = scmp.eq.s32.totalorder %s22, 0
    %p106 = por %p104, %p105
    %p107 = scmp.ne.s32.totalorder %s95, %s96
    %p108 = scmp.eq.s32.totalorder %s23, 1
    %p109 = por %p107, %p108
    %p111 = scmp.ne.s32.totalorder %s96, %s110
    %p112 = scmp.eq.s32.totalorder %s23, 0
    %p113 = por %p111, %p112
    %s115 = sadd.s32 %s114, 1
    %p118 = scmp.eq.s32.totalorder %s17, 1
    %p119 = scmp.ne.s32.totalorder %s114, %s116
    %p120 = scmp.eq.s32.totalorder %s17, 0
    %p121 = por %p119, %p120
    %p122 = scmp.ne.s32.totalorder %s114, %s116
    %p123 = scmp.eq.s32.totalorder %s22, 1
    %p124 = por %p122, %p123
    %p125 = scmp.ne.s32.totalorder %s116, %s117
    %p126 = scmp.eq.s32.totalorder %s22, 0
    %p127 = por %p125, %p126
    %p128 = scmp.ne.s32.totalorder %s116, %s117
    %p129 = scmp.eq.s32.totalorder %s23, 1
    %p130 = por %p128, %p129
    %p132 = scmp.ne.s32.totalorder %s117, %s131
    %p133 = scmp.eq.s32.totalorder %s23, 0
    %p134 = por %p132, %p133
    %s136 = sadd.s32 %s135, 1
    %p139 = scmp.eq.s32.totalorder %s17, 1
    %p140 = scmp.ne.s32.totalorder %s135, %s137
    %p141 = scmp.eq.s32.totalorder %s17, 0
    %p142 = por %p140, %p141
    %p143 = scmp.ne.s32.totalorder %s135, %s137
    %p144 = scmp.eq.s32.totalorder %s22, 1
    %p145 = por %p143, %p144
    %p146 = scmp.ne.s32.totalorder %s137, %s138
    %p147 = scmp.eq.s32.totalorder %s22, 0
    %p148 = por %p146, %p147
    %p149 = scmp.ne.s32.totalorder %s137, %s138
    %p150 = scmp.eq.s32.totalorder %s23, 1
    %p151 = por %p149, %p150
    %p153 = scmp.ne.s32.totalorder %s138, %s152
    %p154 = scmp.eq.s32.totalorder %s23, 0
    %p155 = por %p153, %p154
    %s157 = sadd.s32 %s156, 1
    %p160 = scmp.eq.s32.totalorder %s17, 1
    %p161 = scmp.ne.s32.totalorder %s156, %s158
    %p162 = scmp.eq.s32.totalorder %s17, 0
    %p163 = por %p161, %p162
    %p164 = scmp.ne.s32.totalorder %s156, %s158
    %p165 = scmp.eq.s32.totalorder %s22, 1
    %p166 = por %p164, %p165
    %p167 = scmp.ne.s32.totalorder %s158, %s159
    %p168 = scmp.eq.s32.totalorder %s22, 0
    %p169 = por %p167, %p168
    %p170 = scmp.ne.s32.totalorder %s158, %s159
    %p171 = scmp.eq.s32.totalorder %s23, 1
    %p172 = por %p170, %p171
    %p174 = scmp.ne.s32.totalorder %s159, %s173
    %p175 = scmp.eq.s32.totalorder %s23, 0
    %p176 = por %p174, %p175
    %s178 = sadd.s32 %s177, 1
    %p181 = scmp.eq.s32.totalorder %s17, 1
    %p182 = scmp.ne.s32.totalorder %s177, %s179
    %p183 = scmp.eq.s32.totalorder %s17, 0
    %p184 = por %p182, %p183
    %p185 = scmp.ne.s32.totalorder %s177, %s179
    %p186 = scmp.eq.s32.totalorder %s22, 1
    %p187 = por %p185, %p186
    %p188 = scmp.ne.s32.totalorder %s179, %s180
    %p189 = scmp.eq.s32.totalorder %s22, 0
    %p190 = por %p188, %p189
    %p191 = scmp.ne.s32.totalorder %s179, %s180
    %p192 = scmp.eq.s32.totalorder %s23, 1
    %p193 = por %p191, %p192
    %p195 = scmp.ne.s32.totalorder %s180, %s194
    %p196 = scmp.eq.s32.totalorder %s23, 0
    %p197 = por %p195, %p196
    %s199 = sadd.s32 %s198, 1
    %p202 = scmp.eq.s32.totalorder %s17, 1
    %p203 = scmp.ne.s32.totalorder %s198, %s200
    %p204 = scmp.eq.s32.totalorder %s17, 0
    %p205 = por %p203, %p204
    %p206 = scmp.ne.s32.totalorder %s198, %s200
    %p207 = scmp.eq.s32.totalorder %s22, 1
    %p208 = por %p206, %p207
    %p209 = scmp.ne.s32.totalorder %s200, %s201
    %p210 = scmp.eq.s32.totalorder %s22, 0
    %p211 = por %p209, %p210
    %p212 = scmp.ne.s32.totalorder %s200, %s201
    %p213 = scmp.eq.s32.totalorder %s23, 1
    %p214 = por %p212, %p213
    %p216 = scmp.ne.s32.totalorder %s201, %s215
    %p217 = scmp.eq.s32.totalorder %s23, 0
    %p218 = por %p216, %p217
    %s220 = sadd.s32 %s219, 1
    %p223 = scmp.eq.s32.totalorder %s17, 1
    %p224 = scmp.ne.s32.totalorder %s219, %s221
    %p225 = scmp.eq.s32.totalorder %s17, 0
    %p226 = por %p224, %p225
    %p227 = scmp.ne.s32.totalorder %s219, %s221
    %p228 = scmp.eq.s32.totalorder %s22, 1
    %p229 = por %p227, %p228
    %p230 = scmp.ne.s32.totalorder %s221, %s222
    %p231 = scmp.eq.s32.totalorder %s22, 0
    %p232 = por %p230, %p231
    %p233 = scmp.ne.s32.totalorder %s221, %s222
    %p234 = scmp.eq.s32.totalorder %s23, 1
    %p235 = por %p233, %p234
    %p237 = scmp.ne.s32.totalorder %s222, %s236
    %p238 = scmp.eq.s32.totalorder %s23, 0
    %p239 = por %p237, %p238
    %s241 = sadd.s32 %s240, 1
    %p244 = scmp.eq.s32.totalorder %s17, 1
    %p245 = scmp.ne.s32.totalorder %s240, %s242
    %p246 = scmp.eq.s32.totalorder %s17, 0
    %p247 = por %p245, %p246
    %p248 = scmp.ne.s32.totalorder %s240, %s242
    %p249 = scmp.eq.s32.totalorder %s22, 1
    %p250 = por %p248, %p249
    %p251 = scmp.ne.s32.totalorder %s242, %s243
    %p252 = scmp.eq.s32.totalorder %s22, 0
    %p253 = por %p251, %p252
    %p254 = scmp.ne.s32.totalorder %s242, %s243
    %p255 = scmp.eq.s32.totalorder %s23, 1
    %p256 = por %p254, %p255
    %p258 = scmp.ne.s32.totalorder %s243, %s257
    %p259 = scmp.eq.s32.totalorder %s23, 0
    %p260 = por %p258, %p259
    %s261 = ssub.s32 %s17, %s24
    %p262 = scmp.eq.s32.totalorder %s261, 0
    %s264 = sadd.s32 %s263, 1
    %s265 = scalar_select %p262, %s263, %s264
    %p268 = pneg %p262
    %p269 = scmp.eq.s32.totalorder %s17, 1
    %p270 = por %p268, %p269
    %p271 = scmp.ne.s32.totalorder %s263, %s266
    %p272 = scmp.eq.s32.totalorder %s17, 0
    %p273 = por %p271, %p272
    %p274 = scmp.ne.s32.totalorder %s263, %s266
    %p275 = scmp.eq.s32.totalorder %s22, 1
    %p276 = por %p274, %p275
    %p277 = scmp.ne.s32.totalorder %s266, %s267
    %p278 = scmp.eq.s32.totalorder %s22, 0
    %p279 = por %p277, %p278
    %p280 = scmp.ne.s32.totalorder %s266, %s267
    %p281 = scmp.eq.s32.totalorder %s23, 1
    %p282 = por %p280, %p281
    %p284 = scmp.ne.s32.totalorder %s267, %s283
    %p285 = scmp.eq.s32.totalorder %s23, 0
    %p286 = por %p284, %p285
    %p287 = scmp.le.s32.totalorder 1, %s17
    %p288 = scmp.lt.s32.totalorder %s17, 3
    %p289 = pnand %p287, %p288
    %p290 = pneg %p289
    // Predicated region
    $region9: #{l_net_forward.1} parent=5 // pred_check
      _
    $region10: #{l_net_forward.1} parent=5 // pred_check_branch
      %292 = sbr.rel (%p289) target = $region12
    $region11: #{l_net_forward.1} parent=5 // pred_region
      %s293 = ssub.s32 %s17, 1
      // Predicated region
      $region13: #{l_net_forward.1} parent=11 // pred_check
        %p294 = pneg %p64
      $region14: #{l_net_forward.1} parent=11 // pred_check_branch
        %296 = sbr.rel (%p294) target = $region16
      $region15: #{l_net_forward.1} parent=11 // pred_region
        _
      $region16: #{l_net_forward.1} parent=11 // pred_fallthru
        _
      // Predicated region
      $region17: #{l_net_forward.1} parent=11 // pred_check
        %p297 = pneg %p85
      $region18: #{l_net_forward.1} parent=11 // pred_check_branch
        %299 = sbr.rel (%p297) target = $region20
      $region19: #{l_net_forward.1} parent=11 // pred_region
        _
      $region20: #{l_net_forward.1} parent=11 // pred_fallthru
        _
      // Predicated region
      $region21: #{l_net_forward.1} parent=11 // pred_check
        %p300 = pneg %p106
      $region22: #{l_net_forward.1} parent=11 // pred_check_branch
        %302 = sbr.rel (%p300) target = $region24
      $region23: #{l_net_forward.1} parent=11 // pred_region
        _
      $region24: #{l_net_forward.1} parent=11 // pred_fallthru
        _
      // Predicated region
      $region25: #{l_net_forward.1} parent=11 // pred_check
        %p303 = pneg %p127
      $region26: #{l_net_forward.1} parent=11 // pred_check_branch
        %305 = sbr.rel (%p303) target = $region28
      $region27: #{l_net_forward.1} parent=11 // pred_region
        _
      $region28: #{l_net_forward.1} parent=11 // pred_fallthru
        _
      // Predicated region
      $region29: #{l_net_forward.1} parent=11 // pred_check
        %p306 = pneg %p148
      $region30: #{l_net_forward.1} parent=11 // pred_check_branch
        %308 = sbr.rel (%p306) target = $region32
      $region31: #{l_net_forward.1} parent=11 // pred_region
        _
      $region32: #{l_net_forward.1} parent=11 // pred_fallthru
        _
      // Predicated region
      $region33: #{l_net_forward.1} parent=11 // pred_check
        %p309 = pneg %p169
      $region34: #{l_net_forward.1} parent=11 // pred_check_branch
        %311 = sbr.rel (%p309) target = $region36
      $region35: #{l_net_forward.1} parent=11 // pred_region
        _
      $region36: #{l_net_forward.1} parent=11 // pred_fallthru
        _
      // Predicated region
      $region37: #{l_net_forward.1} parent=11 // pred_check
        %p312 = pneg %p190
      $region38: #{l_net_forward.1} parent=11 // pred_check_branch
        %314 = sbr.rel (%p312) target = $region40
      $region39: #{l_net_forward.1} parent=11 // pred_region
        _
      $region40: #{l_net_forward.1} parent=11 // pred_fallthru
        _
      // Predicated region
      $region41: #{l_net_forward.1} parent=11 // pred_check
        %p315 = pneg %p211
      $region42: #{l_net_forward.1} parent=11 // pred_check_branch
        %317 = sbr.rel (%p315) target = $region44
      $region43: #{l_net_forward.1} parent=11 // pred_region
        _
      $region44: #{l_net_forward.1} parent=11 // pred_fallthru
        _
      // Predicated region
      $region45: #{l_net_forward.1} parent=11 // pred_check
        %p318 = pneg %p232
      $region46: #{l_net_forward.1} parent=11 // pred_check_branch
        %320 = sbr.rel (%p318) target = $region48
      $region47: #{l_net_forward.1} parent=11 // pred_region
        _
      $region48: #{l_net_forward.1} parent=11 // pred_fallthru
        _
      // Predicated region
      $region49: #{l_net_forward.1} parent=11 // pred_check
        %p321 = pneg %p253
      $region50: #{l_net_forward.1} parent=11 // pred_check_branch
        %323 = sbr.rel (%p321) target = $region52
      $region51: #{l_net_forward.1} parent=11 // pred_region
        _
      $region52: #{l_net_forward.1} parent=11 // pred_fallthru
        _
    $region12: #{l_net_forward.1} parent=5 // pred_fallthru
      _
    %p324 = scmp.lt.s32.totalorder %s17, 2
    // Predicated region
    $region53: #{l_net_forward.1} parent=5 // pred_check
      %p325 = pneg %p324
    $region54: #{l_net_forward.1} parent=5 // pred_check_branch
      %327 = sbr.rel (%p325) target = $region56
    $region55: #{l_net_forward.1} parent=5 // pred_region
      // Predicated region
      $region57: #{l_net_forward.1} parent=55 // pred_check
        %p328 = pneg %p37
      $region58: #{l_net_forward.1} parent=55 // pred_check_branch
        %330 = sbr.rel (%p328) target = $region60
      $region59: #{l_net_forward.1} parent=55 // pred_region
        %p331 = scmp.lt.s32.totalorder %s17, 1
        %s332 = scalar_select %p331, %s17, 1
        %s333 = smul.addr %s332, 8
        %s334 = smul.addr %s333, 8
        %s335 = scalar_lea.vmem %s0, %s334
      $region60: #{l_net_forward.1} parent=55 // pred_fallthru
        _
    $region56: #{l_net_forward.1} parent=5 // pred_fallthru
      _
    %p336 = scmp.le.s32.totalorder 1, %s17
    %p337 = scmp.lt.s32.totalorder %s17, 3
    %p338 = pnand %p336, %p337
    %p339 = pneg %p338
    // Predicated region
    $region61: #{l_net_forward.1} parent=5 // pred_check
      _
    $region62: #{l_net_forward.1} parent=5 // pred_check_branch
      %341 = sbr.rel (%p338) target = $region64
    $region63: #{l_net_forward.1} parent=5 // pred_region
      %s342 = ssub.s32 %s17, 1
      %p343 = scmp.lt.s32.totalorder %s22, 1
      %s344 = scalar_select %p343, %s22, 1
      %s345 = smul.addr %s344, 8
      %s346 = smul.addr %s345, 8
      %s347 = scalar_lea.vmem %s0, %s346
      %p348 = pneg %p43
      %p349 = pneg %p40
      %p350 = pneg %p64
      %p351 = pneg %p61
      %p352 = pneg %p85
      %p353 = pneg %p82
      %p354 = pneg %p106
      %p355 = pneg %p103
      %p356 = pneg %p127
      %p357 = pneg %p124
      %p358 = pneg %p148
      %p359 = pneg %p145
      %p360 = pneg %p169
      %p361 = pneg %p166
      %p362 = pneg %p190
      %p363 = pneg %p187
      %p364 = pneg %p211
      %p365 = pneg %p208
      %p366 = pneg %p232
      %p367 = pneg %p229
      %p368 = pneg %p253
      %p369 = pneg %p250
      %p370 = pneg %p279
      %p371 = pneg %p276
      %p372 = scmp.lt.s32.totalorder %s22, 1
      %s373 = scalar_select %p372, %s22, 1
      %s374 = smul.addr %s373, 8
      %s375 = smul.addr %s374, 8
      %s376 = scalar_lea.vmem %s11, %s375
      %p377 = scmp.lt.s32.totalorder %s22, 1
      %s378 = scalar_select %p377, %s22, 1
      %s379 = smul.addr %s378, 8
      %s380 = smul.addr %s379, 8
      %s381 = scalar_lea.vmem %s0, %s380
      %p382 = scmp.lt.s32.totalorder %s22, 1
      %s383 = scalar_select %p382, %s22, 1
      %s384 = smul.addr %s383, 8
      %s385 = smul.addr %s384, 8
      %s386 = scalar_lea.vmem %s11, %s385
      %v388 = vld [vmem:[%s381] sm:$0xff]
      %v389 = vld [vmem:[%s381 + $0x8] sm:$0xff]
      %v390 = vld [vmem:[%s381 + $0x10] sm:$0xff]
      %v391 = vld [vmem:[%s381 + $0x18] sm:$0xff]
      %v392 = vld [vmem:[%s381 + $0x20] sm:$0xff]
      %v393 = vld [vmem:[%s381 + $0x28] sm:$0xff]
      %v394 = vld [vmem:[%s381 + $0x30] sm:$0xff]
      %v395 = vld [vmem:[%s381 + $0x38] sm:$0xff]
      %v404 = vrot.slane %v389, 1
      %v405 = vrot.slane %v388, 1
      %v406 = vrot.slane %v390, 1
      %v407 = vrot.slane %v391, 1
      %v408 = vrot.slane %v392, 1
      %v409 = vrot.slane %v393, 1
      %v410 = vrot.slane %v394, 1
      %v411 = vrot.slane %v395, 1
      %v420 = vrot.slane %v389, 7
      %v421 = vrot.slane %v388, 7
      %v422 = vrot.slane %v390, 7
      %v423 = vrot.slane %v391, 7
      %v424 = vrot.slane %v392, 7
      %v425 = vrot.slane %v393, 7
      %v426 = vrot.slane %v394, 7
      %v427 = vrot.slane %v395, 7
      %v436 = vrot.slane %v389, 5
      %v437 = vrot.slane %v388, 5
      %v438 = vrot.slane %v390, 5
      %v439 = vrot.slane %v391, 5
      %v440 = vrot.slane %v392, 5
      %v441 = vrot.slane %v393, 5
      %v442 = vrot.slane %v394, 5
      %v443 = vrot.slane %v395, 5
      %vm452 = vcmask 1040384
      %v453 = vsel %vm452, %v404, %v420
      %v454 = vsel %vm452, %v405, %v421
      %v455 = vsel %vm452, %v406, %v422
      %v456 = vsel %vm452, %v407, %v423
      %v457 = vsel %vm452, %v408, %v424
      %v458 = vsel %vm452, %v409, %v425
      %v459 = vsel %vm452, %v410, %v426
      %v460 = vsel %vm452, %v411, %v427
      %v461 = vsel %vm452, %v420, %v436
      %v462 = vsel %vm452, %v421, %v437
      %v463 = vsel %vm452, %v422, %v438
      %v464 = vsel %vm452, %v423, %v439
      %v465 = vsel %vm452, %v424, %v440
      %v466 = vsel %vm452, %v425, %v441
      %v467 = vsel %vm452, %v426, %v442
      %v468 = vsel %vm452, %v427, %v443
      %vm483 = vcmask 1046528
      %v484 = vrot.slane %v453, 1
      %v485 = vrot.slane %v461, 1
      %v486 = vsel %vm483, %v484, %v485
      %v487 = vrot.slane %v454, 1
      %v488 = vrot.slane %v462, 1
      %v489 = vsel %vm483, %v487, %v488
      %v490 = vrot.slane %v455, 1
      %v491 = vrot.slane %v463, 1
      %v492 = vsel %vm483, %v490, %v491
      %v493 = vrot.slane %v456, 1
      %v494 = vrot.slane %v464, 1
      %v495 = vsel %vm483, %v493, %v494
      %v496 = vrot.slane %v457, 1
      %v497 = vrot.slane %v465, 1
      %v498 = vsel %vm483, %v496, %v497
      %v499 = vrot.slane %v458, 1
      %v500 = vrot.slane %v466, 1
      %v501 = vsel %vm483, %v499, %v500
      %v502 = vrot.slane %v459, 1
      %v503 = vrot.slane %v467, 1
      %v504 = vsel %vm483, %v502, %v503
      %vm505 = vcmask 1045504
      %v506 = vrot.slane %v453, 2
      %v507 = vrot.slane %v461, 2
      %v508 = vsel %vm505, %v506, %v507
      %v509 = vrot.slane %v454, 2
      %v510 = vrot.slane %v462, 2
      %v511 = vsel %vm505, %v509, %v510
      %v512 = vrot.slane %v455, 2
      %v513 = vrot.slane %v463, 2
      %v514 = vsel %vm505, %v512, %v513
      %v515 = vrot.slane %v456, 2
      %v516 = vrot.slane %v464, 2
      %v517 = vsel %vm505, %v515, %v516
      %v518 = vrot.slane %v457, 2
      %v519 = vrot.slane %v465, 2
      %v520 = vsel %vm505, %v518, %v519
      %v521 = vrot.slane %v458, 2
      %v522 = vrot.slane %v466, 2
      %v523 = vsel %vm505, %v521, %v522
      %v524 = vrot.slane %v459, 2
      %v525 = vrot.slane %v467, 2
      %v526 = vsel %vm505, %v524, %v525
      %v529 = vrot.slane %v460, 1
      %v530 = vrot.slane %v468, 1
      %v531 = vsel %vm483, %v529, %v530
      %v540 = vrot.slane %v460, 2
      %v541 = vrot.slane %v468, 2
      %v542 = vsel %vm505, %v540, %v541
      %550 = vrot.lane.b32.xlu0 %v486, 32
      %v551 = vpop.permute.xlu0 %550
      %552 = vrot.lane.b32.xlu0 %v489, 32
      %v553 = vpop.permute.xlu0 %552
      %554 = vrot.lane.b32.xlu0 %v492, 32
      %v555 = vpop.permute.xlu0 %554
      %556 = vrot.lane.b32.xlu0 %v495, 32
      %v557 = vpop.permute.xlu0 %556
      %558 = vrot.lane.b32.xlu0 %v498, 32
      %v559 = vpop.permute.xlu0 %558
      %560 = vrot.lane.b32.xlu0 %v501, 32
      %v561 = vpop.permute.xlu0 %560
      %562 = vrot.lane.b32.xlu0 %v504, 32
      %v563 = vpop.permute.xlu0 %562
      %571 = vrot.lane.b32.xlu0 %v508, 64
      %v572 = vpop.permute.xlu0 %571
      %573 = vrot.lane.b32.xlu0 %v511, 64
      %v574 = vpop.permute.xlu0 %573
      %575 = vrot.lane.b32.xlu0 %v514, 64
      %v576 = vpop.permute.xlu0 %575
      %577 = vrot.lane.b32.xlu0 %v517, 64
      %v578 = vpop.permute.xlu0 %577
      %579 = vrot.lane.b32.xlu0 %v520, 64
      %v580 = vpop.permute.xlu0 %579
      %581 = vrot.lane.b32.xlu0 %v523, 64
      %v582 = vpop.permute.xlu0 %581
      %583 = vrot.lane.b32.xlu0 %v526, 64
      %v584 = vpop.permute.xlu0 %583
      %592 = vrot.lane.b32.xlu0 %v454, 96
      %v593 = vpop.permute.xlu0 %592
      %594 = vrot.lane.b32.xlu0 %v453, 96
      %v595 = vpop.permute.xlu0 %594
      %596 = vrot.lane.b32.xlu0 %v455, 96
      %v597 = vpop.permute.xlu0 %596
      %598 = vrot.lane.b32.xlu0 %v456, 96
      %v599 = vpop.permute.xlu0 %598
      %600 = vrot.lane.b32.xlu0 %v457, 96
      %v601 = vpop.permute.xlu0 %600
      %602 = vrot.lane.b32.xlu0 %v458, 96
      %v603 = vpop.permute.xlu0 %602
      %604 = vrot.lane.b32.xlu0 %v459, 96
      %v605 = vpop.permute.xlu0 %604
      %606 = vrot.lane.b32.xlu0 %v460, 96
      %v607 = vpop.permute.xlu0 %606
      %616 = vrot.lane.b32.xlu0 %v511, 32
      %v617 = vpop.permute.xlu0 %616
      %618 = vrot.lane.b32.xlu0 %v508, 32
      %v619 = vpop.permute.xlu0 %618
      %620 = vrot.lane.b32.xlu0 %v514, 32
      %v621 = vpop.permute.xlu0 %620
      %622 = vrot.lane.b32.xlu0 %v517, 32
      %v623 = vpop.permute.xlu0 %622
      %624 = vrot.lane.b32.xlu0 %v520, 32
      %v625 = vpop.permute.xlu0 %624
      %626 = vrot.lane.b32.xlu0 %v523, 32
      %v627 = vpop.permute.xlu0 %626
      %628 = vrot.lane.b32.xlu0 %v526, 32
      %v629 = vpop.permute.xlu0 %628
      %630 = vrot.lane.b32.xlu0 %v542, 32
      %v631 = vpop.permute.xlu0 %630
      %640 = vrot.lane.b32.xlu0 %v453, 64
      %v641 = vpop.permute.xlu0 %640
      %642 = vrot.lane.b32.xlu0 %v455, 64
      %v643 = vpop.permute.xlu0 %642
      %644 = vrot.lane.b32.xlu0 %v456, 64
      %v645 = vpop.permute.xlu0 %644
      %646 = vrot.lane.b32.xlu0 %v457, 64
      %v647 = vpop.permute.xlu0 %646
      %648 = vrot.lane.b32.xlu0 %v458, 64
      %v649 = vpop.permute.xlu0 %648
      %650 = vrot.lane.b32.xlu0 %v459, 64
      %v651 = vpop.permute.xlu0 %650
      %652 = vrot.lane.b32.xlu0 %v460, 64
      %v653 = vpop.permute.xlu0 %652
      %661 = vrot.lane.b32.xlu0 %v486, 96
      %v662 = vpop.permute.xlu0 %661
      %663 = vrot.lane.b32.xlu0 %v492, 96
      %v664 = vpop.permute.xlu0 %663
      %665 = vrot.lane.b32.xlu0 %v495, 96
      %v666 = vpop.permute.xlu0 %665
      %667 = vrot.lane.b32.xlu0 %v498, 96
      %v668 = vpop.permute.xlu0 %667
      %669 = vrot.lane.b32.xlu0 %v501, 96
      %v670 = vpop.permute.xlu0 %669
      %671 = vrot.lane.b32.xlu0 %v504, 96
      %v672 = vpop.permute.xlu0 %671
      %673 = vrot.lane.b32.xlu0 %v531, 96
      %v674 = vpop.permute.xlu0 %673
      %vm682 = vcmask 261120
      %v683 = vsel %vm682, %v453, %v551
      %v684 = vsel %vm682, %v454, %v553
      %v685 = vsel %vm682, %v455, %v555
      %v686 = vsel %vm682, %v456, %v557
      %v687 = vsel %vm682, %v457, %v559
      %v688 = vsel %vm682, %v458, %v561
      %v689 = vsel %vm682, %v459, %v563
      %vm690 = vcmask 523264
      %v691 = vsel %vm690, %v683, %v572
      %v692 = vsel %vm690, %v684, %v574
      %v693 = vsel %vm690, %v685, %v576
      %v694 = vsel %vm690, %v686, %v578
      %v695 = vsel %vm690, %v687, %v580
      %v696 = vsel %vm690, %v688, %v582
      %v697 = vsel %vm690, %v689, %v584
      %vm698 = vcmask 785408
      %v699 = vsel %vm698, %v691, %v593
      %v700 = vsel %vm698, %v692, %v595
      %v701 = vsel %vm698, %v691, %v597
      %v702 = vsel %vm698, %v693, %v599
      %v703 = vsel %vm698, %v694, %v601
      %v704 = vsel %vm698, %v695, %v603
      %v705 = vsel %vm698, %v696, %v605
      %v706 = vsel %vm698, %v697, %v607
      %v707 = vsel %vm682, %v489, %v617
      %v708 = vsel %vm682, %v486, %v619
      %v709 = vsel %vm682, %v492, %v621
      %v710 = vsel %vm682, %v495, %v623
      %v711 = vsel %vm682, %v498, %v625
      %v712 = vsel %vm682, %v501, %v627
      %v713 = vsel %vm682, %v504, %v629
      %v714 = vsel %vm682, %v531, %v631
      %v715 = vsel %vm690, %v707, %v641
      %v716 = vsel %vm690, %v708, %v643
      %v717 = vsel %vm690, %v709, %v645
      %v718 = vsel %vm690, %v710, %v647
      %v719 = vsel %vm690, %v711, %v649
      %v720 = vsel %vm690, %v712, %v651
      %v721 = vsel %vm690, %v713, %v653
      %v722 = vsel %vm690, %v714, %v651
      %v723 = vsel %vm698, %v715, %v662
      %v724 = vsel %vm698, %v716, %v664
      %v725 = vsel %vm698, %v717, %v666
      %v726 = vsel %vm698, %v718, %v668
      %v727 = vsel %vm698, %v719, %v670
      %v728 = vsel %vm698, %v720, %v672
      %v729 = vsel %vm698, %v721, %v674
      %v730 = vsel %vm698, %v722, %v672
      %v731 = vpack.c.bf16 %v700, %v699
      %v732 = vpack.c.bf16 %v724, %v723
      %v733 = vpack.c.bf16 %v514, %v508
      %v734 = vpack.c.bf16 %v702, %v701
      %v735 = vpack.c.bf16 %v726, %v725
      %v736 = vpack.c.bf16 %v520, %v517
      %v737 = vpack.c.bf16 %v704, %v703
      %v738 = vpack.c.bf16 %v728, %v727
      %v739 = vpack.c.bf16 %v526, %v523
      %v740 = vpack.c.bf16 %v706, %v705
      %v741 = vpack.c.bf16 %v730, %v729
      %v742 = vpack.c.bf16 %v526, %v542
      %v743 = vld [vmem:[%s1] sm:$0xf]
      %v744 = vld [vmem:[%s1 + $0x4] sm:$0xf]
      %v745 = vld [vmem:[%s1 + $0x8] sm:$0xf]
      %v746 = vld [vmem:[%s1 + $0xc] sm:$0xf]
      %v747 = vld [vmem:[%s1 + $0x10] sm:$0xf]
      %v748 = vld [vmem:[%s1 + $0x14] sm:$0xf]
      %v749 = vld [vmem:[%s1 + $0x18] sm:$0xf]
      %v750 = vld [vmem:[%s1 + $0x1c] sm:$0xf]
      %v751 = vld [vmem:[%s1 + $0x20] sm:$0xf]
      %v752 = vld [vmem:[%s1 + $0x24] sm:$0xf]
      %v753 = vld [vmem:[%s1 + $0x28] sm:$0xf]
      %v754 = vld [vmem:[%s1 + $0x2c] sm:$0xf]
      %v755 = vld [vmem:[%s1 + $0x30] sm:$0xf]
      %v756 = vld [vmem:[%s1 + $0x34] sm:$0xf]
      %v757 = vld [vmem:[%s1 + $0x38] sm:$0xf]
      %v758 = vld [vmem:[%s1 + $0x3c] sm:$0xf]
      %v759 = vld [vmem:[%s1 + $0x40] sm:$0xf]
      %v760 = vld [vmem:[%s1 + $0x44] sm:$0xf]
      %v761 = vld [vmem:[%s1 + $0x48] sm:$0xf]
      %v762 = vld [vmem:[%s1 + $0x4c] sm:$0xf]
      %v763 = vld [vmem:[%s1 + $0x50] sm:$0xf]
      %v764 = vld [vmem:[%s1 + $0x54] sm:$0xf]
      %v765 = vld [vmem:[%s1 + $0x58] sm:$0xf]
      %v766 = vld [vmem:[%s1 + $0x5c] sm:$0xf]
      %v767 = vld [vmem:[%s1 + $0x60] sm:$0xf]
      %v768 = vld [vmem:[%s1 + $0x64] sm:$0xf]
      %v769 = vld [vmem:[%s1 + $0x68] sm:$0xf]
      %v770 = vld [vmem:[%s1 + $0x6c] sm:$0xf]
      %v771 = vld [vmem:[%s1 + $0x70] sm:$0xf]
      %v772 = vld [vmem:[%s1 + $0x74] sm:$0xf]
      %v773 = vld [vmem:[%s1 + $0x78] sm:$0xf]
      %v774 = vld [vmem:[%s1 + $0x7c] sm:$0xf]
      %v775 = vld [vmem:[%s1 + $0x80] sm:$0xf]
      %v776 = vld [vmem:[%s1 + $0x84] sm:$0xf]
      %v777 = vld [vmem:[%s1 + $0x88] sm:$0xf]
      %v778 = vld [vmem:[%s1 + $0x8c] sm:$0xf]
      %v779 = vld [vmem:[%s2] sm:$0x1]
      %v781 = vlaneseq
      %v782 = vshrl.u32 %v781, 7
      %v783 = vsub.s32 0, %v782
      %v784 = vrot.slane %v779, %v783
      %v822 = vunpack.c.l.b16 %v743
      %v823 = vunpack.c.l.b16 %v744
      %v824 = vunpack.c.l.b16 %v745
      %v825 = vunpack.c.l.b16 %v746
      %v826 = vunpack.c.l.b16 %v747
      %v827 = vunpack.c.l.b16 %v748
      %v828 = vunpack.c.l.b16 %v749
      %v829 = vunpack.c.l.b16 %v750
      %v830 = vunpack.c.l.b16 %v751
      %v831 = vunpack.c.l.b16 %v752
      %v832 = vunpack.c.l.b16 %v753
      %v833 = vunpack.c.l.b16 %v754
      %v834 = vunpack.c.l.b16 %v755
      %v835 = vunpack.c.l.b16 %v756
      %v836 = vunpack.c.l.b16 %v757
      %v837 = vunpack.c.l.b16 %v758
      %v838 = vunpack.c.l.b16 %v759
      %v839 = vunpack.c.l.b16 %v760
      %v840 = vunpack.c.l.b16 %v761
      %v841 = vunpack.c.l.b16 %v762
      %v842 = vunpack.c.l.b16 %v763
      %v843 = vunpack.c.l.b16 %v764
      %v844 = vunpack.c.l.b16 %v765
      %v845 = vunpack.c.l.b16 %v766
      %v846 = vunpack.c.l.b16 %v767
      %v847 = vunpack.c.l.b16 %v768
      %v848 = vunpack.c.l.b16 %v769
      %v849 = vunpack.c.l.b16 %v770
      %v850 = vunpack.c.l.b16 %v771
      %v851 = vunpack.c.l.b16 %v772
      %v852 = vunpack.c.l.b16 %v773
      %v853 = vunpack.c.l.b16 %v774
      %v854 = vunpack.c.l.b16 %v775
      %v855 = vunpack.c.l.b16 %v776
      %v856 = vunpack.c.l.b16 %v777
      %v857 = vunpack.c.l.b16 %v778
      %v858 = vpack.c.b16 %v823, %v822
      %v859 = vpack.c.b16 %v825, %v824
      %v860 = vpack.c.b16 %v827, %v826
      %v861 = vpack.c.b16 %v829, %v828
      %v862 = vpack.c.b16 %v831, %v830
      %v863 = vpack.c.b16 %v833, %v832
      %v864 = vpack.c.b16 %v835, %v834
      %v865 = vpack.c.b16 %v837, %v836
      %v866 = vpack.c.b16 %v839, %v838
      %v867 = vpack.c.b16 %v841, %v840
      %v868 = vpack.c.b16 %v843, %v842
      %v869 = vpack.c.b16 %v845, %v844
      %v870 = vpack.c.b16 %v847, %v846
      %v871 = vpack.c.b16 %v849, %v848
      %v872 = vpack.c.b16 %v851, %v850
      %v873 = vpack.c.b16 %v853, %v852
      %v874 = vpack.c.b16 %v855, %v854
      %v875 = vpack.c.b16 %v857, %v856
      %v895 = vsel %vm682, %v733, 0
      %v898 = vsel %vm682, %v736, 0
      %v901 = vsel %vm682, %v739, 0
      %v904 = vsel %vm682, %v742, 0
      %906 = vmatprep.subr.bf16.mxu0 0
      %907 = vmatpush1.bf16.msra.mxu0 %v858
      %908 = vmatprep.subr.bf16.mxu0 0
      %909 = vmatpush1.bf16.msra.mxu0 %v859
      %910 = vmatprep.subr.bf16.mxu0 0
      %911 = vmatpush1.bf16.msra.mxu0 %v860
      %912 = vmatprep.subr.bf16.mxu0 0
      %913 = vmatpush1.bf16.msra.mxu0 %v861
      %914 = vmatprep.subr.bf16.mxu0 0
      %915 = vmatpush1.bf16.msra.mxu0 %v862
      %916 = vmatprep.subr.bf16.mxu0 0
      %917 = vmatpush1.bf16.msra.mxu0 %v863
      %918 = vmatprep.subr.bf16.mxu0 0
      %919 = vmatpush1.bf16.msra.mxu0 %v864
      %920 = vmatprep.subr.bf16.mxu0 0
      %921 = vmatpush1.bf16.msra.mxu0 %v865
      %922 = vmatprep.subr.bf16.mxu0 0
      %923 = vmatpush1.bf16.msra.mxu0 %v866
      %924 = vmatprep.subr.bf16.mxu0 0
      %925 = vmatpush1.bf16.msra.mxu0 %v867
      %926 = vmatprep.subr.bf16.mxu0 0
      %927 = vmatpush1.bf16.msra.mxu0 %v868
      %928 = vmatprep.subr.bf16.mxu0 0
      %929 = vmatpush1.bf16.msra.mxu0 %v869
      %930 = vmatprep.subr.bf16.mxu0 0
      %931 = vmatpush1.bf16.msra.mxu0 %v870
      %932 = vmatprep.subr.bf16.mxu0 0
      %933 = vmatpush1.bf16.msra.mxu0 %v871
      %934 = vmatprep.subr.bf16.mxu0 0
      %935 = vmatpush1.bf16.msra.mxu0 %v872
      %936 = vmatprep.subr.bf16.mxu0 0
      %937 = vmatpush1.bf16.msra.mxu0 %v873
      %938 = vmatprep.mubr.bf16.mxu0 %v732
      %939 = vmatmul.mubr.bf16.gmra.mrb[0].mxu0 %v731
      %v940 = vpop.f32.mrb[0].mxu0
      %v941 = vadd.f32 %v784, %v940
      %v942 = vpop.f32.mrb[0].mxu0
      %v943 = vpop.f32.mrb[0].mxu0
      %v944 = vadd.f32 %v784, %v943
      %v945 = vpop.f32.mrb[0].mxu0
      %946 = vmatprep.mubr.bf16.mxu0 %v735
      %947 = vmatmul.mubr.bf16.gmra.mrb[0].mxu0 %v734
      %v948 = vpop.f32.mrb[0].mxu0
      %v949 = vadd.f32 %v784, %v948
      %v950 = vpop.f32.mrb[0].mxu0
      %v951 = vpop.f32.mrb[0].mxu0
      %v952 = vadd.f32 %v784, %v951
      %v953 = vpop.f32.mrb[0].mxu0
      %954 = vmatprep.mubr.bf16.mxu0 %v738
      %955 = vmatmul.mubr.bf16.gmra.mrb[0].mxu0 %v737
      %v956 = vpop.f32.mrb[0].mxu0
      %v957 = vadd.f32 %v784, %v956
      %v958 = vpop.f32.mrb[0].mxu0
      %v959 = vpop.f32.mrb[0].mxu0
      %v960 = vadd.f32 %v784, %v959
      %v961 = vpop.f32.mrb[0].mxu0
      %962 = vmatprep.mubr.bf16.mxu0 %v741
      %963 = vmatmul.mubr.bf16.gmra.mrb[0].mxu0 %v740
      %v964 = vpop.f32.mrb[0].mxu0
      %v965 = vadd.f32 %v784, %v964
      %v966 = vpop.f32.mrb[0].mxu0
      %v967 = vpop.f32.mrb[0].mxu0
      %v968 = vadd.f32 %v784, %v967
      %v969 = vpop.f32.mrb[0].mxu0
      %970 = vdwg.mxu0
      %971 = vmatprep.subr.bf16.mxu0 0
      %972 = vmatpush1.bf16.msra.mxu0 %v874
      %973 = vmatprep.subr.bf16.mxu0 0
      %974 = vmatpush1.bf16.msra.mxu0 %v875
      %975 = vmatprep.subr.bf16.mxu0 0
      %976 = vmatpush1.bf16.msra.mxu0 0
      %977 = vmatprep.subr.bf16.mxu0 0
      %978 = vmatpush1.bf16.msra.mxu0 0
      %979 = vmatprep.subr.bf16.mxu0 0
      %980 = vmatpush1.bf16.msra.mxu0 0
      %981 = vmatprep.subr.bf16.mxu0 0
      %982 = vmatpush1.bf16.msra.mxu0 0
      %983 = vmatprep.subr.bf16.mxu0 0
      %984 = vmatpush1.bf16.msra.mxu0 0
      %985 = vmatprep.subr.bf16.mxu0 0
      %986 = vmatpush1.bf16.msra.mxu0 0
      %987 = vmatprep.subr.bf16.mxu0 0
      %988 = vmatpush1.bf16.msra.mxu0 0
      %989 = vmatprep.subr.bf16.mxu0 0
      %990 = vmatpush1.bf16.msra.mxu0 0
      %991 = vmatprep.subr.bf16.mxu0 0
      %992 = vmatpush1.bf16.msra.mxu0 0
      %993 = vmatprep.subr.bf16.mxu0 0
      %994 = vmatpush1.bf16.msra.mxu0 0
      %995 = vmatprep.subr.bf16.mxu0 0
      %996 = vmatpush1.bf16.msra.mxu0 0
      %997 = vmatprep.subr.bf16.mxu0 0
      %998 = vmatpush1.bf16.msra.mxu0 0
      %999 = vmatprep.subr.bf16.mxu0 0
      %1000 = vmatpush1.bf16.msra.mxu0 0
      %1001 = vmatprep.subr.bf16.mxu0 0
      %1002 = vmatpush1.bf16.msra.mxu0 0
      %1003 = vmatprep.mubr.bf16.mxu0 0
      %1004 = vmatmul.mubr.bf16.gmra.mrb[0].mxu0 %v895
      %v1005 = vpop.f32.mrb[0].mxu0
      %v1006 = vadd.f32 %v941, %v1005
      %v1007 = vpop.f32.mrb[0].mxu0
      %v1008 = vpop.f32.mrb[0].mxu0
      %v1009 = vadd.f32 %v944, %v1008
      %v1010 = vpop.f32.mrb[0].mxu0
      %1011 = vmatprep.mubr.bf16.mxu0 0
      %1012 = vmatmul.mubr.bf16.gmra.mrb[0].mxu0 %v898
      %v1013 = vpop.f32.mrb[0].mxu0
      %v1014 = vadd.f32 %v949, %v1013
      %v1015 = vpop.f32.mrb[0].mxu0
      %v1016 = vpop.f32.mrb[0].mxu0
      %v1017 = vadd.f32 %v952, %v1016
      %v1018 = vpop.f32.mrb[0].mxu0
      %1019 = vmatprep.mubr.bf16.mxu0 0
      %1020 = vmatmul.mubr.bf16.gmra.mrb[0].mxu0 %v901
      %v1021 = vpop.f32.mrb[0].mxu0
      %v1022 = vadd.f32 %v957, %v1021
      %v1023 = vpop.f32.mrb[0].mxu0
      %v1024 = vpop.f32.mrb[0].mxu0
      %v1025 = vadd.f32 %v960, %v1024
      %v1026 = vpop.f32.mrb[0].mxu0
      %1027 = vmatprep.mubr.bf16.mxu0 0
      %1028 = vmatmul.mubr.bf16.gmra.mrb[0].mxu0 %v904
      %v1029 = vpop.f32.mrb[0].mxu0
      %v1030 = vadd.f32 %v965, %v1029
      %v1031 = vpop.f32.mrb[0].mxu0
      %v1032 = vpop.f32.mrb[0].mxu0
      %v1033 = vadd.f32 %v968, %v1032
      %v1034 = vpop.f32.mrb[0].mxu0
      %1035 = vdwg.mxu0
      %v1036 = vmax.f32 %v1006, 0.0
      %v1037 = vmax.f32 %v1009, 0.0
      %v1038 = vmax.f32 %v1014, 0.0
      %v1039 = vmax.f32 %v1017, 0.0
      %v1040 = vmax.f32 %v1022, 0.0
      %v1041 = vmax.f32 %v1025, 0.0
      %v1042 = vmax.f32 %v1030, 0.0
      %v1043 = vmax.f32 %v1033, 0.0
      %v1052 = vrot.slane %v1037, 1
      %v1053 = vrot.slane %v1036, 1
      %v1054 = vrot.slane %v1038, 1
      %v1055 = vrot.slane %v1039, 1
      %v1056 = vrot.slane %v1040, 1
      %v1057 = vrot.slane %v1041, 1
      %v1058 = vrot.slane %v1042, 1
      %v1059 = vrot.slane %v1043, 1
      %v1068 = vrot.slane %v1037, 7
      %v1069 = vrot.slane %v1036, 7
      %v1070 = vrot.slane %v1038, 7
      %v1071 = vrot.slane %v1039, 7
      %v1072 = vrot.slane %v1040, 7
      %v1073 = vrot.slane %v1041, 7
      %v1074 = vrot.slane %v1042, 7
      %v1075 = vrot.slane %v1043, 7
      %v1084 = vrot.slane %v1037, 5
      %v1085 = vrot.slane %v1036, 5
      %v1086 = vrot.slane %v1038, 5
      %v1087 = vrot.slane %v1039, 5
      %v1088 = vrot.slane %v1040, 5
      %v1089 = vrot.slane %v1041, 5
      %v1090 = vrot.slane %v1042, 5
      %v1091 = vrot.slane %v1043, 5
      %v1100 = vsel %vm452, %v1052, %v1068
      %v1101 = vsel %vm452, %v1053, %v1069
      %v1102 = vsel %vm452, %v1054, %v1070
      %v1103 = vsel %vm452, %v1055, %v1071
      %v1104 = vsel %vm452, %v1056, %v1072
      %v1105 = vsel %vm452, %v1057, %v1073
      %v1106 = vsel %vm452, %v1058, %v1074
      %v1107 = vsel %vm452, %v1059, %v1075
      %v1108 = vsel %vm452, %v1068, %v1084
      %v1109 = vsel %vm452, %v1069, %v1085
      %v1110 = vsel %vm452, %v1070, %v1086
      %v1111 = vsel %vm452, %v1071, %v1087
      %v1112 = vsel %vm452, %v1072, %v1088
      %v1113 = vsel %vm452, %v1073, %v1089
      %v1114 = vsel %vm452, %v1074, %v1090
      %v1115 = vsel %vm452, %v1075, %v1091
      %v1130 = vrot.slane %v1100, 1
      %v1131 = vrot.slane %v1108, 1
      %v1132 = vsel %vm483, %v1130, %v1131
      %v1133 = vrot.slane %v1101, 1
      %v1134 = vrot.slane %v1109, 1
      %v1135 = vsel %vm483, %v1133, %v1134
      %v1136 = vrot.slane %v1102, 1
      %v1137 = vrot.slane %v1110, 1
      %v1138 = vsel %vm483, %v1136, %v1137
      %v1139 = vrot.slane %v1103, 1
      %v1140 = vrot.slane %v1111, 1
      %v1141 = vsel %vm483, %v1139, %v1140
      %v1142 = vrot.slane %v1104, 1
      %v1143 = vrot.slane %v1112, 1
      %v1144 = vsel %vm483, %v1142, %v1143
      %v1145 = vrot.slane %v1105, 1
      %v1146 = vrot.slane %v1113, 1
      %v1147 = vsel %vm483, %v1145, %v1146
      %v1148 = vrot.slane %v1106, 1
      %v1149 = vrot.slane %v1114, 1
      %v1150 = vsel %vm483, %v1148, %v1149
      %v1151 = vrot.slane %v1100, 2
      %v1152 = vrot.slane %v1108, 2
      %v1153 = vsel %vm505, %v1151, %v1152
      %v1154 = vrot.slane %v1101, 2
      %v1155 = vrot.slane %v1109, 2
      %v1156 = vsel %vm505, %v1154, %v1155
      %v1157 = vrot.slane %v1102, 2
      %v1158 = vrot.slane %v1110, 2
      %v1159 = vsel %vm505, %v1157, %v1158
      %v1160 = vrot.slane %v1103, 2
      %v1161 = vrot.slane %v1111, 2
      %v1162 = vsel %vm505, %v1160, %v1161
      %v1163 = vrot.slane %v1104, 2
      %v1164 = vrot.slane %v1112, 2
      %v1165 = vsel %vm505, %v1163, %v1164
      %v1166 = vrot.slane %v1105, 2
      %v1167 = vrot.slane %v1113, 2
      %v1168 = vsel %vm505, %v1166, %v1167
      %v1169 = vrot.slane %v1106, 2
      %v1170 = vrot.slane %v1114, 2
      %v1171 = vsel %vm505, %v1169, %v1170
      %v1181 = vrot.slane %v1107, 1
      %v1182 = vrot.slane %v1115, 1
      %v1183 = vsel %vm483, %v1181, %v1182
      %v1192 = vrot.slane %v1107, 2
      %v1193 = vrot.slane %v1115, 2
      %v1194 = vsel %vm505, %v1192, %v1193
      %1196 = vrot.lane.b32.xlu0 %v1132, 64
      %v1197 = vpop.permute.xlu0 %1196
      %1198 = vrot.lane.b32.xlu0 %v1135, 64
      %v1199 = vpop.permute.xlu0 %1198
      %1200 = vrot.lane.b32.xlu0 %v1138, 64
      %v1201 = vpop.permute.xlu0 %1200
      %1202 = vrot.lane.b32.xlu0 %v1141, 64
      %v1203 = vpop.permute.xlu0 %1202
      %1204 = vrot.lane.b32.xlu0 %v1144, 64
      %v1205 = vpop.permute.xlu0 %1204
      %1206 = vrot.lane.b32.xlu0 %v1147, 64
      %v1207 = vpop.permute.xlu0 %1206
      %1208 = vrot.lane.b32.xlu0 %v1150, 64
      %v1209 = vpop.permute.xlu0 %1208
      %1217 = vrot.lane.b32.xlu0 %v1101, 64
      %v1218 = vpop.permute.xlu0 %1217
      %1219 = vrot.lane.b32.xlu0 %v1100, 64
      %v1220 = vpop.permute.xlu0 %1219
      %1221 = vrot.lane.b32.xlu0 %v1102, 64
      %v1222 = vpop.permute.xlu0 %1221
      %1223 = vrot.lane.b32.xlu0 %v1103, 64
      %v1224 = vpop.permute.xlu0 %1223
      %1225 = vrot.lane.b32.xlu0 %v1104, 64
      %v1226 = vpop.permute.xlu0 %1225
      %1227 = vrot.lane.b32.xlu0 %v1105, 64
      %v1228 = vpop.permute.xlu0 %1227
      %1229 = vrot.lane.b32.xlu0 %v1106, 64
      %v1230 = vpop.permute.xlu0 %1229
      %1231 = vrot.lane.b32.xlu0 %v1107, 64
      %v1232 = vpop.permute.xlu0 %1231
      %1241 = vrot.lane.b32.xlu0 %v1156, 64
      %v1242 = vpop.permute.xlu0 %1241
      %1243 = vrot.lane.b32.xlu0 %v1153, 64
      %v1244 = vpop.permute.xlu0 %1243
      %1245 = vrot.lane.b32.xlu0 %v1159, 64
      %v1246 = vpop.permute.xlu0 %1245
      %1247 = vrot.lane.b32.xlu0 %v1162, 64
      %v1248 = vpop.permute.xlu0 %1247
      %1249 = vrot.lane.b32.xlu0 %v1165, 64
      %v1250 = vpop.permute.xlu0 %1249
      %1251 = vrot.lane.b32.xlu0 %v1168, 64
      %v1252 = vpop.permute.xlu0 %1251
      %1253 = vrot.lane.b32.xlu0 %v1171, 64
      %v1254 = vpop.permute.xlu0 %1253
      %1255 = vrot.lane.b32.xlu0 %v1194, 64
      %v1256 = vpop.permute.xlu0 %1255
      %1265 = vrot.lane.b32.xlu0 %v1183, 64
      %v1266 = vpop.permute.xlu0 %1265
      %v1268 = vsel %vm690, %v1100, %v1197
      %v1269 = vsel %vm690, %v1101, %v1199
      %v1270 = vsel %vm690, %v1102, %v1201
      %v1271 = vsel %vm690, %v1103, %v1203
      %v1272 = vsel %vm690, %v1104, %v1205
      %v1273 = vsel %vm690, %v1105, %v1207
      %v1274 = vsel %vm690, %v1106, %v1209
      %v1275 = vsel %vm690, %v1153, %v1218
      %v1276 = vsel %vm690, %v1156, %v1220
      %v1277 = vsel %vm690, %v1153, %v1222
      %v1278 = vsel %vm690, %v1159, %v1224
      %v1279 = vsel %vm690, %v1162, %v1226
      %v1280 = vsel %vm690, %v1165, %v1228
      %v1281 = vsel %vm690, %v1168, %v1230
      %v1282 = vsel %vm690, %v1171, %v1232
      %v1283 = vsel %vm690, %v1135, %v1242
      %v1284 = vsel %vm690, %v1132, %v1244
      %v1285 = vsel %vm690, %v1138, %v1246
      %v1286 = vsel %vm690, %v1141, %v1248
      %v1287 = vsel %vm690, %v1144, %v1250
      %v1288 = vsel %vm690, %v1147, %v1252
      %v1289 = vsel %vm690, %v1150, %v1254
      %v1290 = vsel %vm690, %v1183, %v1256
      %v1291 = vsel %vm690, %v1107, %v1266
      %v1292 = vpack.c.bf16 %v1269, %v1268
      %v1293 = vpack.c.bf16 %v1276, %v1275
      %v1294 = vpack.c.bf16 %v1284, %v1283
      %v1295 = vpack.c.bf16 %v1270, %v1268
      %v1296 = vpack.c.bf16 %v1159, %v1153
      %v1297 = vpack.c.bf16 %v1278, %v1277
      %v1298 = vpack.c.bf16 %v1286, %v1285
      %v1299 = vpack.c.bf16 %v1272, %v1271
      %v1300 = vpack.c.bf16 %v1165, %v1162
      %v1301 = vpack.c.bf16 %v1280, %v1279
      %v1302 = vpack.c.bf16 %v1288, %v1287
      %v1303 = vpack.c.bf16 %v1274, %v1273
      %v1304 = vpack.c.bf16 %v1171, %v1168
      %v1305 = vpack.c.bf16 %v1282, %v1281
      %v1306 = vpack.c.bf16 %v1290, %v1289
      %v1307 = vpack.c.bf16 %v1274, %v1291
      %v1308 = vpack.c.bf16 %v1171, %v1194
      %v1309 = vld [vmem:[%s3] sm:$0xf]
      %v1310 = vld [vmem:[%s3 + $0x4] sm:$0xf]
      %v1311 = vld [vmem:[%s3 + $0x8] sm:$0xf]
      %v1312 = vld [vmem:[%s3 + $0xc] sm:$0xf]
      %v1313 = vld [vmem:[%s3 + $0x10] sm:$0xf]
      %v1314 = vld [vmem:[%s3 + $0x14] sm:$0xf]
      %v1315 = vld [vmem:[%s3 + $0x18] sm:$0xf]
      %v1316 = vld [vmem:[%s3 + $0x1c] sm:$0xf]
      %v1317 = vld [vmem:[%s3 + $0x20] sm:$0xf]
      %v1318 = vld [vmem:[%s3 + $0x24] sm:$0xf]
      %v1319 = vld [vmem:[%s3 + $0x28] sm:$0xf]
      %v1320 = vld [vmem:[%s3 + $0x2c] sm:$0xf]
      %v1321 = vld [vmem:[%s3 + $0x30] sm:$0xf]
      %v1322 = vld [vmem:[%s3 + $0x34] sm:$0xf]
      %v1323 = vld [vmem:[%s3 + $0x38] sm:$0xf]
      %v1324 = vld [vmem:[%s3 + $0x3c] sm:$0xf]
      %v1325 = vld [vmem:[%s3 + $0x40] sm:$0xf]
      %v1326 = vld [vmem:[%s3 + $0x44] sm:$0xf]
      %v1327 = vld [vmem:[%s3 + $0x48] sm:$0xf]
      %v1328 = vld [vmem:[%s3 + $0x4c] sm:$0xf]
      %v1329 = vld [vmem:[%s3 + $0x50] sm:$0xf]
      %v1330 = vld [vmem:[%s3 + $0x54] sm:$0xf]
      %v1331 = vld [vmem:[%s3 + $0x58] sm:$0xf]
      %v1332 = vld [vmem:[%s3 + $0x5c] sm:$0xf]
      %v1333 = vld [vmem:[%s3 + $0x60] sm:$0xf]
      %v1334 = vld [vmem:[%s3 + $0x64] sm:$0xf]
      %v1335 = vld [vmem:[%s3 + $0x68] sm:$0xf]
      %v1336 = vld [vmem:[%s3 + $0x6c] sm:$0xf]
      %v1337 = vld [vmem:[%s3 + $0x70] sm:$0xf]
      %v1338 = vld [vmem:[%s3 + $0x74] sm:$0xf]
      %v1339 = vld [vmem:[%s3 + $0x78] sm:$0xf]
      %v1340 = vld [vmem:[%s3 + $0x7c] sm:$0xf]
      %v1341 = vld [vmem:[%s3 + $0x80] sm:$0xf]
      %v1342 = vld [vmem:[%s3 + $0x84] sm:$0xf]
      %v1343 = vld [vmem:[%s3 + $0x88] sm:$0xf]
      %v1344 = vld [vmem:[%s3 + $0x8c] sm:$0xf]
      %v1345 = vld [vmem:[%s3 + $0x90] sm:$0xf]
      %v1346 = vld [vmem:[%s3 + $0x94] sm:$0xf]
      %v1347 = vld [vmem:[%s3 + $0x98] sm:$0xf]
      %v1348 = vld [vmem:[%s3 + $0x9c] sm:$0xf]
      %v1349 = vld [vmem:[%s3 + $0xa0] sm:$0xf]
      %v1350 = vld [vmem:[%s3 + $0xa4] sm:$0xf]
      %v1351 = vld [vmem:[%s3 + $0xa8] sm:$0xf]
      %v1352 = vld [vmem:[%s3 + $0xac] sm:$0xf]
      %v1353 = vld [vmem:[%s3 + $0xb0] sm:$0xf]
      %v1354 = vld [vmem:[%s3 + $0xb4] sm:$0xf]
      %v1355 = vld [vmem:[%s3 + $0xb8] sm:$0xf]
      %v1356 = vld [vmem:[%s3 + $0xbc] sm:$0xf]
      %v1357 = vld [vmem:[%s3 + $0xc0] sm:$0xf]
      %v1358 = vld [vmem:[%s3 + $0xc4] sm:$0xf]
      %v1359 = vld [vmem:[%s3 + $0xc8] sm:$0xf]
      %v1360 = vld [vmem:[%s3 + $0xcc] sm:$0xf]
      %v1361 = vld [vmem:[%s3 + $0xd0] sm:$0xf]
      %v1362 = vld [vmem:[%s3 + $0xd4] sm:$0xf]
      %v1363 = vld [vmem:[%s3 + $0xd8] sm:$0xf]
      %v1364 = vld [vmem:[%s3 + $0xdc] sm:$0xf]
      %v1365 = vld [vmem:[%s3 + $0xe0] sm:$0xf]
      %v1366 = vld [vmem:[%s3 + $0xe4] sm:$0xf]
      %v1367 = vld [vmem:[%s3 + $0xe8] sm:$0xf]
      %v1368 = vld [vmem:[%s3 + $0xec] sm:$0xf]
      %v1369 = vld [vmem:[%s3 + $0xf0] sm:$0xf]
      %v1370 = vld [vmem:[%s3 + $0xf4] sm:$0xf]
      %v1371 = vld [vmem:[%s3 + $0xf8] sm:$0xf]
      %v1372 = vld [vmem:[%s3 + $0xfc] sm:$0xf]
      %v1373 = vld [vmem:[%s3 + $0x100] sm:$0xf]
      %v1374 = vld [vmem:[%s3 + $0x104] sm:$0xf]
      %v1375 = vld [vmem:[%s3 + $0x108] sm:$0xf]
      %v1376 = vld [vmem:[%s3 + $0x10c] sm:$0xf]
      %v1377 = vld [vmem:[%s3 + $0x110] sm:$0xf]
      %v1378 = vld [vmem:[%s3 + $0x114] sm:$0xf]
      %v1379 = vld [vmem:[%s3 + $0x118] sm:$0xf]
      %v1380 = vld [vmem:[%s3 + $0x11c] sm:$0xf]
      %v1381 = vld [vmem:[%s4] sm:$0x1]
      %v1383 = vlaneseq
      %v1384 = vshrl.u32 %v1383, 7
      %v1385 = vsub.s32 0, %v1384
      %v1386 = vrot.slane %v1381, %v1385
      %v1460 = vunpack.c.l.b16 %v1309
      %v1461 = vunpack.c.l.b16 %v1310
      %v1462 = vunpack.c.l.b16 %v1311
      %v1463 = vunpack.c.l.b16 %v1312
      %v1464 = vunpack.c.l.b16 %v1313
      %v1465 = vunpack.c.l.b16 %v1314
      %v1466 = vunpack.c.l.b16 %v1315
      %v1467 = vunpack.c.l.b16 %v1316
      %v1468 = vunpack.c.l.b16 %v1317
      %v1469 = vunpack.c.l.b16 %v1318
      %v1470 = vunpack.c.l.b16 %v1319
      %v1471 = vunpack.c.l.b16 %v1320
      %v1472 = vunpack.c.l.b16 %v1321
      %v1473 = vunpack.c.l.b16 %v1322
      %v1474 = vunpack.c.l.b16 %v1323
      %v1475 = vunpack.c.l.b16 %v1324
      %v1476 = vunpack.c.l.b16 %v1325
      %v1477 = vunpack.c.l.b16 %v1326
      %v1478 = vunpack.c.l.b16 %v1327
      %v1479 = vunpack.c.l.b16 %v1328
      %v1480 = vunpack.c.l.b16 %v1329
      %v1481 = vunpack.c.l.b16 %v1330
      %v1482 = vunpack.c.l.b16 %v1331
      %v1483 = vunpack.c.l.b16 %v1332
      %v1484 = vunpack.c.l.b16 %v1333
      %v1485 = vunpack.c.l.b16 %v1334
      %v1486 = vunpack.c.l.b16 %v1335
      %v1487 = vunpack.c.l.b16 %v1336
      %v1488 = vunpack.c.l.b16 %v1337
      %v1489 = vunpack.c.l.b16 %v1338
      %v1490 = vunpack.c.l.b16 %v1339
      %v1491 = vunpack.c.l.b16 %v1340
      %v1492 = vunpack.c.l.b16 %v1341
      %v1493 = vunpack.c.l.b16 %v1342
      %v1494 = vunpack.c.l.b16 %v1343
      %v1495 = vunpack.c.l.b16 %v1344
      %v1496 = vunpack.c.l.b16 %v1345
      %v1497 = vunpack.c.l.b16 %v1346
      %v1498 = vunpack.c.l.b16 %v1347
      %v1499 = vunpack.c.l.b16 %v1348
      %v1500 = vunpack.c.l.b16 %v1349
      %v1501 = vunpack.c.l.b16 %v1350
      %v1502 = vunpack.c.l.b16 %v1351
      %v1503 = vunpack.c.l.b16 %v1352
      %v1504 = vunpack.c.l.b16 %v1353
      %v1505 = vunpack.c.l.b16 %v1354
      %v1506 = vunpack.c.l.b16 %v1355
      %v1507 = vunpack.c.l.b16 %v1356
      %v1508 = vunpack.c.l.b16 %v1357
      %v1509 = vunpack.c.l.b16 %v1358
      %v1510 = vunpack.c.l.b16 %v1359
      %v1511 = vunpack.c.l.b16 %v1360
      %v1512 = vunpack.c.l.b16 %v1361
      %v1513 = vunpack.c.l.b16 %v1362
      %v1514 = vunpack.c.l.b16 %v1363
      %v1515 = vunpack.c.l.b16 %v1364
      %v1516 = vunpack.c.l.b16 %v1365
      %v1517 = vunpack.c.l.b16 %v1366
      %v1518 = vunpack.c.l.b16 %v1367
      %v1519 = vunpack.c.l.b16 %v1368
      %v1520 = vunpack.c.l.b16 %v1369
      %v1521 = vunpack.c.l.b16 %v1370
      %v1522 = vunpack.c.l.b16 %v1371
      %v1523 = vunpack.c.l.b16 %v1372
      %v1524 = vunpack.c.l.b16 %v1373
      %v1525 = vunpack.c.l.b16 %v1374
      %v1526 = vunpack.c.l.b16 %v1375
      %v1527 = vunpack.c.l.b16 %v1376
      %v1528 = vunpack.c.l.b16 %v1377
      %v1529 = vunpack.c.l.b16 %v1378
      %v1530 = vunpack.c.l.b16 %v1379
      %v1531 = vunpack.c.l.b16 %v1380
      %v1532 = vpack.c.b16 %v1461, %v1460
      %v1533 = vpack.c.b16 %v1463, %v1462
      %v1534 = vpack.c.b16 %v1465, %v1464
      %v1535 = vpack.c.b16 %v1467, %v1466
      %v1536 = vpack.c.b16 %v1469, %v1468
      %v1537 = vpack.c.b16 %v1471, %v1470
      %v1538 = vpack.c.b16 %v1473, %v1472
      %v1539 = vpack.c.b16 %v1475, %v1474
      %v1540 = vpack.c.b16 %v1477, %v1476
      %v1541 = vpack.c.b16 %v1479, %v1478
      %v1542 = vpack.c.b16 %v1481, %v1480
      %v1543 = vpack.c.b16 %v1483, %v1482
      %v1544 = vpack.c.b16 %v1485, %v1484
      %v1545 = vpack.c.b16 %v1487, %v1486
      %v1546 = vpack.c.b16 %v1489, %v1488
      %v1547 = vpack.c.b16 %v1491, %v1490
      %v1548 = vpack.c.b16 %v1493, %v1492
      %v1549 = vpack.c.b16 %v1495, %v1494
      %v1550 = vpack.c.b16 %v1497, %v1496
      %v1551 = vpack.c.b16 %v1499, %v1498
      %v1552 = vpack.c.b16 %v1501, %v1500
      %v1553 = vpack.c.b16 %v1503, %v1502
      %v1554 = vpack.c.b16 %v1505, %v1504
      %v1555 = vpack.c.b16 %v1507, %v1506
      %v1556 = vpack.c.b16 %v1509, %v1508
      %v1557 = vpack.c.b16 %v1511, %v1510
      %v1558 = vpack.c.b16 %v1513, %v1512
      %v1559 = vpack.c.b16 %v1515, %v1514
      %v1560 = vpack.c.b16 %v1517, %v1516
      %v1561 = vpack.c.b16 %v1519, %v1518
      %v1562 = vpack.c.b16 %v1521, %v1520
      %v1563 = vpack.c.b16 %v1523, %v1522
      %v1564 = vpack.c.b16 %v1525, %v1524
      %v1565 = vpack.c.b16 %v1527, %v1526
      %v1566 = vpack.c.b16 %v1529, %v1528
      %v1567 = vpack.c.b16 %v1531, %v1530
      %v1605 = vsel %vm690, %v1296, 0
      %v1608 = vsel %vm690, %v1300, 0
      %v1611 = vsel %vm690, %v1304, 0
      %v1614 = vsel %vm690, %v1308, 0
      %1616 = vmatprep.subr.bf16.mxu0 0
      %1617 = vmatpush1.bf16.msra.mxu0 %v1532
      %1618 = vmatprep.subr.bf16.mxu0 0
      %1619 = vmatpush1.bf16.msra.mxu0 %v1533
      %1620 = vmatprep.subr.bf16.mxu0 0
      %1621 = vmatpush1.bf16.msra.mxu0 %v1534
      %1622 = vmatprep.subr.bf16.mxu0 0
      %1623 = vmatpush1.bf16.msra.mxu0 %v1535
      %1624 = vmatprep.subr.bf16.mxu0 0
      %1625 = vmatpush1.bf16.msra.mxu0 %v1536
      %1626 = vmatprep.subr.bf16.mxu0 0
      %1627 = vmatpush1.bf16.msra.mxu0 %v1537
      %1628 = vmatprep.subr.bf16.mxu0 0
      %1629 = vmatpush1.bf16.msra.mxu0 %v1538
      %1630 = vmatprep.subr.bf16.mxu0 0
      %1631 = vmatpush1.bf16.msra.mxu0 %v1539
      %1632 = vmatprep.subr.bf16.mxu0 0
      %1633 = vmatpush1.bf16.msra.mxu0 %v1540
      %1634 = vmatprep.subr.bf16.mxu0 0
      %1635 = vmatpush1.bf16.msra.mxu0 %v1541
      %1636 = vmatprep.subr.bf16.mxu0 0
      %1637 = vmatpush1.bf16.msra.mxu0 %v1542
      %1638 = vmatprep.subr.bf16.mxu0 0
      %1639 = vmatpush1.bf16.msra.mxu0 %v1543
      %1640 = vmatprep.subr.bf16.mxu0 0
      %1641 = vmatpush1.bf16.msra.mxu0 %v1544
      %1642 = vmatprep.subr.bf16.mxu0 0
      %1643 = vmatpush1.bf16.msra.mxu0 %v1545
      %1644 = vmatprep.subr.bf16.mxu0 0
      %1645 = vmatpush1.bf16.msra.mxu0 %v1546
      %1646 = vmatprep.subr.bf16.mxu0 0
      %1647 = vmatpush1.bf16.msra.mxu0 %v1547
      %1648 = vmatprep.mubr.bf16.mxu0 %v1293
      %1649 = vmatmul.mubr.bf16.gmra.mrb[0].mxu0 %v1292
      %v1650 = vpop.f32.mrb[0].mxu0
      %v1651 = vadd.f32 %v1386, %v1650
      %v1652 = vpop.f32.mrb[0].mxu0
      %v1653 = vpop.f32.mrb[0].mxu0
      %v1654 = vadd.f32 %v1386, %v1653
      %v1655 = vpop.f32.mrb[0].mxu0
      %1656 = vmatprep.mubr.bf16.mxu0 %v1297
      %1657 = vmatmul.mubr.bf16.gmra.mrb[0].mxu0 %v1295
      %v1658 = vpop.f32.mrb[0].mxu0
      %v1659 = vadd.f32 %v1386, %v1658
      %v1660 = vpop.f32.mrb[0].mxu0
      %v1661 = vpop.f32.mrb[0].mxu0
      %v1662 = vadd.f32 %v1386, %v1661
      %v1663 = vpop.f32.mrb[0].mxu0
      %1664 = vmatprep.mubr.bf16.mxu0 %v1301
      %1665 = vmatmul.mubr.bf16.gmra.mrb[0].mxu0 %v1299
      %v1666 = vpop.f32.mrb[0].mxu0
      %v1667 = vadd.f32 %v1386, %v1666
      %v1668 = vpop.f32.mrb[0].mxu0
      %v1669 = vpop.f32.mrb[0].mxu0
      %v1670 = vadd.f32 %v1386, %v1669
      %v1671 = vpop.f32.mrb[0].mxu0
      %1672 = vmatprep.mubr.bf16.mxu0 %v1305
      %1673 = vmatmul.mubr.bf16.gmra.mrb[0].mxu0 %v1303
      %v1674 = vpop.f32.mrb[0].mxu0
      %v1675 = vadd.f32 %v1386, %v1674
      %v1676 = vpop.f32.mrb[0].mxu0
      %v1677 = vpop.f32.mrb[0].mxu0
      %v1678 = vadd.f32 %v1386, %v1677
      %v1679 = vpop.f32.mrb[0].mxu0
      %1680 = vdwg.mxu0
      %1681 = vmatprep.subr.bf16.mxu0 0
      %1682 = vmatpush1.bf16.msra.mxu0 %v1548
      %1683 = vmatprep.subr.bf16.mxu0 0
      %1684 = vmatpush1.bf16.msra.mxu0 %v1549
      %1685 = vmatprep.subr.bf16.mxu0 0
      %1686 = vmatpush1.bf16.msra.mxu0 %v1550
      %1687 = vmatprep.subr.bf16.mxu0 0
      %1688 = vmatpush1.bf16.msra.mxu0 %v1551
      %1689 = vmatprep.subr.bf16.mxu0 0
      %1690 = vmatpush1.bf16.msra.mxu0 %v1552
      %1691 = vmatprep.subr.bf16.mxu0 0
      %1692 = vmatpush1.bf16.msra.mxu0 %v1553
      %1693 = vmatprep.subr.bf16.mxu0 0
      %1694 = vmatpush1.bf16.msra.mxu0 %v1554
      %1695 = vmatprep.subr.bf16.mxu0 0
      %1696 = vmatpush1.bf16.msra.mxu0 %v1555
      %1697 = vmatprep.subr.bf16.mxu0 0
      %1698 = vmatpush1.bf16.msra.mxu0 %v1556
      %1699 = vmatprep.subr.bf16.mxu0 0
      %1700 = vmatpush1.bf16.msra.mxu0 %v1557
      %1701 = vmatprep.subr.bf16.mxu0 0
      %1702 = vmatpush1.bf16.msra.mxu0 %v1558
      %1703 = vmatprep.subr.bf16.mxu0 0
      %1704 = vmatpush1.bf16.msra.mxu0 %v1559
      %1705 = vmatprep.subr.bf16.mxu0 0
      %1706 = vmatpush1.bf16.msra.mxu0 %v1560
      %1707 = vmatprep.subr.bf16.mxu0 0
      %1708 = vmatpush1.bf16.msra.mxu0 %v1561
      %1709 = vmatprep.subr.bf16.mxu0 0
      %1710 = vmatpush1.bf16.msra.mxu0 %v1562
      %1711 = vmatprep.subr.bf16.mxu0 0
      %1712 = vmatpush1.bf16.msra.mxu0 %v1563
      %1713 = vmatprep.mubr.bf16.mxu0 %v1295
      %1714 = vmatmul.mubr.bf16.gmra.mrb[0].mxu0 %v1294
      %v1715 = vpop.f32.mrb[0].mxu0
      %v1716 = vadd.f32 %v1651, %v1715
      %v1717 = vpop.f32.mrb[0].mxu0
      %v1718 = vpop.f32.mrb[0].mxu0
      %v1719 = vadd.f32 %v1654, %v1718
      %v1720 = vpop.f32.mrb[0].mxu0
      %1721 = vmatprep.mubr.bf16.mxu0 %v1299
      %1722 = vmatmul.mubr.bf16.gmra.mrb[0].mxu0 %v1298
      %v1723 = vpop.f32.mrb[0].mxu0
      %v1724 = vadd.f32 %v1659, %v1723
      %v1725 = vpop.f32.mrb[0].mxu0
      %v1726 = vpop.f32.mrb[0].mxu0
      %v1727 = vadd.f32 %v1662, %v1726
      %v1728 = vpop.f32.mrb[0].mxu0
      %1729 = vmatprep.mubr.bf16.mxu0 %v1303
      %1730 = vmatmul.mubr.bf16.gmra.mrb[0].mxu0 %v1302
      %v1731 = vpop.f32.mrb[0].mxu0
      %v1732 = vadd.f32 %v1667, %v1731
      %v1733 = vpop.f32.mrb[0].mxu0
      %v1734 = vpop.f32.mrb[0].mxu0
      %v1735 = vadd.f32 %v1670, %v1734
      %v1736 = vpop.f32.mrb[0].mxu0
      %1737 = vmatprep.mubr.bf16.mxu0 %v1307
      %1738 = vmatmul.mubr.bf16.gmra.mrb[0].mxu0 %v1306
      %v1739 = vpop.f32.mrb[0].mxu0
      %v1740 = vadd.f32 %v1675, %v1739
      %v1741 = vpop.f32.mrb[0].mxu0
      %v1742 = vpop.f32.mrb[0].mxu0
      %v1743 = vadd.f32 %v1678, %v1742
      %v1744 = vpop.f32.mrb[0].mxu0
      %1745 = vdwg.mxu0
      %1746 = vmatprep.subr.bf16.mxu0 0
      %1747 = vmatpush1.bf16.msra.mxu0 %v1564
      %1748 = vmatprep.subr.bf16.mxu0 0
      %1749 = vmatpush1.bf16.msra.mxu0 %v1565
      %1750 = vmatprep.subr.bf16.mxu0 0
      %1751 = vmatpush1.bf16.msra.mxu0 %v1566
      %1752 = vmatprep.subr.bf16.mxu0 0
      %1753 = vmatpush1.bf16.msra.mxu0 %v1567
      %1754 = vmatprep.subr.bf16.mxu0 0
      %1755 = vmatpush1.bf16.msra.mxu0 0
      %1756 = vmatprep.subr.bf16.mxu0 0
      %1757 = vmatpush1.bf16.msra.mxu0 0
      %1758 = vmatprep.subr.bf16.mxu0 0
      %1759 = vmatpush1.bf16.msra.mxu0 0
      %1760 = vmatprep.subr.bf16.mxu0 0
      %1761 = vmatpush1.bf16.msra.mxu0 0
      %1762 = vmatprep.subr.bf16.mxu0 0
      %1763 = vmatpush1.bf16.msra.mxu0 0
      %1764 = vmatprep.subr.bf16.mxu0 0
      %1765 = vmatpush1.bf16.msra.mxu0 0
      %1766 = vmatprep.subr.bf16.mxu0 0
      %1767 = vmatpush1.bf16.msra.mxu0 0
      %1768 = vmatprep.subr.bf16.mxu0 0
      %1769 = vmatpush1.bf16.msra.mxu0 0
      %1770 = vmatprep.subr.bf16.mxu0 0
      %1771 = vmatpush1.bf16.msra.mxu0 0
      %1772 = vmatprep.subr.bf16.mxu0 0
      %1773 = vmatpush1.bf16.msra.mxu0 0
      %1774 = vmatprep.subr.bf16.mxu0 0
      %1775 = vmatpush1.bf16.msra.mxu0 0
      %1776 = vmatprep.subr.bf16.mxu0 0
      %1777 = vmatpush1.bf16.msra.mxu0 0
      %1778 = vmatprep.mubr.bf16.mxu0 0
      %1779 = vmatmul.mubr.bf16.gmra.mrb[0].mxu0 %v1605
      %v1780 = vpop.f32.mrb[0].mxu0
      %v1781 = vadd.f32 %v1716, %v1780
      %v1782 = vpop.f32.mrb[0].mxu0
      %v1783 = vpop.f32.mrb[0].mxu0
      %v1784 = vadd.f32 %v1719, %v1783
      %v1785 = vpop.f32.mrb[0].mxu0
      %1786 = vmatprep.mubr.bf16.mxu0 0
      %1787 = vmatmul.mubr.bf16.gmra.mrb[0].mxu0 %v1608
      %v1788 = vpop.f32.mrb[0].mxu0
      %v1789 = vadd.f32 %v1724, %v1788
      %v1790 = vpop.f32.mrb[0].mxu0
      %v1791 = vpop.f32.mrb[0].mxu0
      %v1792 = vadd.f32 %v1727, %v1791
      %v1793 = vpop.f32.mrb[0].mxu0
      %1794 = vmatprep.mubr.bf16.mxu0 0
      %1795 = vmatmul.mubr.bf16.gmra.mrb[0].mxu0 %v1611
      %v1796 = vpop.f32.mrb[0].mxu0
      %v1797 = vadd.f32 %v1732, %v1796
      %v1798 = vpop.f32.mrb[0].mxu0
      %v1799 = vpop.f32.mrb[0].mxu0
      %v1800 = vadd.f32 %v1735, %v1799
      %v1801 = vpop.f32.mrb[0].mxu0
      %1802 = vmatprep.mubr.bf16.mxu0 0
      %1803 = vmatmul.mubr.bf16.gmra.mrb[0].mxu0 %v1614
      %v1804 = vpop.f32.mrb[0].mxu0
      %v1805 = vadd.f32 %v1740, %v1804
      %v1806 = vpop.f32.mrb[0].mxu0
      %v1807 = vpop.f32.mrb[0].mxu0
      %v1808 = vadd.f32 %v1743, %v1807
      %v1809 = vpop.f32.mrb[0].mxu0
      %1810 = vdwg.mxu0
      %v1811 = vmax.f32 %v1781, 0.0
      %v1812 = vmax.f32 %v1784, 0.0
      %v1813 = vmax.f32 %v1789, 0.0
      %v1814 = vmax.f32 %v1792, 0.0
      %v1815 = vmax.f32 %v1797, 0.0
      %v1816 = vmax.f32 %v1800, 0.0
      %v1817 = vmax.f32 %v1805, 0.0
      %v1818 = vmax.f32 %v1808, 0.0
      %v1827 = vrot.slane %v1812, 1
      %v1828 = vrot.slane %v1811, 1
      %v1829 = vrot.slane %v1813, 1
      %v1830 = vrot.slane %v1814, 1
      %v1831 = vrot.slane %v1815, 1
      %v1832 = vrot.slane %v1816, 1
      %v1833 = vrot.slane %v1817, 1
      %v1834 = vrot.slane %v1818, 1
      %v1843 = vrot.slane %v1812, 7
      %v1844 = vrot.slane %v1811, 7
      %v1845 = vrot.slane %v1813, 7
      %v1846 = vrot.slane %v1814, 7
      %v1847 = vrot.slane %v1815, 7
      %v1848 = vrot.slane %v1816, 7
      %v1849 = vrot.slane %v1817, 7
      %v1850 = vrot.slane %v1818, 7
      %v1859 = vrot.slane %v1812, 5
      %v1860 = vrot.slane %v1811, 5
      %v1861 = vrot.slane %v1813, 5
      %v1862 = vrot.slane %v1814, 5
      %v1863 = vrot.slane %v1815, 5
      %v1864 = vrot.slane %v1816, 5
      %v1865 = vrot.slane %v1817, 5
      %v1866 = vrot.slane %v1818, 5
      %v1875 = vsel %vm452, %v1827, %v1843
      %v1876 = vsel %vm452, %v1828, %v1844
      %v1877 = vsel %vm452, %v1829, %v1845
      %v1878 = vsel %vm452, %v1830, %v1846
      %v1879 = vsel %vm452, %v1831, %v1847
      %v1880 = vsel %vm452, %v1832, %v1848
      %v1881 = vsel %vm452, %v1833, %v1849
      %v1882 = vsel %vm452, %v1834, %v1850
      %v1883 = vsel %vm452, %v1843, %v1859
      %v1884 = vsel %vm452, %v1844, %v1860
      %v1885 = vsel %vm452, %v1845, %v1861
      %v1886 = vsel %vm452, %v1846, %v1862
      %v1887 = vsel %vm452, %v1847, %v1863
      %v1888 = vsel %vm452, %v1848, %v1864
      %v1889 = vsel %vm452, %v1849, %v1865
      %v1890 = vsel %vm452, %v1850, %v1866
      %v1905 = vrot.slane %v1875, 1
      %v1906 = vrot.slane %v1883, 1
      %v1907 = vsel %vm483, %v1905, %v1906
      %v1908 = vrot.slane %v1876, 1
      %v1909 = vrot.slane %v1884, 1
      %v1910 = vsel %vm483, %v1908, %v1909
      %v1911 = vrot.slane %v1877, 1
      %v1912 = vrot.slane %v1885, 1
      %v1913 = vsel %vm483, %v1911, %v1912
      %v1914 = vrot.slane %v1878, 1
      %v1915 = vrot.slane %v1886, 1
      %v1916 = vsel %vm483, %v1914, %v1915
      %v1917 = vrot.slane %v1879, 1
      %v1918 = vrot.slane %v1887, 1
      %v1919 = vsel %vm483, %v1917, %v1918
      %v1920 = vrot.slane %v1880, 1
      %v1921 = vrot.slane %v1888, 1
      %v1922 = vsel %vm483, %v1920, %v1921
      %v1923 = vrot.slane %v1881, 1
      %v1924 = vrot.slane %v1889, 1
      %v1925 = vsel %vm483, %v1923, %v1924
      %v1926 = vrot.slane %v1875, 2
      %v1927 = vrot.slane %v1883, 2
      %v1928 = vsel %vm505, %v1926, %v1927
      %v1929 = vrot.slane %v1876, 2
      %v1930 = vrot.slane %v1884, 2
      %v1931 = vsel %vm505, %v1929, %v1930
      %v1932 = vrot.slane %v1877, 2
      %v1933 = vrot.slane %v1885, 2
      %v1934 = vsel %vm505, %v1932, %v1933
      %v1935 = vrot.slane %v1878, 2
      %v1936 = vrot.slane %v1886, 2
      %v1937 = vsel %vm505, %v1935, %v1936
      %v1938 = vrot.slane %v1879, 2
      %v1939 = vrot.slane %v1887, 2
      %v1940 = vsel %vm505, %v1938, %v1939
      %v1941 = vrot.slane %v1880, 2
      %v1942 = vrot.slane %v1888, 2
      %v1943 = vsel %vm505, %v1941, %v1942
      %v1944 = vrot.slane %v1881, 2
      %v1945 = vrot.slane %v1889, 2
      %v1946 = vsel %vm505, %v1944, %v1945
      %v1956 = vrot.slane %v1882, 1
      %v1957 = vrot.slane %v1890, 1
      %v1958 = vsel %vm483, %v1956, %v1957
      %v1967 = vrot.slane %v1882, 2
      %v1968 = vrot.slane %v1890, 2
      %v1969 = vsel %vm505, %v1967, %v1968
      %1971 = vrot.lane.b32.xlu0 %v1907, 64
      %v1972 = vpop.permute.xlu0 %1971
      %1973 = vrot.lane.b32.xlu0 %v1910, 64
      %v1974 = vpop.permute.xlu0 %1973
      %1975 = vrot.lane.b32.xlu0 %v1913, 64
      %v1976 = vpop.permute.xlu0 %1975
      %1977 = vrot.lane.b32.xlu0 %v1916, 64
      %v1978 = vpop.permute.xlu0 %1977
      %1979 = vrot.lane.b32.xlu0 %v1919, 64
      %v1980 = vpop.permute.xlu0 %1979
      %1981 = vrot.lane.b32.xlu0 %v1922, 64
      %v1982 = vpop.permute.xlu0 %1981
      %1983 = vrot.lane.b32.xlu0 %v1925, 64
      %v1984 = vpop.permute.xlu0 %1983
      %1992 = vrot.lane.b32.xlu0 %v1876, 64
      %v1993 = vpop.permute.xlu0 %1992
      %1994 = vrot.lane.b32.xlu0 %v1875, 64
      %v1995 = vpop.permute.xlu0 %1994
      %1996 = vrot.lane.b32.xlu0 %v1877, 64
      %v1997 = vpop.permute.xlu0 %1996
      %1998 = vrot.lane.b32.xlu0 %v1878, 64
      %v1999 = vpop.permute.xlu0 %1998
      %2000 = vrot.lane.b32.xlu0 %v1879, 64
      %v2001 = vpop.permute.xlu0 %2000
      %2002 = vrot.lane.b32.xlu0 %v1880, 64
      %v2003 = vpop.permute.xlu0 %2002
      %2004 = vrot.lane.b32.xlu0 %v1881, 64
      %v2005 = vpop.permute.xlu0 %2004
      %2006 = vrot.lane.b32.xlu0 %v1882, 64
      %v2007 = vpop.permute.xlu0 %2006
      %2016 = vrot.lane.b32.xlu0 %v1931, 64
      %v2017 = vpop.permute.xlu0 %2016
      %2018 = vrot.lane.b32.xlu0 %v1928, 64
      %v2019 = vpop.permute.xlu0 %2018
      %2020 = vrot.lane.b32.xlu0 %v1934, 64
      %v2021 = vpop.permute.xlu0 %2020
      %2022 = vrot.lane.b32.xlu0 %v1937, 64
      %v2023 = vpop.permute.xlu0 %2022
      %2024 = vrot.lane.b32.xlu0 %v1940, 64
      %v2025 = vpop.permute.xlu0 %2024
      %2026 = vrot.lane.b32.xlu0 %v1943, 64
      %v2027 = vpop.permute.xlu0 %2026
      %2028 = vrot.lane.b32.xlu0 %v1946, 64
      %v2029 = vpop.permute.xlu0 %2028
      %2030 = vrot.lane.b32.xlu0 %v1969, 64
      %v2031 = vpop.permute.xlu0 %2030
      %2040 = vrot.lane.b32.xlu0 %v1958, 64
      %v2041 = vpop.permute.xlu0 %2040
      %v2043 = vsel %vm690, %v1875, %v1972
      %v2044 = vsel %vm690, %v1876, %v1974
      %v2045 = vsel %vm690, %v1877, %v1976
      %v2046 = vsel %vm690, %v1878, %v1978
      %v2047 = vsel %vm690, %v1879, %v1980
      %v2048 = vsel %vm690, %v1880, %v1982
      %v2049 = vsel %vm690, %v1881, %v1984
      %v2050 = vsel %vm690, %v1928, %v1993
      %v2051 = vsel %vm690, %v1931, %v1995
      %v2052 = vsel %vm690, %v1928, %v1997
      %v2053 = vsel %vm690, %v1934, %v1999
      %v2054 = vsel %vm690, %v1937, %v2001
      %v2055 = vsel %vm690, %v1940, %v2003
      %v2056 = vsel %vm690, %v1943, %v2005
      %v2057 = vsel %vm690, %v1946, %v2007
      %v2058 = vsel %vm690, %v1910, %v2017
      %v2059 = vsel %vm690, %v1907, %v2019
      %v2060 = vsel %vm690, %v1913, %v2021
      %v2061 = vsel %vm690, %v1916, %v2023
      %v2062 = vsel %vm690, %v1919, %v2025
      %v2063 = vsel %vm690, %v1922, %v2027
      %v2064 = vsel %vm690, %v1925, %v2029
      %v2065 = vsel %vm690, %v1958, %v2031
      %v2066 = vsel %vm690, %v1882, %v2041
      %v2067 = vpack.c.bf16 %v2044, %v2043
      %v2068 = vpack.c.bf16 %v2051, %v2050
      %v2069 = vpack.c.bf16 %v2059, %v2058
      %v2070 = vpack.c.bf16 %v2045, %v2043
      %v2071 = vpack.c.bf16 %v1934, %v1928
      %v2072 = vpack.c.bf16 %v2053, %v2052
      %v2073 = vpack.c.bf16 %v2061, %v2060
      %v2074 = vpack.c.bf16 %v2047, %v2046
      %v2075 = vpack.c.bf16 %v1940, %v1937
      %v2076 = vpack.c.bf16 %v2055, %v2054
      %v2077 = vpack.c.bf16 %v2063, %v2062
      %v2078 = vpack.c.bf16 %v2049, %v2048
      %v2079 = vpack.c.bf16 %v1946, %v1943
      %v2080 = vpack.c.bf16 %v2057, %v2056
      %v2081 = vpack.c.bf16 %v2065, %v2064
      %v2082 = vpack.c.bf16 %v2049, %v2066
      %v2083 = vpack.c.bf16 %v1946, %v1969
      %v2084 = vld [vmem:[%s5] sm:$0xf]
      %v2085 = vld [vmem:[%s5 + $0x4] sm:$0xf]
      %v2086 = vld [vmem:[%s5 + $0x8] sm:$0xf]
      %v2087 = vld [vmem:[%s5 + $0xc] sm:$0xf]
      %v2088 = vld [vmem:[%s5 + $0x10] sm:$0xf]
      %v2089 = vld [vmem:[%s5 + $0x14] sm:$0xf]
      %v2090 = vld [vmem:[%s5 + $0x18] sm:$0xf]
      %v2091 = vld [vmem:[%s5 + $0x1c] sm:$0xf]
      %v2092 = vld [vmem:[%s5 + $0x20] sm:$0xf]
      %v2093 = vld [vmem:[%s5 + $0x24] sm:$0xf]
      %v2094 = vld [vmem:[%s5 + $0x28] sm:$0xf]
      %v2095 = vld [vmem:[%s5 + $0x2c] sm:$0xf]
      %v2096 = vld [vmem:[%s5 + $0x30] sm:$0xf]
      %v2097 = vld [vmem:[%s5 + $0x34] sm:$0xf]
      %v2098 = vld [vmem:[%s5 + $0x38] sm:$0xf]
      %v2099 = vld [vmem:[%s5 + $0x3c] sm:$0xf]
      %v2100 = vld [vmem:[%s5 + $0x40] sm:$0xf]
      %v2101 = vld [vmem:[%s5 + $0x44] sm:$0xf]
      %v2102 = vld [vmem:[%s5 + $0x48] sm:$0xf]
      %v2103 = vld [vmem:[%s5 + $0x4c] sm:$0xf]
      %v2104 = vld [vmem:[%s5 + $0x50] sm:$0xf]
      %v2105 = vld [vmem:[%s5 + $0x54] sm:$0xf]
      %v2106 = vld [vmem:[%s5 + $0x58] sm:$0xf]
      %v2107 = vld [vmem:[%s5 + $0x5c] sm:$0xf]
      %v2108 = vld [vmem:[%s5 + $0x60] sm:$0xf]
      %v2109 = vld [vmem:[%s5 + $0x64] sm:$0xf]
      %v2110 = vld [vmem:[%s5 + $0x68] sm:$0xf]
      %v2111 = vld [vmem:[%s5 + $0x6c] sm:$0xf]
      %v2112 = vld [vmem:[%s5 + $0x70] sm:$0xf]
      %v2113 = vld [vmem:[%s5 + $0x74] sm:$0xf]
      %v2114 = vld [vmem:[%s5 + $0x78] sm:$0xf]
      %v2115 = vld [vmem:[%s5 + $0x7c] sm:$0xf]
      %v2116 = vld [vmem:[%s5 + $0x80] sm:$0xf]
      %v2117 = vld [vmem:[%s5 + $0x84] sm:$0xf]
      %v2118 = vld [vmem:[%s5 + $0x88] sm:$0xf]
      %v2119 = vld [vmem:[%s5 + $0x8c] sm:$0xf]
      %v2120 = vld [vmem:[%s5 + $0x90] sm:$0xf]
      %v2121 = vld [vmem:[%s5 + $0x94] sm:$0xf]
      %v2122 = vld [vmem:[%s5 + $0x98] sm:$0xf]
      %v2123 = vld [vmem:[%s5 + $0x9c] sm:$0xf]
      %v2124 = vld [vmem:[%s5 + $0xa0] sm:$0xf]
      %v2125 = vld [vmem:[%s5 + $0xa4] sm:$0xf]
      %v2126 = vld [vmem:[%s5 + $0xa8] sm:$0xf]
      %v2127 = vld [vmem:[%s5 + $0xac] sm:$0xf]
      %v2128 = vld [vmem:[%s5 + $0xb0] sm:$0xf]
      %v2129 = vld [vmem:[%s5 + $0xb4] sm:$0xf]
      %v2130 = vld [vmem:[%s5 + $0xb8] sm:$0xf]
      %v2131 = vld [vmem:[%s5 + $0xbc] sm:$0xf]
      %v2132 = vld [vmem:[%s5 + $0xc0] sm:$0xf]
      %v2133 = vld [vmem:[%s5 + $0xc4] sm:$0xf]
      %v2134 = vld [vmem:[%s5 + $0xc8] sm:$0xf]
      %v2135 = vld [vmem:[%s5 + $0xcc] sm:$0xf]
      %v2136 = vld [vmem:[%s5 + $0xd0] sm:$0xf]
      %v2137 = vld [vmem:[%s5 + $0xd4] sm:$0xf]
      %v2138 = vld [vmem:[%s5 + $0xd8] sm:$0xf]
      %v2139 = vld [vmem:[%s5 + $0xdc] sm:$0xf]
      %v2140 = vld [vmem:[%s5 + $0xe0] sm:$0xf]
      %v2141 = vld [vmem:[%s5 + $0xe4] sm:$0xf]
      %v2142 = vld [vmem:[%s5 + $0xe8] sm:$0xf]
      %v2143 = vld [vmem:[%s5 + $0xec] sm:$0xf]
      %v2144 = vld [vmem:[%s5 + $0xf0] sm:$0xf]
      %v2145 = vld [vmem:[%s5 + $0xf4] sm:$0xf]
      %v2146 = vld [vmem:[%s5 + $0xf8] sm:$0xf]
      %v2147 = vld [vmem:[%s5 + $0xfc] sm:$0xf]
      %v2148 = vld [vmem:[%s5 + $0x100] sm:$0xf]
      %v2149 = vld [vmem:[%s5 + $0x104] sm:$0xf]
      %v2150 = vld [vmem:[%s5 + $0x108] sm:$0xf]
      %v2151 = vld [vmem:[%s5 + $0x10c] sm:$0xf]
      %v2152 = vld [vmem:[%s5 + $0x110] sm:$0xf]
      %v2153 = vld [vmem:[%s5 + $0x114] sm:$0xf]
      %v2154 = vld [vmem:[%s5 + $0x118] sm:$0xf]
      %v2155 = vld [vmem:[%s5 + $0x11c] sm:$0xf]
      %v2156 = vld [vmem:[%s6] sm:$0x1]
      %v2158 = vlaneseq
      %v2159 = vshrl.u32 %v2158, 7
      %v2160 = vsub.s32 0, %v2159
      %v2161 = vrot.slane %v2156, %v2160
      %v2235 = vunpack.c.l.b16 %v2084
      %v2236 = vunpack.c.l.b16 %v2085
      %v2237 = vunpack.c.l.b16 %v2086
      %v2238 = vunpack.c.l.b16 %v2087
      %v2239 = vunpack.c.l.b16 %v2088
      %v2240 = vunpack.c.l.b16 %v2089
      %v2241 = vunpack.c.l.b16 %v2090
      %v2242 = vunpack.c.l.b16 %v2091
      %v2243 = vunpack.c.l.b16 %v2092
      %v2244 = vunpack.c.l.b16 %v2093
      %v2245 = vunpack.c.l.b16 %v2094
      %v2246 = vunpack.c.l.b16 %v2095
      %v2247 = vunpack.c.l.b16 %v2096
      %v2248 = vunpack.c.l.b16 %v2097
      %v2249 = vunpack.c.l.b16 %v2098
      %v2250 = vunpack.c.l.b16 %v2099
      %v2251 = vunpack.c.l.b16 %v2100
      %v2252 = vunpack.c.l.b16 %v2101
      %v2253 = vunpack.c.l.b16 %v2102
      %v2254 = vunpack.c.l.b16 %v2103
      %v2255 = vunpack.c.l.b16 %v2104
      %v2256 = vunpack.c.l.b16 %v2105
      %v2257 = vunpack.c.l.b16 %v2106
      %v2258 = vunpack.c.l.b16 %v2107
      %v2259 = vunpack.c.l.b16 %v2108
      %v2260 = vunpack.c.l.b16 %v2109
      %v2261 = vunpack.c.l.b16 %v2110
      %v2262 = vunpack.c.l.b16 %v2111
      %v2263 = vunpack.c.l.b16 %v2112
      %v2264 = vunpack.c.l.b16 %v2113
      %v2265 = vunpack.c.l.b16 %v2114
      %v2266 = vunpack.c.l.b16 %v2115
      %v2267 = vunpack.c.l.b16 %v2116
      %v2268 = vunpack.c.l.b16 %v2117
      %v2269 = vunpack.c.l.b16 %v2118
      %v2270 = vunpack.c.l.b16 %v2119
      %v2271 = vunpack.c.l.b16 %v2120
      %v2272 = vunpack.c.l.b16 %v2121
      %v2273 = vunpack.c.l.b16 %v2122
      %v2274 = vunpack.c.l.b16 %v2123
      %v2275 = vunpack.c.l.b16 %v2124
      %v2276 = vunpack.c.l.b16 %v2125
      %v2277 = vunpack.c.l.b16 %v2126
      %v2278 = vunpack.c.l.b16 %v2127
      %v2279 = vunpack.c.l.b16 %v2128
      %v2280 = vunpack.c.l.b16 %v2129
      %v2281 = vunpack.c.l.b16 %v2130
      %v2282 = vunpack.c.l.b16 %v2131
      %v2283 = vunpack.c.l.b16 %v2132
      %v2284 = vunpack.c.l.b16 %v2133
      %v2285 = vunpack.c.l.b16 %v2134
      %v2286 = vunpack.c.l.b16 %v2135
      %v2287 = vunpack.c.l.b16 %v2136
      %v2288 = vunpack.c.l.b16 %v2137
      %v2289 = vunpack.c.l.b16 %v2138
      %v2290 = vunpack.c.l.b16 %v2139
      %v2291 = vunpack.c.l.b16 %v2140
      %v2292 = vunpack.c.l.b16 %v2141
      %v2293 = vunpack.c.l.b16 %v2142
      %v2294 = vunpack.c.l.b16 %v2143
      %v2295 = vunpack.c.l.b16 %v2144
      %v2296 = vunpack.c.l.b16 %v2145
      %v2297 = vunpack.c.l.b16 %v2146
      %v2298 = vunpack.c.l.b16 %v2147
      %v2299 = vunpack.c.l.b16 %v2148
      %v2300 = vunpack.c.l.b16 %v2149
      %v2301 = vunpack.c.l.b16 %v2150
      %v2302 = vunpack.c.l.b16 %v2151
      %v2303 = vunpack.c.l.b16 %v2152
      %v2304 = vunpack.c.l.b16 %v2153
      %v2305 = vunpack.c.l.b16 %v2154
      %v2306 = vunpack.c.l.b16 %v2155
      %v2307 = vpack.c.b16 %v2236, %v2235
      %v2308 = vpack.c.b16 %v2238, %v2237
      %v2309 = vpack.c.b16 %v2240, %v2239
      %v2310 = vpack.c.b16 %v2242, %v2241
      %v2311 = vpack.c.b16 %v2244, %v2243
      %v2312 = vpack.c.b16 %v2246, %v2245
      %v2313 = vpack.c.b16 %v2248, %v2247
      %v2314 = vpack.c.b16 %v2250, %v2249
      %v2315 = vpack.c.b16 %v2252, %v2251
      %v2316 = vpack.c.b16 %v2254, %v2253
      %v2317 = vpack.c.b16 %v2256, %v2255
      %v2318 = vpack.c.b16 %v2258, %v2257
      %v2319 = vpack.c.b16 %v2260, %v2259
      %v2320 = vpack.c.b16 %v2262, %v2261
      %v2321 = vpack.c.b16 %v2264, %v2263
      %v2322 = vpack.c.b16 %v2266, %v2265
      %v2323 = vpack.c.b16 %v2268, %v2267
      %v2324 = vpack.c.b16 %v2270, %v2269
      %v2325 = vpack.c.b16 %v2272, %v2271
      %v2326 = vpack.c.b16 %v2274, %v2273
      %v2327 = vpack.c.b16 %v2276, %v2275
      %v2328 = vpack.c.b16 %v2278, %v2277
      %v2329 = vpack.c.b16 %v2280, %v2279
      %v2330 = vpack.c.b16 %v2282, %v2281
      %v2331 = vpack.c.b16 %v2284, %v2283
      %v2332 = vpack.c.b16 %v2286, %v2285
      %v2333 = vpack.c.b16 %v2288, %v2287
      %v2334 = vpack.c.b16 %v2290, %v2289
      %v2335 = vpack.c.b16 %v2292, %v2291
      %v2336 = vpack.c.b16 %v2294, %v2293
      %v2337 = vpack.c.b16 %v2296, %v2295
      %v2338 = vpack.c.b16 %v2298, %v2297
      %v2339 = vpack.c.b16 %v2300, %v2299
      %v2340 = vpack.c.b16 %v2302, %v2301
      %v2341 = vpack.c.b16 %v2304, %v2303
      %v2342 = vpack.c.b16 %v2306, %v2305
      %v2380 = vsel %vm690, %v2071, 0
      %v2383 = vsel %vm690, %v2075, 0
      %v2386 = vsel %vm690, %v2079, 0
      %v2389 = vsel %vm690, %v2083, 0
      %2391 = vmatprep.subr.bf16.mxu0 0
      %2392 = vmatpush1.bf16.msra.mxu0 %v2307
      %2393 = vmatprep.subr.bf16.mxu0 0
      %2394 = vmatpush1.bf16.msra.mxu0 %v2308
      %2395 = vmatprep.subr.bf16.mxu0 0
      %2396 = vmatpush1.bf16.msra.mxu0 %v2309
      %2397 = vmatprep.subr.bf16.mxu0 0
      %2398 = vmatpush1.bf16.msra.mxu0 %v2310
      %2399 = vmatprep.subr.bf16.mxu0 0
      %2400 = vmatpush1.bf16.msra.mxu0 %v2311
      %2401 = vmatprep.subr.bf16.mxu0 0
      %2402 = vmatpush1.bf16.msra.mxu0 %v2312
      %2403 = vmatprep.subr.bf16.mxu0 0
      %2404 = vmatpush1.bf16.msra.mxu0 %v2313
      %2405 = vmatprep.subr.bf16.mxu0 0
      %2406 = vmatpush1.bf16.msra.mxu0 %v2314
      %2407 = vmatprep.subr.bf16.mxu0 0
      %2408 = vmatpush1.bf16.msra.mxu0 %v2315
      %2409 = vmatprep.subr.bf16.mxu0 0
      %2410 = vmatpush1.bf16.msra.mxu0 %v2316
      %2411 = vmatprep.subr.bf16.mxu0 0
      %2412 = vmatpush1.bf16.msra.mxu0 %v2317
      %2413 = vmatprep.subr.bf16.mxu0 0
      %2414 = vmatpush1.bf16.msra.mxu0 %v2318
      %2415 = vmatprep.subr.bf16.mxu0 0
      %2416 = vmatpush1.bf16.msra.mxu0 %v2319
      %2417 = vmatprep.subr.bf16.mxu0 0
      %2418 = vmatpush1.bf16.msra.mxu0 %v2320
      %2419 = vmatprep.subr.bf16.mxu0 0
      %2420 = vmatpush1.bf16.msra.mxu0 %v2321
      %2421 = vmatprep.subr.bf16.mxu0 0
      %2422 = vmatpush1.bf16.msra.mxu0 %v2322
      %2423 = vmatprep.mubr.bf16.mxu0 %v2068
      %2424 = vmatmul.mubr.bf16.gmra.mrb[0].mxu0 %v2067
      %v2425 = vpop.f32.mrb[0].mxu0
      %v2426 = vadd.f32 %v2161, %v2425
      %v2427 = vpop.f32.mrb[0].mxu0
      %v2428 = vpop.f32.mrb[0].mxu0
      %v2429 = vadd.f32 %v2161, %v2428
      %v2430 = vpop.f32.mrb[0].mxu0
      %2431 = vmatprep.mubr.bf16.mxu0 %v2072
      %2432 = vmatmul.mubr.bf16.gmra.mrb[0].mxu0 %v2070
      %v2433 = vpop.f32.mrb[0].mxu0
      %v2434 = vadd.f32 %v2161, %v2433
      %v2435 = vpop.f32.mrb[0].mxu0
      %v2436 = vpop.f32.mrb[0].mxu0
      %v2437 = vadd.f32 %v2161, %v2436
      %v2438 = vpop.f32.mrb[0].mxu0
      %2439 = vmatprep.mubr.bf16.mxu0 %v2076
      %2440 = vmatmul.mubr.bf16.gmra.mrb[0].mxu0 %v2074
      %v2441 = vpop.f32.mrb[0].mxu0
      %v2442 = vadd.f32 %v2161, %v2441
      %v2443 = vpop.f32.mrb[0].mxu0
      %v2444 = vpop.f32.mrb[0].mxu0
      %v2445 = vadd.f32 %v2161, %v2444
      %v2446 = vpop.f32.mrb[0].mxu0
      %2447 = vmatprep.mubr.bf16.mxu0 %v2080
      %2448 = vmatmul.mubr.bf16.gmra.mrb[0].mxu0 %v2078
      %v2449 = vpop.f32.mrb[0].mxu0
      %v2450 = vadd.f32 %v2161, %v2449
      %v2451 = vpop.f32.mrb[0].mxu0
      %v2452 = vpop.f32.mrb[0].mxu0
      %v2453 = vadd.f32 %v2161, %v2452
      %v2454 = vpop.f32.mrb[0].mxu0
      %2455 = vdwg.mxu0
      %2456 = vmatprep.subr.bf16.mxu0 0
      %2457 = vmatpush1.bf16.msra.mxu0 %v2323
      %2458 = vmatprep.subr.bf16.mxu0 0
      %2459 = vmatpush1.bf16.msra.mxu0 %v2324
      %2460 = vmatprep.subr.bf16.mxu0 0
      %2461 = vmatpush1.bf16.msra.mxu0 %v2325
      %2462 = vmatprep.subr.bf16.mxu0 0
      %2463 = vmatpush1.bf16.msra.mxu0 %v2326
      %2464 = vmatprep.subr.bf16.mxu0 0
      %2465 = vmatpush1.bf16.msra.mxu0 %v2327
      %2466 = vmatprep.subr.bf16.mxu0 0
      %2467 = vmatpush1.bf16.msra.mxu0 %v2328
      %2468 = vmatprep.subr.bf16.mxu0 0
      %2469 = vmatpush1.bf16.msra.mxu0 %v2329
      %2470 = vmatprep.subr.bf16.mxu0 0
      %2471 = vmatpush1.bf16.msra.mxu0 %v2330
      %2472 = vmatprep.subr.bf16.mxu0 0
      %2473 = vmatpush1.bf16.msra.mxu0 %v2331
      %2474 = vmatprep.subr.bf16.mxu0 0
      %2475 = vmatpush1.bf16.msra.mxu0 %v2332
      %2476 = vmatprep.subr.bf16.mxu0 0
      %2477 = vmatpush1.bf16.msra.mxu0 %v2333
      %2478 = vmatprep.subr.bf16.mxu0 0
      %2479 = vmatpush1.bf16.msra.mxu0 %v2334
      %2480 = vmatprep.subr.bf16.mxu0 0
      %2481 = vmatpush1.bf16.msra.mxu0 %v2335
      %2482 = vmatprep.subr.bf16.mxu0 0
      %2483 = vmatpush1.bf16.msra.mxu0 %v2336
      %2484 = vmatprep.subr.bf16.mxu0 0
      %2485 = vmatpush1.bf16.msra.mxu0 %v2337
      %2486 = vmatprep.subr.bf16.mxu0 0
      %2487 = vmatpush1.bf16.msra.mxu0 %v2338
      %2488 = vmatprep.mubr.bf16.mxu0 %v2070
      %2489 = vmatmul.mubr.bf16.gmra.mrb[0].mxu0 %v2069
      %v2490 = vpop.f32.mrb[0].mxu0
      %v2491 = vadd.f32 %v2426, %v2490
      %v2492 = vpop.f32.mrb[0].mxu0
      %v2493 = vpop.f32.mrb[0].mxu0
      %v2494 = vadd.f32 %v2429, %v2493
      %v2495 = vpop.f32.mrb[0].mxu0
      %2496 = vmatprep.mubr.bf16.mxu0 %v2074
      %2497 = vmatmul.mubr.bf16.gmra.mrb[0].mxu0 %v2073
      %v2498 = vpop.f32.mrb[0].mxu0
      %v2499 = vadd.f32 %v2434, %v2498
      %v2500 = vpop.f32.mrb[0].mxu0
      %v2501 = vpop.f32.mrb[0].mxu0
      %v2502 = vadd.f32 %v2437, %v2501
      %v2503 = vpop.f32.mrb[0].mxu0
      %2504 = vmatprep.mubr.bf16.mxu0 %v2078
      %2505 = vmatmul.mubr.bf16.gmra.mrb[0].mxu0 %v2077
      %v2506 = vpop.f32.mrb[0].mxu0
      %v2507 = vadd.f32 %v2442, %v2506
      %v2508 = vpop.f32.mrb[0].mxu0
      %v2509 = vpop.f32.mrb[0].mxu0
      %v2510 = vadd.f32 %v2445, %v2509
      %v2511 = vpop.f32.mrb[0].mxu0
      %2512 = vmatprep.mubr.bf16.mxu0 %v2082
      %2513 = vmatmul.mubr.bf16.gmra.mrb[0].mxu0 %v2081
      %v2514 = vpop.f32.mrb[0].mxu0
      %v2515 = vadd.f32 %v2450, %v2514
      %v2516 = vpop.f32.mrb[0].mxu0
      %v2517 = vpop.f32.mrb[0].mxu0
      %v2518 = vadd.f32 %v2453, %v2517
      %v2519 = vpop.f32.mrb[0].mxu0
      %2520 = vdwg.mxu0
      %2521 = vmatprep.subr.bf16.mxu0 0
      %2522 = vmatpush1.bf16.msra.mxu0 %v2339
      %2523 = vmatprep.subr.bf16.mxu0 0
      %2524 = vmatpush1.bf16.msra.mxu0 %v2340
      %2525 = vmatprep.subr.bf16.mxu0 0
      %2526 = vmatpush1.bf16.msra.mxu0 %v2341
      %2527 = vmatprep.subr.bf16.mxu0 0
      %2528 = vmatpush1.bf16.msra.mxu0 %v2342
      %2529 = vmatprep.subr.bf16.mxu0 0
      %2530 = vmatpush1.bf16.msra.mxu0 0
      %2531 = vmatprep.subr.bf16.mxu0 0
      %2532 = vmatpush1.bf16.msra.mxu0 0
      %2533 = vmatprep.subr.bf16.mxu0 0
      %2534 = vmatpush1.bf16.msra.mxu0 0
      %2535 = vmatprep.subr.bf16.mxu0 0
      %2536 = vmatpush1.bf16.msra.mxu0 0
      %2537 = vmatprep.subr.bf16.mxu0 0
      %2538 = vmatpush1.bf16.msra.mxu0 0
      %2539 = vmatprep.subr.bf16.mxu0 0
      %2540 = vmatpush1.bf16.msra.mxu0 0
      %2541 = vmatprep.subr.bf16.mxu0 0
      %2542 = vmatpush1.bf16.msra.mxu0 0
      %2543 = vmatprep.subr.bf16.mxu0 0
      %2544 = vmatpush1.bf16.msra.mxu0 0
      %2545 = vmatprep.subr.bf16.mxu0 0
      %2546 = vmatpush1.bf16.msra.mxu0 0
      %2547 = vmatprep.subr.bf16.mxu0 0
      %2548 = vmatpush1.bf16.msra.mxu0 0
      %2549 = vmatprep.subr.bf16.mxu0 0
      %2550 = vmatpush1.bf16.msra.mxu0 0
      %2551 = vmatprep.subr.bf16.mxu0 0
      %2552 = vmatpush1.bf16.msra.mxu0 0
      %2553 = vmatprep.mubr.bf16.mxu0 0
      %2554 = vmatmul.mubr.bf16.gmra.mrb[0].mxu0 %v2380
      %v2555 = vpop.f32.mrb[0].mxu0
      %v2556 = vadd.f32 %v2491, %v2555
      %v2557 = vpop.f32.mrb[0].mxu0
      %v2558 = vpop.f32.mrb[0].mxu0
      %v2559 = vadd.f32 %v2494, %v2558
      %v2560 = vpop.f32.mrb[0].mxu0
      %2561 = vmatprep.mubr.bf16.mxu0 0
      %2562 = vmatmul.mubr.bf16.gmra.mrb[0].mxu0 %v2383
      %v2563 = vpop.f32.mrb[0].mxu0
      %v2564 = vadd.f32 %v2499, %v2563
      %v2565 = vpop.f32.mrb[0].mxu0
      %v2566 = vpop.f32.mrb[0].mxu0
      %v2567 = vadd.f32 %v2502, %v2566
      %v2568 = vpop.f32.mrb[0].mxu0
      %2569 = vmatprep.mubr.bf16.mxu0 0
      %2570 = vmatmul.mubr.bf16.gmra.mrb[0].mxu0 %v2386
      %v2571 = vpop.f32.mrb[0].mxu0
      %v2572 = vadd.f32 %v2507, %v2571
      %v2573 = vpop.f32.mrb[0].mxu0
      %v2574 = vpop.f32.mrb[0].mxu0
      %v2575 = vadd.f32 %v2510, %v2574
      %v2576 = vpop.f32.mrb[0].mxu0
      %2577 = vmatprep.mubr.bf16.mxu0 0
      %2578 = vmatmul.mubr.bf16.gmra.mrb[0].mxu0 %v2389
      %v2579 = vpop.f32.mrb[0].mxu0
      %v2580 = vadd.f32 %v2515, %v2579
      %v2581 = vpop.f32.mrb[0].mxu0
      %v2582 = vpop.f32.mrb[0].mxu0
      %v2583 = vadd.f32 %v2518, %v2582
      %v2584 = vpop.f32.mrb[0].mxu0
      %2585 = vdwg.mxu0
      %v2586 = vmax.f32 %v2556, 0.0
      %v2587 = vmax.f32 %v2559, 0.0
      %v2588 = vmax.f32 %v2564, 0.0
      %v2589 = vmax.f32 %v2567, 0.0
      %v2590 = vmax.f32 %v2572, 0.0
      %v2591 = vmax.f32 %v2575, 0.0
      %v2592 = vmax.f32 %v2580, 0.0
      %v2593 = vmax.f32 %v2583, 0.0
      %v2602 = vrot.slane %v2587, 1
      %v2603 = vrot.slane %v2586, 1
      %v2604 = vrot.slane %v2588, 1
      %v2605 = vrot.slane %v2589, 1
      %v2606 = vrot.slane %v2590, 1
      %v2607 = vrot.slane %v2591, 1
      %v2608 = vrot.slane %v2592, 1
      %v2609 = vrot.slane %v2593, 1
      %v2618 = vrot.slane %v2587, 7
      %v2619 = vrot.slane %v2586, 7
      %v2620 = vrot.slane %v2588, 7
      %v2621 = vrot.slane %v2589, 7
      %v2622 = vrot.slane %v2590, 7
      %v2623 = vrot.slane %v2591, 7
      %v2624 = vrot.slane %v2592, 7
      %v2625 = vrot.slane %v2593, 7
      %v2634 = vrot.slane %v2587, 5
      %v2635 = vrot.slane %v2586, 5
      %v2636 = vrot.slane %v2588, 5
      %v2637 = vrot.slane %v2589, 5
      %v2638 = vrot.slane %v2590, 5
      %v2639 = vrot.slane %v2591, 5
      %v2640 = vrot.slane %v2592, 5
      %v2641 = vrot.slane %v2593, 5
      %v2650 = vsel %vm452, %v2602, %v2618
      %v2651 = vsel %vm452, %v2603, %v2619
      %v2652 = vsel %vm452, %v2604, %v2620
      %v2653 = vsel %vm452, %v2605, %v2621
      %v2654 = vsel %vm452, %v2606, %v2622
      %v2655 = vsel %vm452, %v2607, %v2623
      %v2656 = vsel %vm452, %v2608, %v2624
      %v2657 = vsel %vm452, %v2609, %v2625
      %v2658 = vsel %vm452, %v2618, %v2634
      %v2659 = vsel %vm452, %v2619, %v2635
      %v2660 = vsel %vm452, %v2620, %v2636
      %v2661 = vsel %vm452, %v2621, %v2637
      %v2662 = vsel %vm452, %v2622, %v2638
      %v2663 = vsel %vm452, %v2623, %v2639
      %v2664 = vsel %vm452, %v2624, %v2640
      %v2665 = vsel %vm452, %v2625, %v2641
      %v2680 = vrot.slane %v2650, 1
      %v2681 = vrot.slane %v2658, 1
      %v2682 = vsel %vm483, %v2680, %v2681
      %v2683 = vrot.slane %v2651, 1
      %v2684 = vrot.slane %v2659, 1
      %v2685 = vsel %vm483, %v2683, %v2684
      %v2686 = vrot.slane %v2652, 1
      %v2687 = vrot.slane %v2660, 1
      %v2688 = vsel %vm483, %v2686, %v2687
      %v2689 = vrot.slane %v2653, 1
      %v2690 = vrot.slane %v2661, 1
      %v2691 = vsel %vm483, %v2689, %v2690
      %v2692 = vrot.slane %v2654, 1
      %v2693 = vrot.slane %v2662, 1
      %v2694 = vsel %vm483, %v2692, %v2693
      %v2695 = vrot.slane %v2655, 1
      %v2696 = vrot.slane %v2663, 1
      %v2697 = vsel %vm483, %v2695, %v2696
      %v2698 = vrot.slane %v2656, 1
      %v2699 = vrot.slane %v2664, 1
      %v2700 = vsel %vm483, %v2698, %v2699
      %v2701 = vrot.slane %v2650, 2
      %v2702 = vrot.slane %v2658, 2
      %v2703 = vsel %vm505, %v2701, %v2702
      %v2704 = vrot.slane %v2651, 2
      %v2705 = vrot.slane %v2659, 2
      %v2706 = vsel %vm505, %v2704, %v2705
      %v2707 = vrot.slane %v2652, 2
      %v2708 = vrot.slane %v2660, 2
      %v2709 = vsel %vm505, %v2707, %v2708
      %v2710 = vrot.slane %v2653, 2
      %v2711 = vrot.slane %v2661, 2
      %v2712 = vsel %vm505, %v2710, %v2711
      %v2713 = vrot.slane %v2654, 2
      %v2714 = vrot.slane %v2662, 2
      %v2715 = vsel %vm505, %v2713, %v2714
      %v2716 = vrot.slane %v2655, 2
      %v2717 = vrot.slane %v2663, 2
      %v2718 = vsel %vm505, %v2716, %v2717
      %v2719 = vrot.slane %v2656, 2
      %v2720 = vrot.slane %v2664, 2
      %v2721 = vsel %vm505, %v2719, %v2720
      %v2731 = vrot.slane %v2657, 1
      %v2732 = vrot.slane %v2665, 1
      %v2733 = vsel %vm483, %v2731, %v2732
      %v2742 = vrot.slane %v2657, 2
      %v2743 = vrot.slane %v2665, 2
      %v2744 = vsel %vm505, %v2742, %v2743
      %2746 = vrot.lane.b32.xlu0 %v2682, 64
      %v2747 = vpop.permute.xlu0 %2746
      %2748 = vrot.lane.b32.xlu0 %v2685, 64
      %v2749 = vpop.permute.xlu0 %2748
      %2750 = vrot.lane.b32.xlu0 %v2688, 64
      %v2751 = vpop.permute.xlu0 %2750
      %2752 = vrot.lane.b32.xlu0 %v2691, 64
      %v2753 = vpop.permute.xlu0 %2752
      %2754 = vrot.lane.b32.xlu0 %v2694, 64
      %v2755 = vpop.permute.xlu0 %2754
      %2756 = vrot.lane.b32.xlu0 %v2697, 64
      %v2757 = vpop.permute.xlu0 %2756
      %2758 = vrot.lane.b32.xlu0 %v2700, 64
      %v2759 = vpop.permute.xlu0 %2758
      %2767 = vrot.lane.b32.xlu0 %v2651, 64
      %v2768 = vpop.permute.xlu0 %2767
      %2769 = vrot.lane.b32.xlu0 %v2650, 64
      %v2770 = vpop.permute.xlu0 %2769
      %2771 = vrot.lane.b32.xlu0 %v2652, 64
      %v2772 = vpop.permute.xlu0 %2771
      %2773 = vrot.lane.b32.xlu0 %v2653, 64
      %v2774 = vpop.permute.xlu0 %2773
      %2775 = vrot.lane.b32.xlu0 %v2654, 64
      %v2776 = vpop.permute.xlu0 %2775
      %2777 = vrot.lane.b32.xlu0 %v2655, 64
      %v2778 = vpop.permute.xlu0 %2777
      %2779 = vrot.lane.b32.xlu0 %v2656, 64
      %v2780 = vpop.permute.xlu0 %2779
      %2781 = vrot.lane.b32.xlu0 %v2657, 64
      %v2782 = vpop.permute.xlu0 %2781
      %2791 = vrot.lane.b32.xlu0 %v2706, 64
      %v2792 = vpop.permute.xlu0 %2791
      %2793 = vrot.lane.b32.xlu0 %v2703, 64
      %v2794 = vpop.permute.xlu0 %2793
      %2795 = vrot.lane.b32.xlu0 %v2709, 64
      %v2796 = vpop.permute.xlu0 %2795
      %2797 = vrot.lane.b32.xlu0 %v2712, 64
      %v2798 = vpop.permute.xlu0 %2797
      %2799 = vrot.lane.b32.xlu0 %v2715, 64
      %v2800 = vpop.permute.xlu0 %2799
      %2801 = vrot.lane.b32.xlu0 %v2718, 64
      %v2802 = vpop.permute.xlu0 %2801
      %2803 = vrot.lane.b32.xlu0 %v2721, 64
      %v2804 = vpop.permute.xlu0 %2803
      %2805 = vrot.lane.b32.xlu0 %v2744, 64
      %v2806 = vpop.permute.xlu0 %2805
      %2815 = vrot.lane.b32.xlu0 %v2733, 64
      %v2816 = vpop.permute.xlu0 %2815
      %v2818 = vsel %vm690, %v2650, %v2747
      %v2819 = vsel %vm690, %v2651, %v2749
      %v2820 = vsel %vm690, %v2652, %v2751
      %v2821 = vsel %vm690, %v2653, %v2753
      %v2822 = vsel %vm690, %v2654, %v2755
      %v2823 = vsel %vm690, %v2655, %v2757
      %v2824 = vsel %vm690, %v2656, %v2759
      %v2825 = vsel %vm690, %v2703, %v2768
      %v2826 = vsel %vm690, %v2706, %v2770
      %v2827 = vsel %vm690, %v2703, %v2772
      %v2828 = vsel %vm690, %v2709, %v2774
      %v2829 = vsel %vm690, %v2712, %v2776
      %v2830 = vsel %vm690, %v2715, %v2778
      %v2831 = vsel %vm690, %v2718, %v2780
      %v2832 = vsel %vm690, %v2721, %v2782
      %v2833 = vsel %vm690, %v2685, %v2792
      %v2834 = vsel %vm690, %v2682, %v2794
      %v2835 = vsel %vm690, %v2688, %v2796
      %v2836 = vsel %vm690, %v2691, %v2798
      %v2837 = vsel %vm690, %v2694, %v2800
      %v2838 = vsel %vm690, %v2697, %v2802
      %v2839 = vsel %vm690, %v2700, %v2804
      %v2840 = vsel %vm690, %v2733, %v2806
      %v2841 = vsel %vm690, %v2657, %v2816
      %v2842 = vpack.c.bf16 %v2819, %v2818
      %v2843 = vpack.c.bf16 %v2826, %v2825
      %v2844 = vpack.c.bf16 %v2834, %v2833
      %v2845 = vpack.c.bf16 %v2820, %v2818
      %v2846 = vpack.c.bf16 %v2709, %v2703
      %v2847 = vpack.c.bf16 %v2828, %v2827
      %v2848 = vpack.c.bf16 %v2836, %v2835
      %v2849 = vpack.c.bf16 %v2822, %v2821
      %v2850 = vpack.c.bf16 %v2715, %v2712
      %v2851 = vpack.c.bf16 %v2830, %v2829
      %v2852 = vpack.c.bf16 %v2838, %v2837
      %v2853 = vpack.c.bf16 %v2824, %v2823
      %v2854 = vpack.c.bf16 %v2721, %v2718
      %v2855 = vpack.c.bf16 %v2832, %v2831
      %v2856 = vpack.c.bf16 %v2840, %v2839
      %v2857 = vpack.c.bf16 %v2824, %v2841
      %v2858 = vpack.c.bf16 %v2721, %v2744
      %v2859 = vld [vmem:[%s7] sm:$0xf]
      %v2860 = vld [vmem:[%s7 + $0x4] sm:$0xf]
      %v2861 = vld [vmem:[%s7 + $0x8] sm:$0xf]
      %v2862 = vld [vmem:[%s7 + $0xc] sm:$0xf]
      %v2863 = vld [vmem:[%s7 + $0x10] sm:$0xf]
      %v2864 = vld [vmem:[%s7 + $0x14] sm:$0xf]
      %v2865 = vld [vmem:[%s7 + $0x18] sm:$0xf]
      %v2866 = vld [vmem:[%s7 + $0x1c] sm:$0xf]
      %v2867 = vld [vmem:[%s7 + $0x20] sm:$0xf]
      %v2868 = vld [vmem:[%s7 + $0x24] sm:$0xf]
      %v2869 = vld [vmem:[%s7 + $0x28] sm:$0xf]
      %v2870 = vld [vmem:[%s7 + $0x2c] sm:$0xf]
      %v2871 = vld [vmem:[%s7 + $0x30] sm:$0xf]
      %v2872 = vld [vmem:[%s7 + $0x34] sm:$0xf]
      %v2873 = vld [vmem:[%s7 + $0x38] sm:$0xf]
      %v2874 = vld [vmem:[%s7 + $0x3c] sm:$0xf]
      %v2875 = vld [vmem:[%s7 + $0x40] sm:$0xf]
      %v2876 = vld [vmem:[%s7 + $0x44] sm:$0xf]
      %v2877 = vld [vmem:[%s7 + $0x48] sm:$0xf]
      %v2878 = vld [vmem:[%s7 + $0x4c] sm:$0xf]
      %v2879 = vld [vmem:[%s7 + $0x50] sm:$0xf]
      %v2880 = vld [vmem:[%s7 + $0x54] sm:$0xf]
      %v2881 = vld [vmem:[%s7 + $0x58] sm:$0xf]
      %v2882 = vld [vmem:[%s7 + $0x5c] sm:$0xf]
      %v2883 = vld [vmem:[%s7 + $0x60] sm:$0xf]
      %v2884 = vld [vmem:[%s7 + $0x64] sm:$0xf]
      %v2885 = vld [vmem:[%s7 + $0x68] sm:$0xf]
      %v2886 = vld [vmem:[%s7 + $0x6c] sm:$0xf]
      %v2887 = vld [vmem:[%s7 + $0x70] sm:$0xf]
      %v2888 = vld [vmem:[%s7 + $0x74] sm:$0xf]
      %v2889 = vld [vmem:[%s7 + $0x78] sm:$0xf]
      %v2890 = vld [vmem:[%s7 + $0x7c] sm:$0xf]
      %v2891 = vld [vmem:[%s7 + $0x80] sm:$0xf]
      %v2892 = vld [vmem:[%s7 + $0x84] sm:$0xf]
      %v2893 = vld [vmem:[%s7 + $0x88] sm:$0xf]
      %v2894 = vld [vmem:[%s7 + $0x8c] sm:$0xf]
      %v2895 = vld [vmem:[%s7 + $0x90] sm:$0xf]
      %v2896 = vld [vmem:[%s7 + $0x94] sm:$0xf]
      %v2897 = vld [vmem:[%s7 + $0x98] sm:$0xf]
      %v2898 = vld [vmem:[%s7 + $0x9c] sm:$0xf]
      %v2899 = vld [vmem:[%s7 + $0xa0] sm:$0xf]
      %v2900 = vld [vmem:[%s7 + $0xa4] sm:$0xf]
      %v2901 = vld [vmem:[%s7 + $0xa8] sm:$0xf]
      %v2902 = vld [vmem:[%s7 + $0xac] sm:$0xf]
      %v2903 = vld [vmem:[%s7 + $0xb0] sm:$0xf]
      %v2904 = vld [vmem:[%s7 + $0xb4] sm:$0xf]
      %v2905 = vld [vmem:[%s7 + $0xb8] sm:$0xf]
      %v2906 = vld [vmem:[%s7 + $0xbc] sm:$0xf]
      %v2907 = vld [vmem:[%s7 + $0xc0] sm:$0xf]
      %v2908 = vld [vmem:[%s7 + $0xc4] sm:$0xf]
      %v2909 = vld [vmem:[%s7 + $0xc8] sm:$0xf]
      %v2910 = vld [vmem:[%s7 + $0xcc] sm:$0xf]
      %v2911 = vld [vmem:[%s7 + $0xd0] sm:$0xf]
      %v2912 = vld [vmem:[%s7 + $0xd4] sm:$0xf]
      %v2913 = vld [vmem:[%s7 + $0xd8] sm:$0xf]
      %v2914 = vld [vmem:[%s7 + $0xdc] sm:$0xf]
      %v2915 = vld [vmem:[%s7 + $0xe0] sm:$0xf]
      %v2916 = vld [vmem:[%s7 + $0xe4] sm:$0xf]
      %v2917 = vld [vmem:[%s7 + $0xe8] sm:$0xf]
      %v2918 = vld [vmem:[%s7 + $0xec] sm:$0xf]
      %v2919 = vld [vmem:[%s7 + $0xf0] sm:$0xf]
      %v2920 = vld [vmem:[%s7 + $0xf4] sm:$0xf]
      %v2921 = vld [vmem:[%s7 + $0xf8] sm:$0xf]
      %v2922 = vld [vmem:[%s7 + $0xfc] sm:$0xf]
      %v2923 = vld [vmem:[%s7 + $0x100] sm:$0xf]
      %v2924 = vld [vmem:[%s7 + $0x104] sm:$0xf]
      %v2925 = vld [vmem:[%s7 + $0x108] sm:$0xf]
      %v2926 = vld [vmem:[%s7 + $0x10c] sm:$0xf]
      %v2927 = vld [vmem:[%s7 + $0x110] sm:$0xf]
      %v2928 = vld [vmem:[%s7 + $0x114] sm:$0xf]
      %v2929 = vld [vmem:[%s7 + $0x118] sm:$0xf]
      %v2930 = vld [vmem:[%s7 + $0x11c] sm:$0xf]
      %v2931 = vld [vmem:[%s8] sm:$0x1]
      %v2933 = vlaneseq
      %v2934 = vshrl.u32 %v2933, 7
      %v2935 = vsub.s32 0, %v2934
      %v2936 = vrot.slane %v2931, %v2935
      %v3010 = vunpack.c.l.b16 %v2859
      %v3011 = vunpack.c.l.b16 %v2860
      %v3012 = vunpack.c.l.b16 %v2861
      %v3013 = vunpack.c.l.b16 %v2862
      %v3014 = vunpack.c.l.b16 %v2863
      %v3015 = vunpack.c.l.b16 %v2864
      %v3016 = vunpack.c.l.b16 %v2865
      %v3017 = vunpack.c.l.b16 %v2866
      %v3018 = vunpack.c.l.b16 %v2867
      %v3019 = vunpack.c.l.b16 %v2868
      %v3020 = vunpack.c.l.b16 %v2869
      %v3021 = vunpack.c.l.b16 %v2870
      %v3022 = vunpack.c.l.b16 %v2871
      %v3023 = vunpack.c.l.b16 %v2872
      %v3024 = vunpack.c.l.b16 %v2873
      %v3025 = vunpack.c.l.b16 %v2874
      %v3026 = vunpack.c.l.b16 %v2875
      %v3027 = vunpack.c.l.b16 %v2876
      %v3028 = vunpack.c.l.b16 %v2877
      %v3029 = vunpack.c.l.b16 %v2878
      %v3030 = vunpack.c.l.b16 %v2879
      %v3031 = vunpack.c.l.b16 %v2880
      %v3032 = vunpack.c.l.b16 %v2881
      %v3033 = vunpack.c.l.b16 %v2882
      %v3034 = vunpack.c.l.b16 %v2883
      %v3035 = vunpack.c.l.b16 %v2884
      %v3036 = vunpack.c.l.b16 %v2885
      %v3037 = vunpack.c.l.b16 %v2886
      %v3038 = vunpack.c.l.b16 %v2887
      %v3039 = vunpack.c.l.b16 %v2888
      %v3040 = vunpack.c.l.b16 %v2889
      %v3041 = vunpack.c.l.b16 %v2890
      %v3042 = vunpack.c.l.b16 %v2891
      %v3043 = vunpack.c.l.b16 %v2892
      %v3044 = vunpack.c.l.b16 %v2893
      %v3045 = vunpack.c.l.b16 %v2894
      %v3046 = vunpack.c.l.b16 %v2895
      %v3047 = vunpack.c.l.b16 %v2896
      %v3048 = vunpack.c.l.b16 %v2897
      %v3049 = vunpack.c.l.b16 %v2898
      %v3050 = vunpack.c.l.b16 %v2899
      %v3051 = vunpack.c.l.b16 %v2900
      %v3052 = vunpack.c.l.b16 %v2901
      %v3053 = vunpack.c.l.b16 %v2902
      %v3054 = vunpack.c.l.b16 %v2903
      %v3055 = vunpack.c.l.b16 %v2904
      %v3056 = vunpack.c.l.b16 %v2905
      %v3057 = vunpack.c.l.b16 %v2906
      %v3058 = vunpack.c.l.b16 %v2907
      %v3059 = vunpack.c.l.b16 %v2908
      %v3060 = vunpack.c.l.b16 %v2909
      %v3061 = vunpack.c.l.b16 %v2910
      %v3062 = vunpack.c.l.b16 %v2911
      %v3063 = vunpack.c.l.b16 %v2912
      %v3064 = vunpack.c.l.b16 %v2913
      %v3065 = vunpack.c.l.b16 %v2914
      %v3066 = vunpack.c.l.b16 %v2915
      %v3067 = vunpack.c.l.b16 %v2916
      %v3068 = vunpack.c.l.b16 %v2917
      %v3069 = vunpack.c.l.b16 %v2918
      %v3070 = vunpack.c.l.b16 %v2919
      %v3071 = vunpack.c.l.b16 %v2920
      %v3072 = vunpack.c.l.b16 %v2921
      %v3073 = vunpack.c.l.b16 %v2922
      %v3074 = vunpack.c.l.b16 %v2923
      %v3075 = vunpack.c.l.b16 %v2924
      %v3076 = vunpack.c.l.b16 %v2925
      %v3077 = vunpack.c.l.b16 %v2926
      %v3078 = vunpack.c.l.b16 %v2927
      %v3079 = vunpack.c.l.b16 %v2928
      %v3080 = vunpack.c.l.b16 %v2929
      %v3081 = vunpack.c.l.b16 %v2930
      %v3082 = vpack.c.b16 %v3011, %v3010
      %v3083 = vpack.c.b16 %v3013, %v3012
      %v3084 = vpack.c.b16 %v3015, %v3014
      %v3085 = vpack.c.b16 %v3017, %v3016
      %v3086 = vpack.c.b16 %v3019, %v3018
      %v3087 = vpack.c.b16 %v3021, %v3020
      %v3088 = vpack.c.b16 %v3023, %v3022
      %v3089 = vpack.c.b16 %v3025, %v3024
      %v3090 = vpack.c.b16 %v3027, %v3026
      %v3091 = vpack.c.b16 %v3029, %v3028
      %v3092 = vpack.c.b16 %v3031, %v3030
      %v3093 = vpack.c.b16 %v3033, %v3032
      %v3094 = vpack.c.b16 %v3035, %v3034
      %v3095 = vpack.c.b16 %v3037, %v3036
      %v3096 = vpack.c.b16 %v3039, %v3038
      %v3097 = vpack.c.b16 %v3041, %v3040
      %v3098 = vpack.c.b16 %v3043, %v3042
      %v3099 = vpack.c.b16 %v3045, %v3044
      %v3100 = vpack.c.b16 %v3047, %v3046
      %v3101 = vpack.c.b16 %v3049, %v3048
      %v3102 = vpack.c.b16 %v3051, %v3050
      %v3103 = vpack.c.b16 %v3053, %v3052
      %v3104 = vpack.c.b16 %v3055, %v3054
      %v3105 = vpack.c.b16 %v3057, %v3056
      %v3106 = vpack.c.b16 %v3059, %v3058
      %v3107 = vpack.c.b16 %v3061, %v3060
      %v3108 = vpack.c.b16 %v3063, %v3062
      %v3109 = vpack.c.b16 %v3065, %v3064
      %v3110 = vpack.c.b16 %v3067, %v3066
      %v3111 = vpack.c.b16 %v3069, %v3068
      %v3112 = vpack.c.b16 %v3071, %v3070
      %v3113 = vpack.c.b16 %v3073, %v3072
      %v3114 = vpack.c.b16 %v3075, %v3074
      %v3115 = vpack.c.b16 %v3077, %v3076
      %v3116 = vpack.c.b16 %v3079, %v3078
      %v3117 = vpack.c.b16 %v3081, %v3080
      %v3155 = vsel %vm690, %v2846, 0
      %v3158 = vsel %vm690, %v2850, 0
      %v3161 = vsel %vm690, %v2854, 0
      %v3164 = vsel %vm690, %v2858, 0
      %3166 = vmatprep.subr.bf16.mxu0 0
      %3167 = vmatpush1.bf16.msra.mxu0 %v3082
      %3168 = vmatprep.subr.bf16.mxu0 0
      %3169 = vmatpush1.bf16.msra.mxu0 %v3083
      %3170 = vmatprep.subr.bf16.mxu0 0
      %3171 = vmatpush1.bf16.msra.mxu0 %v3084
      %3172 = vmatprep.subr.bf16.mxu0 0
      %3173 = vmatpush1.bf16.msra.mxu0 %v3085
      %3174 = vmatprep.subr.bf16.mxu0 0
      %3175 = vmatpush1.bf16.msra.mxu0 %v3086
      %3176 = vmatprep.subr.bf16.mxu0 0
      %3177 = vmatpush1.bf16.msra.mxu0 %v3087
      %3178 = vmatprep.subr.bf16.mxu0 0
      %3179 = vmatpush1.bf16.msra.mxu0 %v3088
      %3180 = vmatprep.subr.bf16.mxu0 0
      %3181 = vmatpush1.bf16.msra.mxu0 %v3089
      %3182 = vmatprep.subr.bf16.mxu0 0
      %3183 = vmatpush1.bf16.msra.mxu0 %v3090
      %3184 = vmatprep.subr.bf16.mxu0 0
      %3185 = vmatpush1.bf16.msra.mxu0 %v3091
      %3186 = vmatprep.subr.bf16.mxu0 0
      %3187 = vmatpush1.bf16.msra.mxu0 %v3092
      %3188 = vmatprep.subr.bf16.mxu0 0
      %3189 = vmatpush1.bf16.msra.mxu0 %v3093
      %3190 = vmatprep.subr.bf16.mxu0 0
      %3191 = vmatpush1.bf16.msra.mxu0 %v3094
      %3192 = vmatprep.subr.bf16.mxu0 0
      %3193 = vmatpush1.bf16.msra.mxu0 %v3095
      %3194 = vmatprep.subr.bf16.mxu0 0
      %3195 = vmatpush1.bf16.msra.mxu0 %v3096
      %3196 = vmatprep.subr.bf16.mxu0 0
      %3197 = vmatpush1.bf16.msra.mxu0 %v3097
      %3198 = vmatprep.mubr.bf16.mxu0 %v2843
      %3199 = vmatmul.mubr.bf16.gmra.mrb[0].mxu0 %v2842
      %v3200 = vpop.f32.mrb[0].mxu0
      %v3201 = vadd.f32 %v2936, %v3200
      %v3202 = vpop.f32.mrb[0].mxu0
      %v3203 = vpop.f32.mrb[0].mxu0
      %v3204 = vadd.f32 %v2936, %v3203
      %v3205 = vpop.f32.mrb[0].mxu0
      %3206 = vmatprep.mubr.bf16.mxu0 %v2847
      %3207 = vmatmul.mubr.bf16.gmra.mrb[0].mxu0 %v2845
      %v3208 = vpop.f32.mrb[0].mxu0
      %v3209 = vadd.f32 %v2936, %v3208
      %v3210 = vpop.f32.mrb[0].mxu0
      %v3211 = vpop.f32.mrb[0].mxu0
      %v3212 = vadd.f32 %v2936, %v3211
      %v3213 = vpop.f32.mrb[0].mxu0
      %3214 = vmatprep.mubr.bf16.mxu0 %v2851
      %3215 = vmatmul.mubr.bf16.gmra.mrb[0].mxu0 %v2849
      %v3216 = vpop.f32.mrb[0].mxu0
      %v3217 = vadd.f32 %v2936, %v3216
      %v3218 = vpop.f32.mrb[0].mxu0
      %v3219 = vpop.f32.mrb[0].mxu0
      %v3220 = vadd.f32 %v2936, %v3219
      %v3221 = vpop.f32.mrb[0].mxu0
      %3222 = vmatprep.mubr.bf16.mxu0 %v2855
      %3223 = vmatmul.mubr.bf16.gmra.mrb[0].mxu0 %v2853
      %v3224 = vpop.f32.mrb[0].mxu0
      %v3225 = vadd.f32 %v2936, %v3224
      %v3226 = vpop.f32.mrb[0].mxu0
      %v3227 = vpop.f32.mrb[0].mxu0
      %v3228 = vadd.f32 %v2936, %v3227
      %v3229 = vpop.f32.mrb[0].mxu0
      %3230 = vdwg.mxu0
      %3231 = vmatprep.subr.bf16.mxu0 0
      %3232 = vmatpush1.bf16.msra.mxu0 %v3098
      %3233 = vmatprep.subr.bf16.mxu0 0
      %3234 = vmatpush1.bf16.msra.mxu0 %v3099
      %3235 = vmatprep.subr.bf16.mxu0 0
      %3236 = vmatpush1.bf16.msra.mxu0 %v3100
      %3237 = vmatprep.subr.bf16.mxu0 0
      %3238 = vmatpush1.bf16.msra.mxu0 %v3101
      %3239 = vmatprep.subr.bf16.mxu0 0
      %3240 = vmatpush1.bf16.msra.mxu0 %v3102
      %3241 = vmatprep.subr.bf16.mxu0 0
      %3242 = vmatpush1.bf16.msra.mxu0 %v3103
      %3243 = vmatprep.subr.bf16.mxu0 0
      %3244 = vmatpush1.bf16.msra.mxu0 %v3104
      %3245 = vmatprep.subr.bf16.mxu0 0
      %3246 = vmatpush1.bf16.msra.mxu0 %v3105
      %3247 = vmatprep.subr.bf16.mxu0 0
      %3248 = vmatpush1.bf16.msra.mxu0 %v3106
      %3249 = vmatprep.subr.bf16.mxu0 0
      %3250 = vmatpush1.bf16.msra.mxu0 %v3107
      %3251 = vmatprep.subr.bf16.mxu0 0
      %3252 = vmatpush1.bf16.msra.mxu0 %v3108
      %3253 = vmatprep.subr.bf16.mxu0 0
      %3254 = vmatpush1.bf16.msra.mxu0 %v3109
      %3255 = vmatprep.subr.bf16.mxu0 0
      %3256 = vmatpush1.bf16.msra.mxu0 %v3110
      %3257 = vmatprep.subr.bf16.mxu0 0
      %3258 = vmatpush1.bf16.msra.mxu0 %v3111
      %3259 = vmatprep.subr.bf16.mxu0 0
      %3260 = vmatpush1.bf16.msra.mxu0 %v3112
      %3261 = vmatprep.subr.bf16.mxu0 0
      %3262 = vmatpush1.bf16.msra.mxu0 %v3113
      %3263 = vmatprep.mubr.bf16.mxu0 %v2845
      %3264 = vmatmul.mubr.bf16.gmra.mrb[0].mxu0 %v2844
      %v3265 = vpop.f32.mrb[0].mxu0
      %v3266 = vadd.f32 %v3201, %v3265
      %v3267 = vpop.f32.mrb[0].mxu0
      %v3268 = vpop.f32.mrb[0].mxu0
      %v3269 = vadd.f32 %v3204, %v3268
      %v3270 = vpop.f32.mrb[0].mxu0
      %3271 = vmatprep.mubr.bf16.mxu0 %v2849
      %3272 = vmatmul.mubr.bf16.gmra.mrb[0].mxu0 %v2848
      %v3273 = vpop.f32.mrb[0].mxu0
      %v3274 = vadd.f32 %v3209, %v3273
      %v3275 = vpop.f32.mrb[0].mxu0
      %v3276 = vpop.f32.mrb[0].mxu0
      %v3277 = vadd.f32 %v3212, %v3276
      %v3278 = vpop.f32.mrb[0].mxu0
      %3279 = vmatprep.mubr.bf16.mxu0 %v2853
      %3280 = vmatmul.mubr.bf16.gmra.mrb[0].mxu0 %v2852
      %v3281 = vpop.f32.mrb[0].mxu0
      %v3282 = vadd.f32 %v3217, %v3281
      %v3283 = vpop.f32.mrb[0].mxu0
      %v3284 = vpop.f32.mrb[0].mxu0
      %v3285 = vadd.f32 %v3220, %v3284
      %v3286 = vpop.f32.mrb[0].mxu0
      %3287 = vmatprep.mubr.bf16.mxu0 %v2857
      %3288 = vmatmul.mubr.bf16.gmra.mrb[0].mxu0 %v2856
      %v3289 = vpop.f32.mrb[0].mxu0
      %v3290 = vadd.f32 %v3225, %v3289
      %v3291 = vpop.f32.mrb[0].mxu0
      %v3292 = vpop.f32.mrb[0].mxu0
      %v3293 = vadd.f32 %v3228, %v3292
      %v3294 = vpop.f32.mrb[0].mxu0
      %3295 = vdwg.mxu0
      %3296 = vmatprep.subr.bf16.mxu0 0
      %3297 = vmatpush1.bf16.msra.mxu0 %v3114
      %3298 = vmatprep.subr.bf16.mxu0 0
      %3299 = vmatpush1.bf16.msra.mxu0 %v3115
      %3300 = vmatprep.subr.bf16.mxu0 0
      %3301 = vmatpush1.bf16.msra.mxu0 %v3116
      %3302 = vmatprep.subr.bf16.mxu0 0
      %3303 = vmatpush1.bf16.msra.mxu0 %v3117
      %3304 = vmatprep.subr.bf16.mxu0 0
      %3305 = vmatpush1.bf16.msra.mxu0 0
      %3306 = vmatprep.subr.bf16.mxu0 0
      %3307 = vmatpush1.bf16.msra.mxu0 0
      %3308 = vmatprep.subr.bf16.mxu0 0
      %3309 = vmatpush1.bf16.msra.mxu0 0
      %3310 = vmatprep.subr.bf16.mxu0 0
      %3311 = vmatpush1.bf16.msra.mxu0 0
      %3312 = vmatprep.subr.bf16.mxu0 0
      %3313 = vmatpush1.bf16.msra.mxu0 0
      %3314 = vmatprep.subr.bf16.mxu0 0
      %3315 = vmatpush1.bf16.msra.mxu0 0
      %3316 = vmatprep.subr.bf16.mxu0 0
      %3317 = vmatpush1.bf16.msra.mxu0 0
      %3318 = vmatprep.subr.bf16.mxu0 0
      %3319 = vmatpush1.bf16.msra.mxu0 0
      %3320 = vmatprep.subr.bf16.mxu0 0
      %3321 = vmatpush1.bf16.msra.mxu0 0
      %3322 = vmatprep.subr.bf16.mxu0 0
      %3323 = vmatpush1.bf16.msra.mxu0 0
      %3324 = vmatprep.subr.bf16.mxu0 0
      %3325 = vmatpush1.bf16.msra.mxu0 0
      %3326 = vmatprep.subr.bf16.mxu0 0
      %3327 = vmatpush1.bf16.msra.mxu0 0
      %3328 = vmatprep.mubr.bf16.mxu0 0
      %3329 = vmatmul.mubr.bf16.gmra.mrb[0].mxu0 %v3155
      %v3330 = vpop.f32.mrb[0].mxu0
      %v3331 = vadd.f32 %v3266, %v3330
      %v3332 = vpop.f32.mrb[0].mxu0
      %v3333 = vpop.f32.mrb[0].mxu0
      %v3334 = vadd.f32 %v3269, %v3333
      %v3335 = vpop.f32.mrb[0].mxu0
      %3336 = vmatprep.mubr.bf16.mxu0 0
      %3337 = vmatmul.mubr.bf16.gmra.mrb[0].mxu0 %v3158
      %v3338 = vpop.f32.mrb[0].mxu0
      %v3339 = vadd.f32 %v3274, %v3338
      %v3340 = vpop.f32.mrb[0].mxu0
      %v3341 = vpop.f32.mrb[0].mxu0
      %v3342 = vadd.f32 %v3277, %v3341
      %v3343 = vpop.f32.mrb[0].mxu0
      %3344 = vmatprep.mubr.bf16.mxu0 0
      %3345 = vmatmul.mubr.bf16.gmra.mrb[0].mxu0 %v3161
      %v3346 = vpop.f32.mrb[0].mxu0
      %v3347 = vadd.f32 %v3282, %v3346
      %v3348 = vpop.f32.mrb[0].mxu0
      %v3349 = vpop.f32.mrb[0].mxu0
      %v3350 = vadd.f32 %v3285, %v3349
      %v3351 = vpop.f32.mrb[0].mxu0
      %3352 = vmatprep.mubr.bf16.mxu0 0
      %3353 = vmatmul.mubr.bf16.gmra.mrb[0].mxu0 %v3164
      %v3354 = vpop.f32.mrb[0].mxu0
      %v3355 = vadd.f32 %v3290, %v3354
      %v3356 = vpop.f32.mrb[0].mxu0
      %v3357 = vpop.f32.mrb[0].mxu0
      %v3358 = vadd.f32 %v3293, %v3357
      %v3359 = vpop.f32.mrb[0].mxu0
      %3360 = vdwg.mxu0
      %v3361 = vmax.f32 %v3331, 0.0
      %v3362 = vmax.f32 %v3334, 0.0
      %v3363 = vmax.f32 %v3339, 0.0
      %v3364 = vmax.f32 %v3342, 0.0
      %v3365 = vmax.f32 %v3347, 0.0
      %v3366 = vmax.f32 %v3350, 0.0
      %v3367 = vmax.f32 %v3355, 0.0
      %v3368 = vmax.f32 %v3358, 0.0
      %v3377 = vrot.slane %v3362, 1
      %v3378 = vrot.slane %v3361, 1
      %v3379 = vrot.slane %v3363, 1
      %v3380 = vrot.slane %v3364, 1
      %v3381 = vrot.slane %v3365, 1
      %v3382 = vrot.slane %v3366, 1
      %v3383 = vrot.slane %v3367, 1
      %v3384 = vrot.slane %v3368, 1
      %v3393 = vrot.slane %v3362, 7
      %v3394 = vrot.slane %v3361, 7
      %v3395 = vrot.slane %v3363, 7
      %v3396 = vrot.slane %v3364, 7
      %v3397 = vrot.slane %v3365, 7
      %v3398 = vrot.slane %v3366, 7
      %v3399 = vrot.slane %v3367, 7
      %v3400 = vrot.slane %v3368, 7
      %v3409 = vrot.slane %v3362, 5
      %v3410 = vrot.slane %v3361, 5
      %v3411 = vrot.slane %v3363, 5
      %v3412 = vrot.slane %v3364, 5
      %v3413 = vrot.slane %v3365, 5
      %v3414 = vrot.slane %v3366, 5
      %v3415 = vrot.slane %v3367, 5
      %v3416 = vrot.slane %v3368, 5
      %v3425 = vsel %vm452, %v3377, %v3393
      %v3426 = vsel %vm452, %v3378, %v3394
      %v3427 = vsel %vm452, %v3379, %v3395
      %v3428 = vsel %vm452, %v3380, %v3396
      %v3429 = vsel %vm452, %v3381, %v3397
      %v3430 = vsel %vm452, %v3382, %v3398
      %v3431 = vsel %vm452, %v3383, %v3399
      %v3432 = vsel %vm452, %v3384, %v3400
      %v3433 = vsel %vm452, %v3393, %v3409
      %v3434 = vsel %vm452, %v3394, %v3410
      %v3435 = vsel %vm452, %v3395, %v3411
      %v3436 = vsel %vm452, %v3396, %v3412
      %v3437 = vsel %vm452, %v3397, %v3413
      %v3438 = vsel %vm452, %v3398, %v3414
      %v3439 = vsel %vm452, %v3399, %v3415
      %v3440 = vsel %vm452, %v3400, %v3416
      %v3455 = vrot.slane %v3425, 1
      %v3456 = vrot.slane %v3433, 1
      %v3457 = vsel %vm483, %v3455, %v3456
      %v3458 = vrot.slane %v3426, 1
      %v3459 = vrot.slane %v3434, 1
      %v3460 = vsel %vm483, %v3458, %v3459
      %v3461 = vrot.slane %v3427, 1
      %v3462 = vrot.slane %v3435, 1
      %v3463 = vsel %vm483, %v3461, %v3462
      %v3464 = vrot.slane %v3428, 1
      %v3465 = vrot.slane %v3436, 1
      %v3466 = vsel %vm483, %v3464, %v3465
      %v3467 = vrot.slane %v3429, 1
      %v3468 = vrot.slane %v3437, 1
      %v3469 = vsel %vm483, %v3467, %v3468
      %v3470 = vrot.slane %v3430, 1
      %v3471 = vrot.slane %v3438, 1
      %v3472 = vsel %vm483, %v3470, %v3471
      %v3473 = vrot.slane %v3431, 1
      %v3474 = vrot.slane %v3439, 1
      %v3475 = vsel %vm483, %v3473, %v3474
      %v3476 = vrot.slane %v3425, 2
      %v3477 = vrot.slane %v3433, 2
      %v3478 = vsel %vm505, %v3476, %v3477
      %v3479 = vrot.slane %v3426, 2
      %v3480 = vrot.slane %v3434, 2
      %v3481 = vsel %vm505, %v3479, %v3480
      %v3482 = vrot.slane %v3427, 2
      %v3483 = vrot.slane %v3435, 2
      %v3484 = vsel %vm505, %v3482, %v3483
      %v3485 = vrot.slane %v3428, 2
      %v3486 = vrot.slane %v3436, 2
      %v3487 = vsel %vm505, %v3485, %v3486
      %v3488 = vrot.slane %v3429, 2
      %v3489 = vrot.slane %v3437, 2
      %v3490 = vsel %vm505, %v3488, %v3489
      %v3491 = vrot.slane %v3430, 2
      %v3492 = vrot.slane %v3438, 2
      %v3493 = vsel %vm505, %v3491, %v3492
      %v3494 = vrot.slane %v3431, 2
      %v3495 = vrot.slane %v3439, 2
      %v3496 = vsel %vm505, %v3494, %v3495
      %v3506 = vrot.slane %v3432, 1
      %v3507 = vrot.slane %v3440, 1
      %v3508 = vsel %vm483, %v3506, %v3507
      %v3517 = vrot.slane %v3432, 2
      %v3518 = vrot.slane %v3440, 2
      %v3519 = vsel %vm505, %v3517, %v3518
      %3521 = vrot.lane.b32.xlu0 %v3457, 64
      %v3522 = vpop.permute.xlu0 %3521
      %3523 = vrot.lane.b32.xlu0 %v3460, 64
      %v3524 = vpop.permute.xlu0 %3523
      %3525 = vrot.lane.b32.xlu0 %v3463, 64
      %v3526 = vpop.permute.xlu0 %3525
      %3527 = vrot.lane.b32.xlu0 %v3466, 64
      %v3528 = vpop.permute.xlu0 %3527
      %3529 = vrot.lane.b32.xlu0 %v3469, 64
      %v3530 = vpop.permute.xlu0 %3529
      %3531 = vrot.lane.b32.xlu0 %v3472, 64
      %v3532 = vpop.permute.xlu0 %3531
      %3533 = vrot.lane.b32.xlu0 %v3475, 64
      %v3534 = vpop.permute.xlu0 %3533
      %3542 = vrot.lane.b32.xlu0 %v3426, 64
      %v3543 = vpop.permute.xlu0 %3542
      %3544 = vrot.lane.b32.xlu0 %v3425, 64
      %v3545 = vpop.permute.xlu0 %3544
      %3546 = vrot.lane.b32.xlu0 %v3427, 64
      %v3547 = vpop.permute.xlu0 %3546
      %3548 = vrot.lane.b32.xlu0 %v3428, 64
      %v3549 = vpop.permute.xlu0 %3548
      %3550 = vrot.lane.b32.xlu0 %v3429, 64
      %v3551 = vpop.permute.xlu0 %3550
      %3552 = vrot.lane.b32.xlu0 %v3430, 64
      %v3553 = vpop.permute.xlu0 %3552
      %3554 = vrot.lane.b32.xlu0 %v3431, 64
      %v3555 = vpop.permute.xlu0 %3554
      %3556 = vrot.lane.b32.xlu0 %v3432, 64
      %v3557 = vpop.permute.xlu0 %3556
      %3566 = vrot.lane.b32.xlu0 %v3481, 64
      %v3567 = vpop.permute.xlu0 %3566
      %3568 = vrot.lane.b32.xlu0 %v3478, 64
      %v3569 = vpop.permute.xlu0 %3568
      %3570 = vrot.lane.b32.xlu0 %v3484, 64
      %v3571 = vpop.permute.xlu0 %3570
      %3572 = vrot.lane.b32.xlu0 %v3487, 64
      %v3573 = vpop.permute.xlu0 %3572
      %3574 = vrot.lane.b32.xlu0 %v3490, 64
      %v3575 = vpop.permute.xlu0 %3574
      %3576 = vrot.lane.b32.xlu0 %v3493, 64
      %v3577 = vpop.permute.xlu0 %3576
      %3578 = vrot.lane.b32.xlu0 %v3496, 64
      %v3579 = vpop.permute.xlu0 %3578
      %3580 = vrot.lane.b32.xlu0 %v3519, 64
      %v3581 = vpop.permute.xlu0 %3580
      %3590 = vrot.lane.b32.xlu0 %v3508, 64
      %v3591 = vpop.permute.xlu0 %3590
      %v3593 = vsel %vm690, %v3425, %v3522
      %v3594 = vsel %vm690, %v3426, %v3524
      %v3595 = vsel %vm690, %v3427, %v3526
      %v3596 = vsel %vm690, %v3428, %v3528
      %v3597 = vsel %vm690, %v3429, %v3530
      %v3598 = vsel %vm690, %v3430, %v3532
      %v3599 = vsel %vm690, %v3431, %v3534
      %v3600 = vsel %vm690, %v3478, %v3543
      %v3601 = vsel %vm690, %v3481, %v3545
      %v3602 = vsel %vm690, %v3478, %v3547
      %v3603 = vsel %vm690, %v3484, %v3549
      %v3604 = vsel %vm690, %v3487, %v3551
      %v3605 = vsel %vm690, %v3490, %v3553
      %v3606 = vsel %vm690, %v3493, %v3555
      %v3607 = vsel %vm690, %v3496, %v3557
      %v3608 = vsel %vm690, %v3460, %v3567
      %v3609 = vsel %vm690, %v3457, %v3569
      %v3610 = vsel %vm690, %v3463, %v3571
      %v3611 = vsel %vm690, %v3466, %v3573
      %v3612 = vsel %vm690, %v3469, %v3575
      %v3613 = vsel %vm690, %v3472, %v3577
      %v3614 = vsel %vm690, %v3475, %v3579
      %v3615 = vsel %vm690, %v3508, %v3581
      %v3616 = vsel %vm690, %v3432, %v3591
      %v3617 = vpack.c.bf16 %v3594, %v3593
      %v3618 = vpack.c.bf16 %v3601, %v3600
      %v3619 = vpack.c.bf16 %v3609, %v3608
      %v3620 = vpack.c.bf16 %v3595, %v3593
      %v3621 = vpack.c.bf16 %v3484, %v3478
      %v3622 = vpack.c.bf16 %v3603, %v3602
      %v3623 = vpack.c.bf16 %v3611, %v3610
      %v3624 = vpack.c.bf16 %v3597, %v3596
      %v3625 = vpack.c.bf16 %v3490, %v3487
      %v3626 = vpack.c.bf16 %v3605, %v3604
      %v3627 = vpack.c.bf16 %v3613, %v3612
      %v3628 = vpack.c.bf16 %v3599, %v3598
      %v3629 = vpack.c.bf16 %v3496, %v3493
      %v3630 = vpack.c.bf16 %v3607, %v3606
      %v3631 = vpack.c.bf16 %v3615, %v3614
      %v3632 = vpack.c.bf16 %v3599, %v3616
      %v3633 = vpack.c.bf16 %v3496, %v3519
      %v3634 = vld [vmem:[%s9] sm:$0xf]
      %v3635 = vld [vmem:[%s9 + $0x4] sm:$0xf]
      %v3636 = vld [vmem:[%s9 + $0x8] sm:$0xf]
      %v3637 = vld [vmem:[%s9 + $0xc] sm:$0xf]
      %v3638 = vld [vmem:[%s9 + $0x10] sm:$0xf]
      %v3639 = vld [vmem:[%s9 + $0x14] sm:$0xf]
      %v3640 = vld [vmem:[%s9 + $0x18] sm:$0xf]
      %v3641 = vld [vmem:[%s9 + $0x1c] sm:$0xf]
      %v3642 = vld [vmem:[%s9 + $0x20] sm:$0xf]
      %v3643 = vld [vmem:[%s9 + $0x24] sm:$0xf]
      %v3644 = vld [vmem:[%s9 + $0x28] sm:$0xf]
      %v3645 = vld [vmem:[%s9 + $0x2c] sm:$0xf]
      %v3646 = vld [vmem:[%s9 + $0x30] sm:$0xf]
      %v3647 = vld [vmem:[%s9 + $0x34] sm:$0xf]
      %v3648 = vld [vmem:[%s9 + $0x38] sm:$0xf]
      %v3649 = vld [vmem:[%s9 + $0x3c] sm:$0xf]
      %v3650 = vld [vmem:[%s9 + $0x40] sm:$0xf]
      %v3651 = vld [vmem:[%s9 + $0x44] sm:$0xf]
      %v3652 = vld [vmem:[%s9 + $0x48] sm:$0xf]
      %v3653 = vld [vmem:[%s9 + $0x4c] sm:$0xf]
      %v3654 = vld [vmem:[%s9 + $0x50] sm:$0xf]
      %v3655 = vld [vmem:[%s9 + $0x54] sm:$0xf]
      %v3656 = vld [vmem:[%s9 + $0x58] sm:$0xf]
      %v3657 = vld [vmem:[%s9 + $0x5c] sm:$0xf]
      %v3658 = vld [vmem:[%s9 + $0x60] sm:$0xf]
      %v3659 = vld [vmem:[%s9 + $0x64] sm:$0xf]
      %v3660 = vld [vmem:[%s9 + $0x68] sm:$0xf]
      %v3661 = vld [vmem:[%s9 + $0x6c] sm:$0xf]
      %v3662 = vld [vmem:[%s9 + $0x70] sm:$0xf]
      %v3663 = vld [vmem:[%s9 + $0x74] sm:$0xf]
      %v3664 = vld [vmem:[%s9 + $0x78] sm:$0xf]
      %v3665 = vld [vmem:[%s9 + $0x7c] sm:$0xf]
      %v3666 = vld [vmem:[%s9 + $0x80] sm:$0xf]
      %v3667 = vld [vmem:[%s9 + $0x84] sm:$0xf]
      %v3668 = vld [vmem:[%s9 + $0x88] sm:$0xf]
      %v3669 = vld [vmem:[%s9 + $0x8c] sm:$0xf]
      %v3670 = vld [vmem:[%s9 + $0x90] sm:$0xf]
      %v3671 = vld [vmem:[%s9 + $0x94] sm:$0xf]
      %v3672 = vld [vmem:[%s9 + $0x98] sm:$0xf]
      %v3673 = vld [vmem:[%s9 + $0x9c] sm:$0xf]
      %v3674 = vld [vmem:[%s9 + $0xa0] sm:$0xf]
      %v3675 = vld [vmem:[%s9 + $0xa4] sm:$0xf]
      %v3676 = vld [vmem:[%s9 + $0xa8] sm:$0xf]
      %v3677 = vld [vmem:[%s9 + $0xac] sm:$0xf]
      %v3678 = vld [vmem:[%s9 + $0xb0] sm:$0xf]
      %v3679 = vld [vmem:[%s9 + $0xb4] sm:$0xf]
      %v3680 = vld [vmem:[%s9 + $0xb8] sm:$0xf]
      %v3681 = vld [vmem:[%s9 + $0xbc] sm:$0xf]
      %v3682 = vld [vmem:[%s9 + $0xc0] sm:$0xf]
      %v3683 = vld [vmem:[%s9 + $0xc4] sm:$0xf]
      %v3684 = vld [vmem:[%s9 + $0xc8] sm:$0xf]
      %v3685 = vld [vmem:[%s9 + $0xcc] sm:$0xf]
      %v3686 = vld [vmem:[%s9 + $0xd0] sm:$0xf]
      %v3687 = vld [vmem:[%s9 + $0xd4] sm:$0xf]
      %v3688 = vld [vmem:[%s9 + $0xd8] sm:$0xf]
      %v3689 = vld [vmem:[%s9 + $0xdc] sm:$0xf]
      %v3690 = vld [vmem:[%s9 + $0xe0] sm:$0xf]
      %v3691 = vld [vmem:[%s9 + $0xe4] sm:$0xf]
      %v3692 = vld [vmem:[%s9 + $0xe8] sm:$0xf]
      %v3693 = vld [vmem:[%s9 + $0xec] sm:$0xf]
      %v3694 = vld [vmem:[%s9 + $0xf0] sm:$0xf]
      %v3695 = vld [vmem:[%s9 + $0xf4] sm:$0xf]
      %v3696 = vld [vmem:[%s9 + $0xf8] sm:$0xf]
      %v3697 = vld [vmem:[%s9 + $0xfc] sm:$0xf]
      %v3698 = vld [vmem:[%s9 + $0x100] sm:$0xf]
      %v3699 = vld [vmem:[%s9 + $0x104] sm:$0xf]
      %v3700 = vld [vmem:[%s9 + $0x108] sm:$0xf]
      %v3701 = vld [vmem:[%s9 + $0x10c] sm:$0xf]
      %v3702 = vld [vmem:[%s9 + $0x110] sm:$0xf]
      %v3703 = vld [vmem:[%s9 + $0x114] sm:$0xf]
      %v3704 = vld [vmem:[%s9 + $0x118] sm:$0xf]
      %v3705 = vld [vmem:[%s9 + $0x11c] sm:$0xf]
      %v3706 = vld [vmem:[%s10] sm:$0x1]
      %v3708 = vlaneseq
      %v3709 = vshrl.u32 %v3708, 7
      %v3710 = vsub.s32 0, %v3709
      %v3711 = vrot.slane %v3706, %v3710
      %v3785 = vunpack.c.l.b16 %v3634
      %v3786 = vunpack.c.l.b16 %v3635
      %v3787 = vunpack.c.l.b16 %v3636
      %v3788 = vunpack.c.l.b16 %v3637
      %v3789 = vunpack.c.l.b16 %v3638
      %v3790 = vunpack.c.l.b16 %v3639
      %v3791 = vunpack.c.l.b16 %v3640
      %v3792 = vunpack.c.l.b16 %v3641
      %v3793 = vunpack.c.l.b16 %v3642
      %v3794 = vunpack.c.l.b16 %v3643
      %v3795 = vunpack.c.l.b16 %v3644
      %v3796 = vunpack.c.l.b16 %v3645
      %v3797 = vunpack.c.l.b16 %v3646
      %v3798 = vunpack.c.l.b16 %v3647
      %v3799 = vunpack.c.l.b16 %v3648
      %v3800 = vunpack.c.l.b16 %v3649
      %v3801 = vunpack.c.l.b16 %v3650
      %v3802 = vunpack.c.l.b16 %v3651
      %v3803 = vunpack.c.l.b16 %v3652
      %v3804 = vunpack.c.l.b16 %v3653
      %v3805 = vunpack.c.l.b16 %v3654
      %v3806 = vunpack.c.l.b16 %v3655
      %v3807 = vunpack.c.l.b16 %v3656
      %v3808 = vunpack.c.l.b16 %v3657
      %v3809 = vunpack.c.l.b16 %v3658
      %v3810 = vunpack.c.l.b16 %v3659
      %v3811 = vunpack.c.l.b16 %v3660
      %v3812 = vunpack.c.l.b16 %v3661
      %v3813 = vunpack.c.l.b16 %v3662
      %v3814 = vunpack.c.l.b16 %v3663
      %v3815 = vunpack.c.l.b16 %v3664
      %v3816 = vunpack.c.l.b16 %v3665
      %v3817 = vunpack.c.l.b16 %v3666
      %v3818 = vunpack.c.l.b16 %v3667
      %v3819 = vunpack.c.l.b16 %v3668
      %v3820 = vunpack.c.l.b16 %v3669
      %v3821 = vunpack.c.l.b16 %v3670
      %v3822 = vunpack.c.l.b16 %v3671
      %v3823 = vunpack.c.l.b16 %v3672
      %v3824 = vunpack.c.l.b16 %v3673
      %v3825 = vunpack.c.l.b16 %v3674
      %v3826 = vunpack.c.l.b16 %v3675
      %v3827 = vunpack.c.l.b16 %v3676
      %v3828 = vunpack.c.l.b16 %v3677
      %v3829 = vunpack.c.l.b16 %v3678
      %v3830 = vunpack.c.l.b16 %v3679
      %v3831 = vunpack.c.l.b16 %v3680
      %v3832 = vunpack.c.l.b16 %v3681
      %v3833 = vunpack.c.l.b16 %v3682
      %v3834 = vunpack.c.l.b16 %v3683
      %v3835 = vunpack.c.l.b16 %v3684
      %v3836 = vunpack.c.l.b16 %v3685
      %v3837 = vunpack.c.l.b16 %v3686
      %v3838 = vunpack.c.l.b16 %v3687
      %v3839 = vunpack.c.l.b16 %v3688
      %v3840 = vunpack.c.l.b16 %v3689
      %v3841 = vunpack.c.l.b16 %v3690
      %v3842 = vunpack.c.l.b16 %v3691
      %v3843 = vunpack.c.l.b16 %v3692
      %v3844 = vunpack.c.l.b16 %v3693
      %v3845 = vunpack.c.l.b16 %v3694
      %v3846 = vunpack.c.l.b16 %v3695
      %v3847 = vunpack.c.l.b16 %v3696
      %v3848 = vunpack.c.l.b16 %v3697
      %v3849 = vunpack.c.l.b16 %v3698
      %v3850 = vunpack.c.l.b16 %v3699
      %v3851 = vunpack.c.l.b16 %v3700
      %v3852 = vunpack.c.l.b16 %v3701
      %v3853 = vunpack.c.l.b16 %v3702
      %v3854 = vunpack.c.l.b16 %v3703
      %v3855 = vunpack.c.l.b16 %v3704
      %v3856 = vunpack.c.l.b16 %v3705
      %v3857 = vpack.c.b16 %v3786, %v3785
      %v3858 = vpack.c.b16 %v3788, %v3787
      %v3859 = vpack.c.b16 %v3790, %v3789
      %v3860 = vpack.c.b16 %v3792, %v3791
      %v3861 = vpack.c.b16 %v3794, %v3793
      %v3862 = vpack.c.b16 %v3796, %v3795
      %v3863 = vpack.c.b16 %v3798, %v3797
      %v3864 = vpack.c.b16 %v3800, %v3799
      %v3865 = vpack.c.b16 %v3802, %v3801
      %v3866 = vpack.c.b16 %v3804, %v3803
      %v3867 = vpack.c.b16 %v3806, %v3805
      %v3868 = vpack.c.b16 %v3808, %v3807
      %v3869 = vpack.c.b16 %v3810, %v3809
      %v3870 = vpack.c.b16 %v3812, %v3811
      %v3871 = vpack.c.b16 %v3814, %v3813
      %v3872 = vpack.c.b16 %v3816, %v3815
      %v3873 = vpack.c.b16 %v3818, %v3817
      %v3874 = vpack.c.b16 %v3820, %v3819
      %v3875 = vpack.c.b16 %v3822, %v3821
      %v3876 = vpack.c.b16 %v3824, %v3823
      %v3877 = vpack.c.b16 %v3826, %v3825
      %v3878 = vpack.c.b16 %v3828, %v3827
      %v3879 = vpack.c.b16 %v3830, %v3829
      %v3880 = vpack.c.b16 %v3832, %v3831
      %v3881 = vpack.c.b16 %v3834, %v3833
      %v3882 = vpack.c.b16 %v3836, %v3835
      %v3883 = vpack.c.b16 %v3838, %v3837
      %v3884 = vpack.c.b16 %v3840, %v3839
      %v3885 = vpack.c.b16 %v3842, %v3841
      %v3886 = vpack.c.b16 %v3844, %v3843
      %v3887 = vpack.c.b16 %v3846, %v3845
      %v3888 = vpack.c.b16 %v3848, %v3847
      %v3889 = vpack.c.b16 %v3850, %v3849
      %v3890 = vpack.c.b16 %v3852, %v3851
      %v3891 = vpack.c.b16 %v3854, %v3853
      %v3892 = vpack.c.b16 %v3856, %v3855
      %v3930 = vsel %vm690, %v3621, 0
      %v3933 = vsel %vm690, %v3625, 0
      %v3936 = vsel %vm690, %v3629, 0
      %v3939 = vsel %vm690, %v3633, 0
      %3941 = vmatprep.subr.bf16.mxu0 0
      %3942 = vmatpush1.bf16.msra.mxu0 %v3857
      %3943 = vmatprep.subr.bf16.mxu0 0
      %3944 = vmatpush1.bf16.msra.mxu0 %v3858
      %3945 = vmatprep.subr.bf16.mxu0 0
      %3946 = vmatpush1.bf16.msra.mxu0 %v3859
      %3947 = vmatprep.subr.bf16.mxu0 0
      %3948 = vmatpush1.bf16.msra.mxu0 %v3860
      %3949 = vmatprep.subr.bf16.mxu0 0
      %3950 = vmatpush1.bf16.msra.mxu0 %v3861
      %3951 = vmatprep.subr.bf16.mxu0 0
      %3952 = vmatpush1.bf16.msra.mxu0 %v3862
      %3953 = vmatprep.subr.bf16.mxu0 0
      %3954 = vmatpush1.bf16.msra.mxu0 %v3863
      %3955 = vmatprep.subr.bf16.mxu0 0
      %3956 = vmatpush1.bf16.msra.mxu0 %v3864
      %3957 = vmatprep.subr.bf16.mxu0 0
      %3958 = vmatpush1.bf16.msra.mxu0 %v3865
      %3959 = vmatprep.subr.bf16.mxu0 0
      %3960 = vmatpush1.bf16.msra.mxu0 %v3866
      %3961 = vmatprep.subr.bf16.mxu0 0
      %3962 = vmatpush1.bf16.msra.mxu0 %v3867
      %3963 = vmatprep.subr.bf16.mxu0 0
      %3964 = vmatpush1.bf16.msra.mxu0 %v3868
      %3965 = vmatprep.subr.bf16.mxu0 0
      %3966 = vmatpush1.bf16.msra.mxu0 %v3869
      %3967 = vmatprep.subr.bf16.mxu0 0
      %3968 = vmatpush1.bf16.msra.mxu0 %v3870
      %3969 = vmatprep.subr.bf16.mxu0 0
      %3970 = vmatpush1.bf16.msra.mxu0 %v3871
      %3971 = vmatprep.subr.bf16.mxu0 0
      %3972 = vmatpush1.bf16.msra.mxu0 %v3872
      %3973 = vmatprep.mubr.bf16.mxu0 %v3618
      %3974 = vmatmul.mubr.bf16.gmra.mrb[0].mxu0 %v3617
      %v3975 = vpop.f32.mrb[0].mxu0
      %v3976 = vadd.f32 %v3711, %v3975
      %v3977 = vpop.f32.mrb[0].mxu0
      %v3978 = vpop.f32.mrb[0].mxu0
      %v3979 = vadd.f32 %v3711, %v3978
      %v3980 = vpop.f32.mrb[0].mxu0
      %3981 = vmatprep.mubr.bf16.mxu0 %v3622
      %3982 = vmatmul.mubr.bf16.gmra.mrb[0].mxu0 %v3620
      %v3983 = vpop.f32.mrb[0].mxu0
      %v3984 = vadd.f32 %v3711, %v3983
      %v3985 = vpop.f32.mrb[0].mxu0
      %v3986 = vpop.f32.mrb[0].mxu0
      %v3987 = vadd.f32 %v3711, %v3986
      %v3988 = vpop.f32.mrb[0].mxu0
      %3989 = vmatprep.mubr.bf16.mxu0 %v3626
      %3990 = vmatmul.mubr.bf16.gmra.mrb[0].mxu0 %v3624
      %v3991 = vpop.f32.mrb[0].mxu0
      %v3992 = vadd.f32 %v3711, %v3991
      %v3993 = vpop.f32.mrb[0].mxu0
      %v3994 = vpop.f32.mrb[0].mxu0
      %v3995 = vadd.f32 %v3711, %v3994
      %v3996 = vpop.f32.mrb[0].mxu0
      %3997 = vmatprep.mubr.bf16.mxu0 %v3630
      %3998 = vmatmul.mubr.bf16.gmra.mrb[0].mxu0 %v3628
      %v3999 = vpop.f32.mrb[0].mxu0
      %v4000 = vadd.f32 %v3711, %v3999
      %v4001 = vpop.f32.mrb[0].mxu0
      %v4002 = vpop.f32.mrb[0].mxu0
      %v4003 = vadd.f32 %v3711, %v4002
      %v4004 = vpop.f32.mrb[0].mxu0
      %4005 = vdwg.mxu0
      %4006 = vmatprep.subr.bf16.mxu0 0
      %4007 = vmatpush1.bf16.msra.mxu0 %v3873
      %4008 = vmatprep.subr.bf16.mxu0 0
      %4009 = vmatpush1.bf16.msra.mxu0 %v3874
      %4010 = vmatprep.subr.bf16.mxu0 0
      %4011 = vmatpush1.bf16.msra.mxu0 %v3875
      %4012 = vmatprep.subr.bf16.mxu0 0
      %4013 = vmatpush1.bf16.msra.mxu0 %v3876
      %4014 = vmatprep.subr.bf16.mxu0 0
      %4015 = vmatpush1.bf16.msra.mxu0 %v3877
      %4016 = vmatprep.subr.bf16.mxu0 0
      %4017 = vmatpush1.bf16.msra.mxu0 %v3878
      %4018 = vmatprep.subr.bf16.mxu0 0
      %4019 = vmatpush1.bf16.msra.mxu0 %v3879
      %4020 = vmatprep.subr.bf16.mxu0 0
      %4021 = vmatpush1.bf16.msra.mxu0 %v3880
      %4022 = vmatprep.subr.bf16.mxu0 0
      %4023 = vmatpush1.bf16.msra.mxu0 %v3881
      %4024 = vmatprep.subr.bf16.mxu0 0
      %4025 = vmatpush1.bf16.msra.mxu0 %v3882
      %4026 = vmatprep.subr.bf16.mxu0 0
      %4027 = vmatpush1.bf16.msra.mxu0 %v3883
      %4028 = vmatprep.subr.bf16.mxu0 0
      %4029 = vmatpush1.bf16.msra.mxu0 %v3884
      %4030 = vmatprep.subr.bf16.mxu0 0
      %4031 = vmatpush1.bf16.msra.mxu0 %v3885
      %4032 = vmatprep.subr.bf16.mxu0 0
      %4033 = vmatpush1.bf16.msra.mxu0 %v3886
      %4034 = vmatprep.subr.bf16.mxu0 0
      %4035 = vmatpush1.bf16.msra.mxu0 %v3887
      %4036 = vmatprep.subr.bf16.mxu0 0
      %4037 = vmatpush1.bf16.msra.mxu0 %v3888
      %4038 = vmatprep.mubr.bf16.mxu0 %v3620
      %4039 = vmatmul.mubr.bf16.gmra.mrb[0].mxu0 %v3619
      %v4040 = vpop.f32.mrb[0].mxu0
      %v4041 = vadd.f32 %v3976, %v4040
      %v4042 = vpop.f32.mrb[0].mxu0
      %v4043 = vpop.f32.mrb[0].mxu0
      %v4044 = vadd.f32 %v3979, %v4043
      %v4045 = vpop.f32.mrb[0].mxu0
      %4046 = vmatprep.mubr.bf16.mxu0 %v3624
      %4047 = vmatmul.mubr.bf16.gmra.mrb[0].mxu0 %v3623
      %v4048 = vpop.f32.mrb[0].mxu0
      %v4049 = vadd.f32 %v3984, %v4048
      %v4050 = vpop.f32.mrb[0].mxu0
      %v4051 = vpop.f32.mrb[0].mxu0
      %v4052 = vadd.f32 %v3987, %v4051
      %v4053 = vpop.f32.mrb[0].mxu0
      %4054 = vmatprep.mubr.bf16.mxu0 %v3628
      %4055 = vmatmul.mubr.bf16.gmra.mrb[0].mxu0 %v3627
      %v4056 = vpop.f32.mrb[0].mxu0
      %v4057 = vadd.f32 %v3992, %v4056
      %v4058 = vpop.f32.mrb[0].mxu0
      %v4059 = vpop.f32.mrb[0].mxu0
      %v4060 = vadd.f32 %v3995, %v4059
      %v4061 = vpop.f32.mrb[0].mxu0
      %4062 = vmatprep.mubr.bf16.mxu0 %v3632
      %4063 = vmatmul.mubr.bf16.gmra.mrb[0].mxu0 %v3631
      %v4064 = vpop.f32.mrb[0].mxu0
      %v4065 = vadd.f32 %v4000, %v4064
      %v4066 = vpop.f32.mrb[0].mxu0
      %v4067 = vpop.f32.mrb[0].mxu0
      %v4068 = vadd.f32 %v4003, %v4067
      %v4069 = vpop.f32.mrb[0].mxu0
      %4070 = vdwg.mxu0
      %4071 = vmatprep.subr.bf16.mxu0 0
      %4072 = vmatpush1.bf16.msra.mxu0 %v3889
      %4073 = vmatprep.subr.bf16.mxu0 0
      %4074 = vmatpush1.bf16.msra.mxu0 %v3890
      %4075 = vmatprep.subr.bf16.mxu0 0
      %4076 = vmatpush1.bf16.msra.mxu0 %v3891
      %4077 = vmatprep.subr.bf16.mxu0 0
      %4078 = vmatpush1.bf16.msra.mxu0 %v3892
      %4079 = vmatprep.subr.bf16.mxu0 0
      %4080 = vmatpush1.bf16.msra.mxu0 0
      %4081 = vmatprep.subr.bf16.mxu0 0
      %4082 = vmatpush1.bf16.msra.mxu0 0
      %4083 = vmatprep.subr.bf16.mxu0 0
      %4084 = vmatpush1.bf16.msra.mxu0 0
      %4085 = vmatprep.subr.bf16.mxu0 0
      %4086 = vmatpush1.bf16.msra.mxu0 0
      %4087 = vmatprep.subr.bf16.mxu0 0
      %4088 = vmatpush1.bf16.msra.mxu0 0
      %4089 = vmatprep.subr.bf16.mxu0 0
      %4090 = vmatpush1.bf16.msra.mxu0 0
      %4091 = vmatprep.subr.bf16.mxu0 0
      %4092 = vmatpush1.bf16.msra.mxu0 0
      %4093 = vmatprep.subr.bf16.mxu0 0
      %4094 = vmatpush1.bf16.msra.mxu0 0
      %4095 = vmatprep.subr.bf16.mxu0 0
      %4096 = vmatpush1.bf16.msra.mxu0 0
      %4097 = vmatprep.subr.bf16.mxu0 0
      %4098 = vmatpush1.bf16.msra.mxu0 0
      %4099 = vmatprep.subr.bf16.mxu0 0
      %4100 = vmatpush1.bf16.msra.mxu0 0
      %4101 = vmatprep.subr.bf16.mxu0 0
      %4102 = vmatpush1.bf16.msra.mxu0 0
      %4103 = vmatprep.mubr.bf16.mxu0 0
      %4104 = vmatmul.mubr.bf16.gmra.mrb[0].mxu0 %v3930
      %v4105 = vpop.f32.mrb[0].mxu0
      %v4106 = vadd.f32 %v4041, %v4105
      %v4107 = vpop.f32.mrb[0].mxu0
      %v4108 = vpop.f32.mrb[0].mxu0
      %v4109 = vadd.f32 %v4044, %v4108
      %v4110 = vpop.f32.mrb[0].mxu0
      %4111 = vmatprep.mubr.bf16.mxu0 0
      %4112 = vmatmul.mubr.bf16.gmra.mrb[0].mxu0 %v3933
      %v4113 = vpop.f32.mrb[0].mxu0
      %v4114 = vadd.f32 %v4049, %v4113
      %v4115 = vpop.f32.mrb[0].mxu0
      %v4116 = vpop.f32.mrb[0].mxu0
      %v4117 = vadd.f32 %v4052, %v4116
      %v4118 = vpop.f32.mrb[0].mxu0
      %4119 = vmatprep.mubr.bf16.mxu0 0
      %4120 = vmatmul.mubr.bf16.gmra.mrb[0].mxu0 %v3936
      %v4121 = vpop.f32.mrb[0].mxu0
      %v4122 = vadd.f32 %v4057, %v4121
      %v4123 = vpop.f32.mrb[0].mxu0
      %v4124 = vpop.f32.mrb[0].mxu0
      %v4125 = vadd.f32 %v4060, %v4124
      %v4126 = vpop.f32.mrb[0].mxu0
      %4127 = vmatprep.mubr.bf16.mxu0 0
      %4128 = vmatmul.mubr.bf16.gmra.mrb[0].mxu0 %v3939
      %v4129 = vpop.f32.mrb[0].mxu0
      %v4130 = vadd.f32 %v4065, %v4129
      %v4131 = vpop.f32.mrb[0].mxu0
      %v4132 = vpop.f32.mrb[0].mxu0
      %v4133 = vadd.f32 %v4068, %v4132
      %v4134 = vpop.f32.mrb[0].mxu0
      %4135 = vdwg.mxu0
      %v4136 = vxor.u32 %v4106, 2147483648
      %v4137 = vxor.u32 %v4109, 2147483648
      %v4138 = vxor.u32 %v4114, 2147483648
      %v4139 = vxor.u32 %v4117, 2147483648
      %v4140 = vxor.u32 %v4122, 2147483648
      %v4141 = vxor.u32 %v4125, 2147483648
      %v4142 = vxor.u32 %v4130, 2147483648
      %v4143 = vxor.u32 %v4133, 2147483648
      %v4144 = vmul.f32 %v4136, 1.442695
      %v4145 = vpow.pop %v4144
      %v4146 = vmul.f32 %v4137, 1.442695
      %v4147 = vpow.pop %v4146
      %v4148 = vmul.f32 %v4138, 1.442695
      %v4149 = vpow.pop %v4148
      %v4150 = vmul.f32 %v4139, 1.442695
      %v4151 = vpow.pop %v4150
      %v4152 = vmul.f32 %v4140, 1.442695
      %v4153 = vpow.pop %v4152
      %v4154 = vmul.f32 %v4141, 1.442695
      %v4155 = vpow.pop %v4154
      %v4156 = vmul.f32 %v4142, 1.442695
      %v4157 = vpow.pop %v4156
      %v4158 = vmul.f32 %v4143, 1.442695
      %v4159 = vpow.pop %v4158
      %v4160 = vadd.f32 %v4145, 1.0
      %v4161 = vadd.f32 %v4147, 1.0
      %v4162 = vadd.f32 %v4149, 1.0
      %v4163 = vadd.f32 %v4151, 1.0
      %v4164 = vadd.f32 %v4153, 1.0
      %v4165 = vadd.f32 %v4155, 1.0
      %v4166 = vadd.f32 %v4157, 1.0
      %v4167 = vadd.f32 %v4159, 1.0
      %v4168 = vrcp.pop %v4160
      %v4169 = vmul.f32 1.0, %v4168
      %v4170 = vrcp.pop %v4161
      %v4171 = vmul.f32 1.0, %v4170
      %v4172 = vrcp.pop %v4162
      %v4173 = vmul.f32 1.0, %v4172
      %v4174 = vrcp.pop %v4163
      %v4175 = vmul.f32 1.0, %v4174
      %v4176 = vrcp.pop %v4164
      %v4177 = vmul.f32 1.0, %v4176
      %v4178 = vrcp.pop %v4165
      %v4179 = vmul.f32 1.0, %v4178
      %v4180 = vrcp.pop %v4166
      %v4181 = vmul.f32 1.0, %v4180
      %v4182 = vrcp.pop %v4167
      %v4183 = vmul.f32 1.0, %v4182
      %4184 = vst [vmem:[%s386] sm:$0xff] %v4169
      %4185 = vst [vmem:[%s386 + $0x8] sm:$0xff] %v4171
      %4186 = vst [vmem:[%s386 + $0x10] sm:$0xff] %v4173
      %4187 = vst [vmem:[%s386 + $0x18] sm:$0xff] %v4175
      %4188 = vst [vmem:[%s386 + $0x20] sm:$0xff] %v4177
      %4189 = vst [vmem:[%s386 + $0x28] sm:$0xff] %v4179
      %4190 = vst [vmem:[%s386 + $0x30] sm:$0xff] %v4181
      %4191 = vst [vmem:[%s386 + $0x38] sm:$0xff] %v4183
      %p4192 = scmp.lt.s32.totalorder %s22, 1
      %s4193 = scalar_select %p4192, %s22, 1
      %s4194 = smul.addr %s4193, 8
      %s4195 = smul.addr %s4194, 8
      %s4196 = scalar_lea.vmem %s11, %s4195
      // Predicated region
      $region65: #{l_net_forward.1} parent=63 // pred_check
        %p4197 = pneg %p276
      $region66: #{l_net_forward.1} parent=63 // pred_check_branch
        %4199 = sbr.rel (%p4197) target = $region68
      $region67: #{l_net_forward.1} parent=63 // pred_region
        _
      $region68: #{l_net_forward.1} parent=63 // pred_fallthru
        _
    $region64: #{l_net_forward.1} parent=5 // pred_fallthru
      _
    %p4200 = scmp.le.s32.totalorder 2, %s17
    // Predicated region
    $region69: #{l_net_forward.1} parent=5 // pred_check
      %p4201 = pneg %p4200
    $region70: #{l_net_forward.1} parent=5 // pred_check_branch
      %4203 = sbr.rel (%p4201) target = $region72
    $region71: #{l_net_forward.1} parent=5 // pred_region
      %s4204 = ssub.s32 %s17, 2
      // Predicated region
      $region73: #{l_net_forward.1} parent=71 // pred_check
        %p4205 = pneg %p282
      $region74: #{l_net_forward.1} parent=71 // pred_check_branch
        %4207 = sbr.rel (%p4205) target = $region76
      $region75: #{l_net_forward.1} parent=71 // pred_region
        %p4208 = scmp.lt.s32.totalorder %s23, 1
        %s4209 = scalar_select %p4208, %s23, 1
        %s4210 = smul.addr %s4209, 8
        %s4211 = smul.addr %s4210, 8
        %s4212 = scalar_lea.vmem %s11, %s4211
      $region76: #{l_net_forward.1} parent=71 // pred_fallthru
        _
    $region72: #{l_net_forward.1} parent=5 // pred_fallthru
      _
  $region6: #{l_net_forward.1} parent=0 // loop_footer
    %s21 = sadd.s32 1, %s17
  $region7: #{l_net_forward.1} parent=0 // loop_footer_branch
    %16 = sbr.rel target = $region3
  $region8: #{l_net_forward.1} parent=0 // loop_exit
    _

</llo_original>
